<compile_context>
chip_gen: v7x
topology: tpu7x:2x2x1
jax: 0.10.0
libtpu: 0.0.40
codegen_flags: <defaults>
</compile_context>

<pallas_src>
import functools
import math

import jax
import jax.numpy as jnp
from jax.experimental import pallas as pl
from jax.experimental.pallas import tpu as pltpu


def _round_up(x: int, m: int) -> int:
    return ((x + m - 1) // m) * m


# ----------------------------- deterministic "parameters" ---------------------------------

def hann_window(win_length: int) -> jnp.ndarray:
    # torch.hann_window(win_length, periodic=True)
    n = jnp.arange(win_length, dtype=jnp.float32)
    return 0.5 * (1.0 - jnp.cos(2.0 * math.pi * n / win_length))


def melscale_fbanks(n_freqs, f_min, f_max, n_mels, sample_rate) -> jnp.ndarray:
    # torchaudio.functional.melscale_fbanks, mel_scale="htk", norm=None
    all_freqs = jnp.linspace(0.0, sample_rate // 2, n_freqs).astype(jnp.float32)

    def hz_to_mel(f):
        return 2595.0 * math.log10(1.0 + f / 700.0)

    m_min = hz_to_mel(float(f_min))
    m_max = hz_to_mel(float(f_max))
    m_pts = jnp.linspace(m_min, m_max, n_mels + 2).astype(jnp.float32)
    f_pts = 700.0 * (10.0 ** (m_pts / 2595.0) - 1.0)

    f_diff = f_pts[1:] - f_pts[:-1]                       # (n_mels + 1,)
    slopes = f_pts[None, :] - all_freqs[:, None]          # (n_freqs, n_mels + 2)
    down = -slopes[:, :-2] / f_diff[:-1]
    up = slopes[:, 2:] / f_diff[1:]
    fb = jnp.maximum(0.0, jnp.minimum(down, up))
    return fb.astype(jnp.float32)                          # (n_freqs, n_mels)


# ----------------------------------- Pallas kernel -----------------------------------------

def _mel_kernel(chunks_ref, halo_ref, wc_ref, ws_ref, fb_ref, out_ref, *, tf, hop, r):
    # chunks_ref: (1, TF, hop)     bf16  hop-chunks [t*TF, t*TF + TF)
    # halo_ref:   (1, 8,  hop)     bf16  hop-chunks [t*TF + TF, t*TF + TF + 8)
    # wc_ref/ws_ref: (n_fft, NFp)  bf16  window-folded cos / -sin DFT bases
    # fb_ref:     (NFp, NMp)       bf16  mel filterbank
    # out_ref:    (1, NMp, TF)     f32   log-mel tile, stored transposed (mel x frame)
    slab = jnp.concatenate([chunks_ref[0], halo_ref[0]], axis=0)        # (TF+8, hop)

    # frame f = concat(chunk[f], ..., chunk[f+R-1]); the STFT matmul decomposes into
    # R shifted (TF, hop) x (hop, NFp) partial products (static unroll, R = 4 default).
    nfp = wc_ref.shape[1]
    re = jnp.zeros((tf, nfp), jnp.float32)
    im = jnp.zeros((tf, nfp), jnp.float32)
    for j in range(r):
        xj = slab[j:j + tf, :]                                          # (TF, hop) bf16
        re = re + jnp.dot(xj, wc_ref[j * hop:(j + 1) * hop, :],
                          preferred_element_type=jnp.float32)
        im = im + jnp.dot(xj, ws_ref[j * hop:(j + 1) * hop, :],
                          preferred_element_type=jnp.float32)

    mag = jnp.sqrt(re * re + im * im)                                   # |STFT|, power=1
    mel = jnp.dot(mag.astype(jnp.bfloat16), fb_ref[...],
                  preferred_element_type=jnp.float32)                   # (TF, NMp)
    out_ref[0] = jnp.log(jnp.clip(mel, 1e-7)).T                         # safe_log, (NMp, TF)


# ------------------------------------- module wrapper ---------------------------------------

class MelSpectrogramFeatures:
    def __init__(self, sample_rate=24000, n_fft=1024, hop_length=256, win_length=None,
                 n_mels=100, mel_fmin=0.0, mel_fmax=None, normalize=False, padding="center"):
        if padding not in ("center", "same"):
            raise ValueError("Padding must be 'center' or 'same'.")
        if normalize:
            raise NotImplementedError("normalized=True (window L2 norm) not implemented.")
        if n_fft % hop_length != 0:
            raise NotImplementedError("in-kernel framing requires n_fft % hop_length == 0")
        self.padding = padding
        self.n_fft = n_fft
        self.hop_length = hop_length
        self.win_length = n_fft if win_length is None else win_length
        self.n_mels = n_mels
        self.n_freqs = n_fft // 2 + 1
        self.nf_pad = _round_up(self.n_freqs, 128)      # 513 -> 640 (lane aligned)
        self.nm_pad = _round_up(self.n_mels, 128)       # 100 -> 128 (lane-dense stores)
        self.r = n_fft // hop_length                    # hop-chunks per frame (4)
        if self.r - 1 > 8:
            raise NotImplementedError("n_fft / hop_length > 9 exceeds the 8-chunk halo")
        f_max = sample_rate / 2.0 if mel_fmax is None else mel_fmax

        window = hann_window(self.win_length)
        if self.win_length < n_fft:  # torch.stft centers a short window inside n_fft
            pad_l = (n_fft - self.win_length) // 2
            window = jnp.pad(window, (pad_l, n_fft - self.win_length - pad_l))

        n = jnp.arange(n_fft, dtype=jnp.float32)[:, None]
        f = jnp.arange(self.n_freqs, dtype=jnp.float32)[None, :]
        ang = 2.0 * math.pi * n * f / n_fft
        pad_f = self.nf_pad - self.n_freqs
        # Fold the analysis window into the DFT bases; keep cos and sin separate so the
        # kernel produces re / im directly (no wide fused result + slice copies).
        self.wc_f32 = jnp.pad(window[:, None] * jnp.cos(ang), ((0, 0), (0, pad_f)))
        self.ws_f32 = jnp.pad(window[:, None] * -jnp.sin(ang), ((0, 0), (0, pad_f)))
        self.wc = self.wc_f32.astype(jnp.bfloat16)                      # (n_fft, NFp)
        self.ws = self.ws_f32.astype(jnp.bfloat16)

        fb = melscale_fbanks(self.n_freqs, mel_fmin, f_max, n_mels, sample_rate)
        self.fb_f32 = jnp.pad(fb, ((0, pad_f), (0, self.nm_pad - n_mels)))
        self.fb = self.fb_f32.astype(jnp.bfloat16)                      # (NFp, NMp)

    # --- plain-JAX glue: reflect padding only (framing happens inside the kernel) ---
    def _pad_audio(self, audio):
        audio = audio.astype(jnp.float32)
        if self.padding == "same":
            p = (self.win_length - self.hop_length) // 2
            return jnp.pad(audio, ((0, 0), (p, p)), mode="reflect")
        half = self.n_fft // 2          # 'center' -> torch.stft(center=True, 'reflect')
        return jnp.pad(audio, ((0, 0), (half, half)), mode="reflect")

    def _frames_f32(self, audio):
        # Gather-based framing, used only by the pure-JAX references.
        padded = self._pad_audio(audio)
        F = 1 + (padded.shape[1] - self.n_fft) // self.hop_length
        idx = (jnp.arange(F)[:, None] * self.hop_length
               + jnp.arange(self.n_fft)[None, :])
        return padded[:, idx]                               # (B, F, n_fft) f32

    def __call__(self, audio):
        B = audio.shape[0]
        hop, r, n_fft = self.hop_length, self.r, self.n_fft

        padded = self._pad_audio(audio).astype(jnp.bfloat16)            # bf16 before framing
        tpad = padded.shape[1]
        F = 1 + (tpad - n_fft) // hop                                   # n_frames

        # Frame-tile size: multiple of 128 (lane-dense transposed stores) when multi-tile,
        # or a single full tile for short inputs (block dim == full array dim is allowed).
        if F <= 256:
            TF = _round_up(F, 8)
        elif F <= 2048:
            TF = 256        # fits v5e's 16 MiB default scoped VMEM; >= 2 tiles for 2 TCs
        else:
            TF = 512        # bigger tile for v6e/v7x-scale inputs (explicit vmem limit below)
        F_pad = _round_up(F, TF)

        # Hop-sized chunks: frame f = chunks[f : f + R].  A tile of TF frames touches
        # TF + R - 1 consecutive chunks, delivered as a TF-chunk main block + 8-chunk halo.
        halo = 8
        n_chunks = F_pad + halo
        target = n_chunks * hop
        if tpad < target:
            padded = jnp.pad(padded, ((0, 0), (0, target - tpad)))
        elif tpad > target:
            padded = padded[:, :target]
        chunks = padded.reshape(B, n_chunks, hop)                       # free reshape

        kernel = functools.partial(_mel_kernel, tf=TF, hop=hop, r=r)
        vmem_limit = 32 * 1024 * 1024 if TF >= 512 else None            # v5e needs > 16 MiB

        out = pl.pallas_call(
            kernel,
            out_shape=jax.ShapeDtypeStruct((B, self.nm_pad, F_pad), jnp.float32),
            grid_spec=pltpu.PrefetchScalarGridSpec(
                num_scalar_prefetch=0,
                grid=(B, F_pad // TF),
                in_specs=[
                    # main chunk block + 8-chunk halo of the SAME chunk array (overlap)
                    pl.BlockSpec((1, TF, hop), lambda b, t: (b, t, 0)),
                    pl.BlockSpec((1, halo, hop),
                                 lambda b, t: (b, (t + 1) * (TF // halo), 0)),
                    # constant index_maps: fetched once, resident across the whole grid
                    pl.BlockSpec((n_fft, self.nf_pad), lambda b, t: (0, 0)),
                    pl.BlockSpec((n_fft, self.nf_pad), lambda b, t: (0, 0)),
                    pl.BlockSpec((self.nf_pad, self.nm_pad), lambda b, t: (0, 0)),
                ],
                out_specs=pl.BlockSpec((1, self.nm_pad, TF), lambda b, t: (b, 0, t)),
            ),
            compiler_params=pltpu.CompilerParams(
                dimension_semantics=("parallel", "parallel"),
                vmem_limit_bytes=vmem_limit,
            ),
        )(chunks, chunks, self.wc, self.ws, self.fb)

        # Output is already (B, mel, frame); only slice off padding (no transpose pass).
        return out[:, :self.n_mels, :F]


# ------------------------------------- references & main ------------------------------------

def _reference_bf16(mod: MelSpectrogramFeatures, audio):
    # Same numeric path as the kernel (bf16 operands, f32 accumulation).
    frames = mod._frames_f32(audio).astype(jnp.bfloat16)
    re = jnp.einsum("bfk,kn->bfn", frames, mod.wc, preferred_element_type=jnp.float32)
    im = jnp.einsum("bfk,kn->bfn", frames, mod.ws, preferred_element_type=jnp.float32)
    mag = jnp.sqrt(re * re + im * im)
    mel = jnp.einsum("bfn,nm->bfm", mag.astype(jnp.bfloat16), mod.fb,
                     preferred_element_type=jnp.float32)
    mel = jnp.log(jnp.clip(mel, 1e-7))[..., :mod.n_mels]
    return jnp.transpose(mel, (0, 2, 1))


def _reference_f32(mod: MelSpectrogramFeatures, audio):
    # Full float32 reference for semantic faithfulness.
    frames = mod._frames_f32(audio)
    re = jnp.einsum("bfk,kn->bfn", frames, mod.wc_f32)
    im = jnp.einsum("bfk,kn->bfn", frames, mod.ws_f32)
    mag = jnp.sqrt(re * re + im * im)
    mel = jnp.einsum("bfn,nm->bfm", mag, mod.fb_f32)
    mel = jnp.log(jnp.clip(mel, 1e-7))[..., :mod.n_mels]
    return jnp.transpose(mel, (0, 2, 1))


if __name__ == "__main__":
    key = jax.random.PRNGKey(0)
    B, T = 2, 4096                        # small waveform; defaults give n_frames = 17
    audio = jax.random.normal(key, (B, T), dtype=jnp.float32)

    mod = MelSpectrogramFeatures()        # defaults: n_fft=1024, hop=256, n_mels=100
    mel = jax.block_until_ready(mod(audio))

    assert mel.shape == (B, mod.n_mels, 1 + T // mod.hop_length), mel.shape

    ref = jax.block_until_ready(_reference_bf16(mod, audio))
    assert jnp.allclose(mel, ref, rtol=1e-2, atol=1e-2), float(jnp.max(jnp.abs(mel - ref)))

    ref32 = jax.block_until_ready(_reference_f32(mod, audio))
    assert jnp.allclose(mel, ref32, rtol=5e-2, atol=5e-2), float(jnp.max(jnp.abs(mel - ref32)))

    print("KERNEL_OK")
</pallas_src>

<mosaic_0001>
module attributes {stable_mosaic.version = 11 : i64} {
  func.func @_mel_kernel(%arg0: i32, %arg1: i32, %arg2: memref<1x24x256xbf16, #tpu.memory_space<vmem>>, %arg3: memref<1x8x256xbf16, #tpu.memory_space<vmem>>, %arg4: memref<1024x640xbf16, #tpu.memory_space<vmem>>, %arg5: memref<1024x640xbf16, #tpu.memory_space<vmem>>, %arg6: memref<640x128xbf16, #tpu.memory_space<vmem>>, %arg7: memref<1x128x24xf32, #tpu.memory_space<vmem>>) attributes {dimension_semantics = [#tpu.dimension_semantics<parallel>, #tpu.dimension_semantics<parallel>], iteration_bounds = array<i64: 2, 1>, scalar_prefetch = 0 : i64, scratch_operands = 0 : i64, tpu.core_type = #tpu.core_type<tc>, window_params = [{transform_indices = @transform_0, window_bounds = array<i64: 1, 24, 256>}, {transform_indices = @transform_1, window_bounds = array<i64: 1, 8, 256>}, {pipeline_mode = #tpu.pipeline_mode<synchronous>, transform_indices = @transform_2, window_bounds = array<i64: 1024, 640>}, {pipeline_mode = #tpu.pipeline_mode<synchronous>, transform_indices = @transform_3, window_bounds = array<i64: 1024, 640>}, {pipeline_mode = #tpu.pipeline_mode<synchronous>, transform_indices = @transform_4, window_bounds = array<i64: 640, 128>}, {transform_indices = @transform_5, window_bounds = array<i64: 1, 128, 24>}]} {
    %c0 = arith.constant 0 : index
    %c0_0 = arith.constant 0 : index
    %c0_1 = arith.constant 0 : index
    %0 = vector.load %arg2[%c0, %c0_0, %c0_1] : memref<1x24x256xbf16, #tpu.memory_space<vmem>>, vector<1x24x256xbf16>
    %1 = vector.shape_cast %0 : vector<1x24x256xbf16> to vector<24x256xbf16>
    %c0_2 = arith.constant 0 : index
    %c0_3 = arith.constant 0 : index
    %c0_4 = arith.constant 0 : index
    %2 = vector.load %arg3[%c0_2, %c0_3, %c0_4] : memref<1x8x256xbf16, #tpu.memory_space<vmem>>, vector<1x8x256xbf16>
    %3 = vector.shape_cast %2 : vector<1x8x256xbf16> to vector<8x256xbf16>
    %4 = tpu.concatenate %1, %3 in 0 : vector<24x256xbf16>, vector<8x256xbf16> -> vector<32x256xbf16>
    %cst = arith.constant 0.000000e+00 : f32
    %5 = vector.broadcast %cst : f32 to vector<24x640xf32>
    %cst_5 = arith.constant 0.000000e+00 : f32
    %6 = vector.broadcast %cst_5 : f32 to vector<24x640xf32>
    %7 = vector.extract_strided_slice %4 {offsets = [0, 0], sizes = [24, 256], strides = [1, 1]} : vector<32x256xbf16> to vector<24x256xbf16>
    %c0_6 = arith.constant 0 : index
    %c0_7 = arith.constant 0 : index
    %8 = vector.load %arg4[%c0_6, %c0_7] : memref<1024x640xbf16, #tpu.memory_space<vmem>>, vector<256x640xbf16>
    %cst_8 = arith.constant dense<0.000000e+00> : vector<24x640xf32>
    %9 = tpu.matmul %7, %8, %cst_8 {dimension_numbers = #tpu.dot_dimension_numbers<[1], [0], [0], [1], [0, 0, 1, 1], [], []>} : vector<24x256xbf16>, vector<256x640xbf16>, vector<24x640xf32> -> vector<24x640xf32>
    %10 = arith.addf %5, %9 : vector<24x640xf32>
    %c0_9 = arith.constant 0 : index
    %c0_10 = arith.constant 0 : index
    %11 = vector.load %arg5[%c0_9, %c0_10] : memref<1024x640xbf16, #tpu.memory_space<vmem>>, vector<256x640xbf16>
    %cst_11 = arith.constant dense<0.000000e+00> : vector<24x640xf32>
    %12 = tpu.matmul %7, %11, %cst_11 {dimension_numbers = #tpu.dot_dimension_numbers<[1], [0], [0], [1], [0, 0, 1, 1], [], []>} : vector<24x256xbf16>, vector<256x640xbf16>, vector<24x640xf32> -> vector<24x640xf32>
    %13 = arith.addf %6, %12 : vector<24x640xf32>
    %14 = vector.extract_strided_slice %4 {offsets = [1, 0], sizes = [24, 256], strides = [1, 1]} : vector<32x256xbf16> to vector<24x256xbf16>
    %c256 = arith.constant 256 : index
    %c0_12 = arith.constant 0 : index
    %15 = vector.load %arg4[%c256, %c0_12] : memref<1024x640xbf16, #tpu.memory_space<vmem>>, vector<256x640xbf16>
    %cst_13 = arith.constant dense<0.000000e+00> : vector<24x640xf32>
    %16 = tpu.matmul %14, %15, %cst_13 {dimension_numbers = #tpu.dot_dimension_numbers<[1], [0], [0], [1], [0, 0, 1, 1], [], []>} : vector<24x256xbf16>, vector<256x640xbf16>, vector<24x640xf32> -> vector<24x640xf32>
    %17 = arith.addf %10, %16 : vector<24x640xf32>
    %c256_14 = arith.constant 256 : index
    %c0_15 = arith.constant 0 : index
    %18 = vector.load %arg5[%c256_14, %c0_15] : memref<1024x640xbf16, #tpu.memory_space<vmem>>, vector<256x640xbf16>
    %cst_16 = arith.constant dense<0.000000e+00> : vector<24x640xf32>
    %19 = tpu.matmul %14, %18, %cst_16 {dimension_numbers = #tpu.dot_dimension_numbers<[1], [0], [0], [1], [0, 0, 1, 1], [], []>} : vector<24x256xbf16>, vector<256x640xbf16>, vector<24x640xf32> -> vector<24x640xf32>
    %20 = arith.addf %13, %19 : vector<24x640xf32>
    %21 = vector.extract_strided_slice %4 {offsets = [2, 0], sizes = [24, 256], strides = [1, 1]} : vector<32x256xbf16> to vector<24x256xbf16>
    %c512 = arith.constant 512 : index
    %c0_17 = arith.constant 0 : index
    %22 = vector.load %arg4[%c512, %c0_17] : memref<1024x640xbf16, #tpu.memory_space<vmem>>, vector<256x640xbf16>
    %cst_18 = arith.constant dense<0.000000e+00> : vector<24x640xf32>
    %23 = tpu.matmul %21, %22, %cst_18 {dimension_numbers = #tpu.dot_dimension_numbers<[1], [0], [0], [1], [0, 0, 1, 1], [], []>} : vector<24x256xbf16>, vector<256x640xbf16>, vector<24x640xf32> -> vector<24x640xf32>
    %24 = arith.addf %17, %23 : vector<24x640xf32>
    %c512_19 = arith.constant 512 : index
    %c0_20 = arith.constant 0 : index
    %25 = vector.load %arg5[%c512_19, %c0_20] : memref<1024x640xbf16, #tpu.memory_space<vmem>>, vector<256x640xbf16>
    %cst_21 = arith.constant dense<0.000000e+00> : vector<24x640xf32>
    %26 = tpu.matmul %21, %25, %cst_21 {dimension_numbers = #tpu.dot_dimension_numbers<[1], [0], [0], [1], [0, 0, 1, 1], [], []>} : vector<24x256xbf16>, vector<256x640xbf16>, vector<24x640xf32> -> vector<24x640xf32>
    %27 = arith.addf %20, %26 : vector<24x640xf32>
    %28 = vector.extract_strided_slice %4 {offsets = [3, 0], sizes = [24, 256], strides = [1, 1]} : vector<32x256xbf16> to vector<24x256xbf16>
    %c768 = arith.constant 768 : index
    %c0_22 = arith.constant 0 : index
    %29 = vector.load %arg4[%c768, %c0_22] : memref<1024x640xbf16, #tpu.memory_space<vmem>>, vector<256x640xbf16>
    %cst_23 = arith.constant dense<0.000000e+00> : vector<24x640xf32>
    %30 = tpu.matmul %28, %29, %cst_23 {dimension_numbers = #tpu.dot_dimension_numbers<[1], [0], [0], [1], [0, 0, 1, 1], [], []>} : vector<24x256xbf16>, vector<256x640xbf16>, vector<24x640xf32> -> vector<24x640xf32>
    %31 = arith.addf %24, %30 : vector<24x640xf32>
    %c768_24 = arith.constant 768 : index
    %c0_25 = arith.constant 0 : index
    %32 = vector.load %arg5[%c768_24, %c0_25] : memref<1024x640xbf16, #tpu.memory_space<vmem>>, vector<256x640xbf16>
    %cst_26 = arith.constant dense<0.000000e+00> : vector<24x640xf32>
    %33 = tpu.matmul %28, %32, %cst_26 {dimension_numbers = #tpu.dot_dimension_numbers<[1], [0], [0], [1], [0, 0, 1, 1], [], []>} : vector<24x256xbf16>, vector<256x640xbf16>, vector<24x640xf32> -> vector<24x640xf32>
    %34 = arith.addf %27, %33 : vector<24x640xf32>
    %35 = arith.mulf %31, %31 : vector<24x640xf32>
    %36 = arith.mulf %34, %34 : vector<24x640xf32>
    %37 = arith.addf %35, %36 : vector<24x640xf32>
    %38 = math.sqrt %37 : vector<24x640xf32>
    %39 = arith.truncf %38 : vector<24x640xf32> to vector<24x640xbf16>
    %c0_27 = arith.constant 0 : index
    %c0_28 = arith.constant 0 : index
    %40 = vector.load %arg6[%c0_27, %c0_28] : memref<640x128xbf16, #tpu.memory_space<vmem>>, vector<640x128xbf16>
    %cst_29 = arith.constant dense<0.000000e+00> : vector<24x128xf32>
    %41 = tpu.matmul %39, %40, %cst_29 {dimension_numbers = #tpu.dot_dimension_numbers<[1], [0], [0], [1], [0, 0, 1, 1], [], []>} : vector<24x640xbf16>, vector<640x128xbf16>, vector<24x128xf32> -> vector<24x128xf32>
    %cst_30 = arith.constant 1.000000e-07 : f32
    %42 = vector.broadcast %cst_30 : f32 to vector<24x128xf32>
    %43 = arith.maximumf %42, %41 : vector<24x128xf32>
    %44 = math.log %43 : vector<24x128xf32>
    %45 = tpu.transpose %44, [1, 0] : vector<24x128xf32> -> vector<128x24xf32>
    %c0_31 = arith.constant 0 : index
    %c0_32 = arith.constant 0 : index
    %c0_33 = arith.constant 0 : index
    %46 = vector.load %arg7[%c0_31, %c0_32, %c0_33] : memref<1x128x24xf32, #tpu.memory_space<vmem>>, vector<1x128x24xf32>
    %47 = vector.shape_cast %46 : vector<1x128x24xf32> to vector<128x24xf32>
    %48 = vector.shape_cast %45 : vector<128x24xf32> to vector<1x128x24xf32>
    tpu.vector_store %arg7[%c0_31, %c0_32, %c0_33], %48 {strides = array<i32>} : memref<1x128x24xf32, #tpu.memory_space<vmem>>, vector<1x128x24xf32>,
    return
  }
  func.func @transform_0(%arg0: i32, %arg1: i32) -> (i32, i32, i32) {
    %c0_i32 = arith.constant 0 : i32
    %c0_i32_0 = arith.constant 0 : i32
    return %arg0, %arg1, %c0_i32 : i32, i32, i32
  }
  func.func @transform_1(%arg0: i32, %arg1: i32) -> (i32, i32, i32) {
    %c1_i32 = arith.constant 1 : i32
    %0 = arith.addi %arg1, %c1_i32 : i32
    %c3_i32 = arith.constant 3 : i32
    %1 = arith.muli %0, %c3_i32 : i32
    %c0_i32 = arith.constant 0 : i32
    %c0_i32_0 = arith.constant 0 : i32
    return %arg0, %1, %c0_i32 : i32, i32, i32
  }
  func.func @transform_2(%arg0: i32, %arg1: i32) -> (i32, i32) {
    %c0_i32 = arith.constant 0 : i32
    %c0_i32_0 = arith.constant 0 : i32
    %c0_i32_1 = arith.constant 0 : i32
    return %c0_i32, %c0_i32_0 : i32, i32
  }
  func.func @transform_3(%arg0: i32, %arg1: i32) -> (i32, i32) {
    %c0_i32 = arith.constant 0 : i32
    %c0_i32_0 = arith.constant 0 : i32
    %c0_i32_1 = arith.constant 0 : i32
    return %c0_i32, %c0_i32_0 : i32, i32
  }
  func.func @transform_4(%arg0: i32, %arg1: i32) -> (i32, i32) {
    %c0_i32 = arith.constant 0 : i32
    %c0_i32_0 = arith.constant 0 : i32
    %c0_i32_1 = arith.constant 0 : i32
    return %c0_i32, %c0_i32_0 : i32, i32
  }
  func.func @transform_5(%arg0: i32, %arg1: i32) -> (i32, i32, i32) {
    %c0_i32 = arith.constant 0 : i32
    %c0_i32_0 = arith.constant 0 : i32
    return %arg0, %c0_i32, %arg1 : i32, i32, i32
  }
}

</mosaic_0001>

<llo_original>
// kernel: tpu_custom_call.1
$region0: #{tpu_custom_call.1}
  #allocation0 [shape = 'u32[]', space=smem, size = 0x4, offset = 0x4, fixed_abs, tag = 'smem constant byte address 0x4 - core index']
  #allocation1 [shape = 'u32[144,128]{1,0:T(1,128)}', space=vmem, size = 0x12000, scoped, tag = 'internal scratch']
  %s0 = inlined_call_operand.hbm [shape: bf16[2,32,256], index: 0, kind: input, shape index: {}]
  %s1 = inlined_call_operand.hbm [shape: bf16[2,32,256], index: 1, kind: input, shape index: {}]
  %s2 = inlined_call_operand.hbm [shape: bf16[1024,640], index: 2, kind: input, shape index: {}]
  %s3 = inlined_call_operand.hbm [shape: bf16[1024,640], index: 3, kind: input, shape index: {}]
  %s4 = inlined_call_operand.hbm [shape: bf16[640,128], index: 4, kind: input, shape index: {}]
  %s5 = inlined_call_operand.vmem [shape: f32[2,128,24], index: 5, kind: output, shape index: {}]
  %s6 = sld [smem:[#allocation0]]
  $region73: #{tpu_custom_call.1} parent=0
    _
  %s8 = ssub.s32 1, %s6
  %s9 = scalar_select 0, %s8, %s6
  $region1: #{tpu_custom_call.1} parent=0
    #allocation2 [shape = 'u8[24576]{0}', space=vmem, size = 0x6000, scoped, tag = 'input window, operand 0']
    #allocation3 [shape = 's32[2]{0}', space=sflag, size = 0x8, scoped, tag = 'scoped memory for tpu_custom_call.1']
    #allocation4 [shape = 'u8[8192]{0}', space=vmem, size = 0x2000, scoped, tag = 'input window, operand 1']
    #allocation5 [shape = 's32[2]{0}', space=sflag, size = 0x8, scoped, tag = 'scoped memory for tpu_custom_call.1']
    #allocation6 [shape = 'u8[1310720]{0}', space=vmem, size = 0x140000, scoped, tag = 'input window, operand 2, single buffered']
    #allocation7 [shape = 'u8[1310720]{0}', space=vmem, size = 0x140000, scoped, tag = 'input window, operand 3, single buffered']
    #allocation8 [shape = 's32[1]{0}', space=sflag, size = 0x4, scoped, tag = 'scoped memory for tpu_custom_call.1']
    #allocation9 [shape = 'u8[163840]{0}', space=vmem, size = 0x28000, scoped, tag = 'input window, operand 4, single buffered']
    %10 = vsyncpa [#allocation3], 0
    %s11 = scalar_lea.sflag [#allocation3], 1
    %12 = vsyncpa %s11, 0
    %13 = vsyncpa [#allocation5], 0
    %s14 = scalar_lea.sflag [#allocation5], 1
    %15 = vsyncpa %s14, 0
    %16 = vsyncpa [#allocation8], 0
    loop: start=0, step=1, limit=4
    $region2: #{tpu_custom_call.1} parent=1 // loop_pre_header
      _
    $region3: #{tpu_custom_call.1} parent=1 // loop_header
      %s18 = sphi 0, %s22
      %p19 = scmp.ge.s32.totalorder %s18, 4
      %s25 = sphi 0, %s37
      %s26 = sphi 0, %s33
      %s27 = sphi 0, %s25
      %s28 = sphi 0, %s26
      %s29 = sphi 0, %s27
      %s30 = sphi 0, %s28
      %s42 = sphi 0, %s44
      %s45 = sphi 0, %s42
      %s46 = sphi 0, %s45
      %s62 = sphi 0, %s46
      %s74 = sphi 0, %s76
      %s77 = sphi 0, %s74
      %s78 = sphi 0, %s77
      %s94 = sphi 0, %s78
      %s98 = sphi 0, %s98
      %s100 = sphi 0, %s98
      %s101 = sphi 0, %s100
      %s115 = sphi 0, %s101
      %s119 = sphi 0, %s119
      %s121 = sphi 0, %s119
      %s122 = sphi 0, %s121
      %s136 = sphi 0, %s122
      %s140 = sphi 0, %s140
      %s142 = sphi 0, %s140
      %s143 = sphi 0, %s142
      %s157 = sphi 0, %s143
      %s165 = sphi 0, %s167
      %s168 = sphi 0, %s165
      %s169 = sphi 0, %s168
      %s185 = sphi 0, %s169
    $region4: #{tpu_custom_call.1} parent=1 // loop_header_branch
      %21 = sbr.rel (%p19) target = $region8
    $region5: #{tpu_custom_call.1} parent=1 // loop_body
      %s23 = ssub.s32 %s18, 1
      %s24 = ssub.s32 %s18, 2
      %s31 = sadd.s32 1, %s26
      %p32 = scmp.ge.s32.totalorder %s31, 1
      %s33 = scalar_select %p32, 0, %s31
      %s34 = sadd.s32 1, %s25
      %s35 = scalar_select %p32, %s34, %s25
      %p36 = scmp.ge.s32.totalorder %s35, 2
      %s37 = scalar_select %p36, 0, %s35
      %s38 = ssub.s32 %s25, %s37
      %s39 = ssub.s32 %s26, %s33
      %s40 = sor.u32 %s38, %s39
      %p41 = scmp.eq.s32.totalorder %s40, 0
      %s43 = sadd.s32 %s42, 1
      %s44 = scalar_select %p41, %s42, %s43
      %p47 = pneg %p41
      %p48 = scmp.eq.s32.totalorder %s18, 1
      %p49 = por %p47, %p48
      %p50 = scmp.ne.s32.totalorder %s42, %s45
      %p51 = scmp.eq.s32.totalorder %s18, 0
      %p52 = por %p50, %p51
      %p53 = scmp.ne.s32.totalorder %s42, %s45
      %p54 = scmp.eq.s32.totalorder %s23, 1
      %p55 = por %p53, %p54
      %p56 = scmp.ne.s32.totalorder %s45, %s46
      %p57 = scmp.eq.s32.totalorder %s23, 0
      %p58 = por %p56, %p57
      %p59 = scmp.ne.s32.totalorder %s45, %s46
      %p60 = scmp.eq.s32.totalorder %s24, 1
      %p61 = por %p59, %p60
      %p63 = scmp.ne.s32.totalorder %s46, %s62
      %p64 = scmp.eq.s32.totalorder %s24, 0
      %p65 = por %p63, %p64
      %s66 = sadd.s32 %s26, 1
      %s67 = smul.u32 %s66, 3
      %s68 = sadd.s32 %s33, 1
      %s69 = smul.u32 %s68, 3
      %s70 = ssub.s32 %s25, %s37
      %s71 = ssub.s32 %s67, %s69
      %s72 = sor.u32 %s70, %s71
      %p73 = scmp.eq.s32.totalorder %s72, 0
      %s75 = sadd.s32 %s74, 1
      %s76 = scalar_select %p73, %s74, %s75
      %p79 = pneg %p73
      %p80 = scmp.eq.s32.totalorder %s18, 1
      %p81 = por %p79, %p80
      %p82 = scmp.ne.s32.totalorder %s74, %s77
      %p83 = scmp.eq.s32.totalorder %s18, 0
      %p84 = por %p82, %p83
      %p85 = scmp.ne.s32.totalorder %s74, %s77
      %p86 = scmp.eq.s32.totalorder %s23, 1
      %p87 = por %p85, %p86
      %p88 = scmp.ne.s32.totalorder %s77, %s78
      %p89 = scmp.eq.s32.totalorder %s23, 0
      %p90 = por %p88, %p89
      %p91 = scmp.ne.s32.totalorder %s77, %s78
      %p92 = scmp.eq.s32.totalorder %s24, 1
      %p93 = por %p91, %p92
      %p95 = scmp.ne.s32.totalorder %s78, %s94
      %p96 = scmp.eq.s32.totalorder %s24, 0
      %p97 = por %p95, %p96
      %s99 = sadd.s32 %s98, 1
      %p102 = scmp.eq.s32.totalorder %s18, 1
      %p103 = scmp.ne.s32.totalorder %s98, %s100
      %p104 = scmp.eq.s32.totalorder %s18, 0
      %p105 = por %p103, %p104
      %p106 = scmp.ne.s32.totalorder %s98, %s100
      %p107 = scmp.eq.s32.totalorder %s23, 1
      %p108 = por %p106, %p107
      %p109 = scmp.ne.s32.totalorder %s100, %s101
      %p110 = scmp.eq.s32.totalorder %s23, 0
      %p111 = por %p109, %p110
      %p112 = scmp.ne.s32.totalorder %s100, %s101
      %p113 = scmp.eq.s32.totalorder %s24, 1
      %p114 = por %p112, %p113
      %p116 = scmp.ne.s32.totalorder %s101, %s115
      %p117 = scmp.eq.s32.totalorder %s24, 0
      %p118 = por %p116, %p117
      %s120 = sadd.s32 %s119, 1
      %p123 = scmp.eq.s32.totalorder %s18, 1
      %p124 = scmp.ne.s32.totalorder %s119, %s121
      %p125 = scmp.eq.s32.totalorder %s18, 0
      %p126 = por %p124, %p125
      %p127 = scmp.ne.s32.totalorder %s119, %s121
      %p128 = scmp.eq.s32.totalorder %s23, 1
      %p129 = por %p127, %p128
      %p130 = scmp.ne.s32.totalorder %s121, %s122
      %p131 = scmp.eq.s32.totalorder %s23, 0
      %p132 = por %p130, %p131
      %p133 = scmp.ne.s32.totalorder %s121, %s122
      %p134 = scmp.eq.s32.totalorder %s24, 1
      %p135 = por %p133, %p134
      %p137 = scmp.ne.s32.totalorder %s122, %s136
      %p138 = scmp.eq.s32.totalorder %s24, 0
      %p139 = por %p137, %p138
      %s141 = sadd.s32 %s140, 1
      %p144 = scmp.eq.s32.totalorder %s18, 1
      %p145 = scmp.ne.s32.totalorder %s140, %s142
      %p146 = scmp.eq.s32.totalorder %s18, 0
      %p147 = por %p145, %p146
      %p148 = scmp.ne.s32.totalorder %s140, %s142
      %p149 = scmp.eq.s32.totalorder %s23, 1
      %p150 = por %p148, %p149
      %p151 = scmp.ne.s32.totalorder %s142, %s143
      %p152 = scmp.eq.s32.totalorder %s23, 0
      %p153 = por %p151, %p152
      %p154 = scmp.ne.s32.totalorder %s142, %s143
      %p155 = scmp.eq.s32.totalorder %s24, 1
      %p156 = por %p154, %p155
      %p158 = scmp.ne.s32.totalorder %s143, %s157
      %p159 = scmp.eq.s32.totalorder %s24, 0
      %p160 = por %p158, %p159
      %s161 = ssub.s32 %s25, %s37
      %s162 = ssub.s32 %s26, %s33
      %s163 = sor.u32 %s161, %s162
      %p164 = scmp.eq.s32.totalorder %s163, 0
      %s166 = sadd.s32 %s165, 1
      %s167 = scalar_select %p164, %s165, %s166
      %p170 = pneg %p164
      %p171 = scmp.eq.s32.totalorder %s18, 1
      %p172 = por %p170, %p171
      %p173 = scmp.ne.s32.totalorder %s165, %s168
      %p174 = scmp.eq.s32.totalorder %s18, 0
      %p175 = por %p173, %p174
      %p176 = scmp.ne.s32.totalorder %s165, %s168
      %p177 = scmp.eq.s32.totalorder %s23, 1
      %p178 = por %p176, %p177
      %p179 = scmp.ne.s32.totalorder %s168, %s169
      %p180 = scmp.eq.s32.totalorder %s23, 0
      %p181 = por %p179, %p180
      %p182 = scmp.ne.s32.totalorder %s168, %s169
      %p183 = scmp.eq.s32.totalorder %s24, 1
      %p184 = por %p182, %p183
      %p186 = scmp.ne.s32.totalorder %s169, %s185
      %p187 = scmp.eq.s32.totalorder %s24, 0
      %p188 = por %p186, %p187
      %p189 = scmp.le.s32.totalorder 1, %s18
      %p190 = scmp.lt.s32.totalorder %s18, 3
      %p191 = pnand %p189, %p190
      %p192 = pneg %p191
      // Predicated region
      $region9: #{tpu_custom_call.1} parent=5 // pred_check
        _
      $region10: #{tpu_custom_call.1} parent=5 // pred_check_branch
        %194 = sbr.rel (%p191) target = $region12
      $region11: #{tpu_custom_call.1} parent=5 // pred_region
        %s195 = ssub.s32 %s18, 1
        // Predicated region
        $region13: #{tpu_custom_call.1} parent=11 // pred_check
          %p196 = pneg %p111
        $region14: #{tpu_custom_call.1} parent=11 // pred_check_branch
          %198 = sbr.rel (%p196) target = $region16
        $region15: #{tpu_custom_call.1} parent=11 // pred_region
          %s200 = ssub.s32 40960, 40960
          %201 = vsyncadd [#allocation5], %s200
          %s202 = sshll.u32 [#allocation6], 4
          %s203 = int_to_ptr.vmem [resolvable:$true] %s202
          %208 = dma.hbm_to_vmem [thread:$0]  %s2, 40960, %s203, [#allocation5], 320, 320, 20
        $region16: #{tpu_custom_call.1} parent=11 // pred_fallthru
          _
        // Predicated region
        $region17: #{tpu_custom_call.1} parent=11 // pred_check
          %p209 = pneg %p132
        $region18: #{tpu_custom_call.1} parent=11 // pred_check_branch
          %211 = sbr.rel (%p209) target = $region20
        $region19: #{tpu_custom_call.1} parent=11 // pred_region
          %s213 = ssub.s32 40960, 40960
          %214 = vsyncadd [#allocation8], %s213
          %s215 = sshll.u32 [#allocation7], 4
          %s216 = int_to_ptr.vmem [resolvable:$true] %s215
          %221 = dma.hbm_to_vmem [thread:$0]  %s3, 40960, %s216, [#allocation8], 320, 320, 20
        $region20: #{tpu_custom_call.1} parent=11 // pred_fallthru
          _
        // Predicated region
        $region21: #{tpu_custom_call.1} parent=11 // pred_check
          %p222 = pneg %p153
        $region22: #{tpu_custom_call.1} parent=11 // pred_check_branch
          %224 = sbr.rel (%p222) target = $region24
        $region23: #{tpu_custom_call.1} parent=11 // pred_region
          %s226 = ssub.s32 5120, 5120
          %227 = vsyncadd [#allocation8], %s226
          %s228 = sshll.u32 [#allocation9], 4
          %s229 = int_to_ptr.vmem [resolvable:$true] %s228
          %234 = dma.hbm_to_vmem [thread:$0]  %s4, 5120, %s229, [#allocation8], 64, 64, 4
        $region24: #{tpu_custom_call.1} parent=11 // pred_fallthru
          _
      $region12: #{tpu_custom_call.1} parent=5 // pred_fallthru
        _
      %p235 = scmp.lt.s32.totalorder %s18, 2
      // Predicated region
      $region25: #{tpu_custom_call.1} parent=5 // pred_check
        %p236 = pneg %p235
      $region26: #{tpu_custom_call.1} parent=5 // pred_check_branch
        %238 = sbr.rel (%p236) target = $region28
      $region27: #{tpu_custom_call.1} parent=5 // pred_region
        // Predicated region
        $region29: #{tpu_custom_call.1} parent=27 // pred_check
          %p239 = pneg %p52
        $region30: #{tpu_custom_call.1} parent=27 // pred_check_branch
          %241 = sbr.rel (%p239) target = $region32
        $region31: #{tpu_custom_call.1} parent=27 // pred_region
          %s242 = sand.u32 %s42, 1
          %s243 = scalar_lea.sflag [#allocation3], %s242
          %s244 = sand.u32 %s42, 1
          %s245 = smul.addr %s244, 24
          %s246 = scalar_lea.vmem [#allocation2], %s245
          %s247 = smul.u32 3, %s26
          %s248 = ssub.s32 4, %s247
          %p249 = scmp.lt.s32.totalorder %s248, 3
          %s250 = scalar_select %p249, %s248, 3
          %s251 = smul.u32 64, %s250
          %s252 = smul.u32 %s251, 2
          %s254 = ssub.s32 384, %s252
          %255 = vsyncadd %s243, %s254
          %p256 = scmp.ne.s32.totalorder 0, %s252
          %s257 = smul.addr %s247, 2
          %s258 = smul.addr %s25, 8
          %s259 = sadd.s32 %s257, %s258
          %s260 = smul.addr %s259, 64
          %s261 = scalar_lea.hbm %s0, %s260
          %s262 = smul.u32 8, %s250
          %s263 = sshll.u32 %s246, 4
          %s264 = int_to_ptr.vmem [resolvable:$true] %s263
          %s265 = sshll.u32 %s262, 4
          %269 = dma.hbm_to_vmem [thread:$0]  (%p256), %s261, %s265, %s264, %s243, 128, 128, 8
        $region32: #{tpu_custom_call.1} parent=27 // pred_fallthru
          _
        // Predicated region
        $region33: #{tpu_custom_call.1} parent=27 // pred_check
          %p270 = pneg %p84
        $region34: #{tpu_custom_call.1} parent=27 // pred_check_branch
          %272 = sbr.rel (%p270) target = $region36
        $region35: #{tpu_custom_call.1} parent=27 // pred_region
          %s273 = sand.u32 %s18, 1
          %s274 = scalar_lea.sflag [#allocation5], %s273
          %s275 = sand.u32 %s74, 1
          %s276 = smul.addr %s275, 8
          %s277 = scalar_lea.vmem [#allocation4], %s276
          %s278 = sadd.s32 %s26, 1
          %s279 = smul.u32 %s278, 3
          %s281 = ssub.s32 128, 128
          %282 = vsyncadd %s274, %s281
          %s283 = smul.addr %s279, 2
          %s284 = smul.addr %s25, 8
          %s285 = sadd.s32 %s283, %s284
          %s286 = smul.addr %s285, 64
          %s287 = scalar_lea.hbm %s1, %s286
          %s289 = sshll.u32 %s277, 4
          %s290 = int_to_ptr.vmem [resolvable:$true] %s289
          %292 = dma.hbm_to_vmem [thread:$0]  %s287, 128, %s290, %s274
        $region36: #{tpu_custom_call.1} parent=27 // pred_fallthru
          _
      $region28: #{tpu_custom_call.1} parent=5 // pred_fallthru
        _
      %p293 = scmp.le.s32.totalorder 1, %s18
      %p294 = scmp.lt.s32.totalorder %s18, 3
      %p295 = pnand %p293, %p294
      %p296 = pneg %p295
      // Predicated region
      $region37: #{tpu_custom_call.1} parent=5 // pred_check
        _
      $region38: #{tpu_custom_call.1} parent=5 // pred_check_branch
        %298 = sbr.rel (%p295) target = $region40
      $region39: #{tpu_custom_call.1} parent=5 // pred_region
        %s299 = ssub.s32 %s18, 1
        %s300 = sand.u32 %s45, 1
        %s301 = scalar_lea.sflag [#allocation3], %s300
        %s302 = sand.u32 %s45, 1
        %s303 = smul.addr %s302, 24
        %s304 = scalar_lea.vmem [#allocation2], %s303
        // Predicated region
        $region41: #{tpu_custom_call.1} parent=39 // pred_check
          %p305 = pneg %p58
        $region42: #{tpu_custom_call.1} parent=39 // pred_check_branch
          %307 = sbr.rel (%p305) target = $region44
        $region43: #{tpu_custom_call.1} parent=39 // pred_region
          %308 = dma.done %s301, 384
        $region44: #{tpu_custom_call.1} parent=39 // pred_fallthru
          _
        %s309 = sand.u32 %s23, 1
        %s310 = scalar_lea.sflag [#allocation5], %s309
        %s311 = sand.u32 %s77, 1
        %s312 = smul.addr %s311, 8
        %s313 = scalar_lea.vmem [#allocation4], %s312
        // Predicated region
        $region45: #{tpu_custom_call.1} parent=39 // pred_check
          %p314 = pneg %p90
        $region46: #{tpu_custom_call.1} parent=39 // pred_check_branch
          %316 = sbr.rel (%p314) target = $region48
        $region47: #{tpu_custom_call.1} parent=39 // pred_region
          %317 = dma.done %s310, 128
        $region48: #{tpu_custom_call.1} parent=39 // pred_fallthru
          _
        // Predicated region
        $region49: #{tpu_custom_call.1} parent=39 // pred_check
          %p318 = pneg %p111
        $region50: #{tpu_custom_call.1} parent=39 // pred_check_branch
          %320 = sbr.rel (%p318) target = $region52
        $region51: #{tpu_custom_call.1} parent=39 // pred_region
          %321 = dma.done [#allocation5], 40960
        $region52: #{tpu_custom_call.1} parent=39 // pred_fallthru
          _
        // Predicated region
        $region53: #{tpu_custom_call.1} parent=39 // pred_check
          %p322 = pneg %p132
        $region54: #{tpu_custom_call.1} parent=39 // pred_check_branch
          %324 = sbr.rel (%p322) target = $region56
        $region55: #{tpu_custom_call.1} parent=39 // pred_region
          %325 = dma.done [#allocation8], 40960
        $region56: #{tpu_custom_call.1} parent=39 // pred_fallthru
          _
        // Predicated region
        $region57: #{tpu_custom_call.1} parent=39 // pred_check
          %p326 = pneg %p153
        $region58: #{tpu_custom_call.1} parent=39 // pred_check_branch
          %328 = sbr.rel (%p326) target = $region60
        $region59: #{tpu_custom_call.1} parent=39 // pred_region
          %329 = dma.done [#allocation8], 5120
        $region60: #{tpu_custom_call.1} parent=39 // pred_fallthru
          _
        %s330 = sand.u32 %s45, 1
        %s331 = scalar_lea.sflag [#allocation3], %s330
        %s332 = sand.u32 %s45, 1
        %s333 = smul.addr %s332, 24
        %s334 = scalar_lea.vmem [#allocation2], %s333
        %p335 = pneg %p58
        %p336 = pneg %p55
        %s337 = sand.u32 %s23, 1
        %s338 = scalar_lea.sflag [#allocation5], %s337
        %s339 = sand.u32 %s77, 1
        %s340 = smul.addr %s339, 8
        %s341 = scalar_lea.vmem [#allocation4], %s340
        %p342 = pneg %p90
        %p343 = pneg %p87
        %p344 = pneg %p111
        %p345 = pneg %p108
        %p346 = pneg %p132
        %p347 = pneg %p129
        %p348 = pneg %p153
        %p349 = pneg %p150
        %p350 = pneg %p181
        %p351 = pneg %p178
        %p352 = scmp.lt.s32.totalorder %s27, 1
        %s353 = scalar_select %p352, %s27, 1
        %p354 = scmp.lt.s32.totalorder %s28, 0
        %s355 = scalar_select %p354, %s28, 0
        %s356 = smul.addr %s353, 16
        %s357 = sadd.s32 %s355, %s356
        %s358 = smul.addr %s357, 8
        %s359 = scalar_lea.vmem %s5, %s358
        %s360 = smul.u32 3, %s28
        %s361 = ssub.s32 4, %s360
        %p362 = scmp.lt.s32.totalorder %s361, 3
        %s363 = scalar_select %p362, %s361, 3
        %s364 = smul.u32 64, %s363
        %s365 = smul.u32 %s364, 2
        %s366 = sadd.s32 %s28, 1
        %s367 = smul.u32 %s366, 3
        %p368 = scmp.lt.s32.totalorder %s27, 1
        %s369 = scalar_select %p368, %s27, 1
        %p370 = scmp.lt.s32.totalorder %s28, 0
        %s371 = scalar_select %p370, %s28, 0
        %s372 = smul.addr %s369, 16
        %s373 = sadd.s32 %s371, %s372
        %s374 = smul.addr %s373, 8
        %s375 = scalar_lea.vmem %s5, %s374
        %v377 = vld [vmem:[%s304] sm:$0xff]
        %v378 = vld [vmem:[%s304 + $0x8] sm:$0xff]
        %v379 = vld [vmem:[%s304 + $0x10] sm:$0xff]
        %v380 = vld [vmem:[%s313] sm:$0xff]
        %v384 = vunpack.c.l.b16 %v377
        %v385 = vunpack.c.h.b16 %v377
        %v386 = vunpack.c.l.b16 %v378
        %v387 = vunpack.c.h.b16 %v378
        %v388 = vunpack.c.l.b16 %v379
        %v389 = vunpack.c.h.b16 %v379
        %v390 = vpack.c.b16 %v386, %v384
        %v391 = vpack.c.b16 %v387, %v385
        %v392 = vpack.c.b16 %v388, %v388
        %v393 = vpack.c.b16 %v389, %v389
        %v397 = vunpack.c.l.b16 %v380
        %v398 = vunpack.c.h.b16 %v380
        %v399 = vpack.c.b16 %v397, %v397
        %v400 = vpack.c.b16 %v398, %v398
        %vm401 = vcmask 1043456
        %v404 = vsel %vm401, %v392, %v399
        %v408 = vsel %vm401, %v393, %v400
        %v410 = vld [vmem:[#allocation6] sm:$0xff]
        %v411 = vld [vmem:[#allocation6 + $0x8] sm:$0xff]
        %v412 = vld [vmem:[#allocation6 + $0x10] sm:$0xf]
        %v413 = vld [vmem:[#allocation6 + $0x14] sm:$0xff]
        %v414 = vld [vmem:[#allocation6 + $0x1c] sm:$0xff]
        %v415 = vld [vmem:[#allocation6 + $0x24] sm:$0xf]
        %v416 = vld [vmem:[#allocation6 + $0x28] sm:$0xff]
        %v417 = vld [vmem:[#allocation6 + $0x30] sm:$0xff]
        %v418 = vld [vmem:[#allocation6 + $0x38] sm:$0xf]
        %v419 = vld [vmem:[#allocation6 + $0x3c] sm:$0xff]
        %v420 = vld [vmem:[#allocation6 + $0x44] sm:$0xff]
        %v421 = vld [vmem:[#allocation6 + $0x4c] sm:$0xf]
        %v422 = vld [vmem:[#allocation6 + $0x50] sm:$0xff]
        %v423 = vld [vmem:[#allocation6 + $0x58] sm:$0xff]
        %v424 = vld [vmem:[#allocation6 + $0x60] sm:$0xf]
        %v425 = vld [vmem:[#allocation6 + $0x64] sm:$0xff]
        %v426 = vld [vmem:[#allocation6 + $0x6c] sm:$0xff]
        %v427 = vld [vmem:[#allocation6 + $0x74] sm:$0xf]
        %v428 = vld [vmem:[#allocation6 + $0x78] sm:$0xff]
        %v429 = vld [vmem:[#allocation6 + $0x80] sm:$0xff]
        %v430 = vld [vmem:[#allocation6 + $0x88] sm:$0xf]
        %v431 = vld [vmem:[#allocation6 + $0x8c] sm:$0xff]
        %v432 = vld [vmem:[#allocation6 + $0x94] sm:$0xff]
        %v433 = vld [vmem:[#allocation6 + $0x9c] sm:$0xf]
        %v434 = vld [vmem:[#allocation6 + $0xa0] sm:$0xff]
        %v435 = vld [vmem:[#allocation6 + $0xa8] sm:$0xff]
        %v436 = vld [vmem:[#allocation6 + $0xb0] sm:$0xf]
        %v437 = vld [vmem:[#allocation6 + $0xb4] sm:$0xff]
        %v438 = vld [vmem:[#allocation6 + $0xbc] sm:$0xff]
        %v439 = vld [vmem:[#allocation6 + $0xc4] sm:$0xf]
        %v440 = vld [vmem:[#allocation6 + $0xc8] sm:$0xff]
        %v441 = vld [vmem:[#allocation6 + $0xd0] sm:$0xff]
        %v442 = vld [vmem:[#allocation6 + $0xd8] sm:$0xf]
        %v443 = vld [vmem:[#allocation6 + $0xdc] sm:$0xff]
        %v444 = vld [vmem:[#allocation6 + $0xe4] sm:$0xff]
        %v445 = vld [vmem:[#allocation6 + $0xec] sm:$0xf]
        %v446 = vld [vmem:[#allocation6 + $0xf0] sm:$0xff]
        %v447 = vld [vmem:[#allocation6 + $0xf8] sm:$0xff]
        %v448 = vld [vmem:[#allocation6 + $0x100] sm:$0xf]
        %v449 = vld [vmem:[#allocation6 + $0x104] sm:$0xff]
        %v450 = vld [vmem:[#allocation6 + $0x10c] sm:$0xff]
        %v451 = vld [vmem:[#allocation6 + $0x114] sm:$0xf]
        %v452 = vld [vmem:[#allocation6 + $0x118] sm:$0xff]
        %v453 = vld [vmem:[#allocation6 + $0x120] sm:$0xff]
        %v454 = vld [vmem:[#allocation6 + $0x128] sm:$0xf]
        %v455 = vld [vmem:[#allocation6 + $0x12c] sm:$0xff]
        %v456 = vld [vmem:[#allocation6 + $0x134] sm:$0xff]
        %v457 = vld [vmem:[#allocation6 + $0x13c] sm:$0xf]
        %v458 = vld [vmem:[#allocation6 + $0x140] sm:$0xff]
        %v459 = vld [vmem:[#allocation6 + $0x148] sm:$0xff]
        %v460 = vld [vmem:[#allocation6 + $0x150] sm:$0xf]
        %v461 = vld [vmem:[#allocation6 + $0x154] sm:$0xff]
        %v462 = vld [vmem:[#allocation6 + $0x15c] sm:$0xff]
        %v463 = vld [vmem:[#allocation6 + $0x164] sm:$0xf]
        %v464 = vld [vmem:[#allocation6 + $0x168] sm:$0xff]
        %v465 = vld [vmem:[#allocation6 + $0x170] sm:$0xff]
        %v466 = vld [vmem:[#allocation6 + $0x178] sm:$0xf]
        %v467 = vld [vmem:[#allocation6 + $0x17c] sm:$0xff]
        %v468 = vld [vmem:[#allocation6 + $0x184] sm:$0xff]
        %v469 = vld [vmem:[#allocation6 + $0x18c] sm:$0xf]
        %v470 = vld [vmem:[#allocation6 + $0x190] sm:$0xff]
        %v471 = vld [vmem:[#allocation6 + $0x198] sm:$0xff]
        %v472 = vld [vmem:[#allocation6 + $0x1a0] sm:$0xf]
        %v473 = vld [vmem:[#allocation6 + $0x1a4] sm:$0xff]
        %v474 = vld [vmem:[#allocation6 + $0x1ac] sm:$0xff]
        %v475 = vld [vmem:[#allocation6 + $0x1b4] sm:$0xf]
        %v476 = vld [vmem:[#allocation6 + $0x1b8] sm:$0xff]
        %v477 = vld [vmem:[#allocation6 + $0x1c0] sm:$0xff]
        %v478 = vld [vmem:[#allocation6 + $0x1c8] sm:$0xf]
        %v479 = vld [vmem:[#allocation6 + $0x1cc] sm:$0xff]
        %v480 = vld [vmem:[#allocation6 + $0x1d4] sm:$0xff]
        %v481 = vld [vmem:[#allocation6 + $0x1dc] sm:$0xf]
        %v482 = vld [vmem:[#allocation6 + $0x1e0] sm:$0xff]
        %v483 = vld [vmem:[#allocation6 + $0x1e8] sm:$0xff]
        %v484 = vld [vmem:[#allocation6 + $0x1f0] sm:$0xf]
        %v485 = vld [vmem:[#allocation6 + $0x1f4] sm:$0xff]
        %v486 = vld [vmem:[#allocation6 + $0x1fc] sm:$0xff]
        %v487 = vld [vmem:[#allocation6 + $0x204] sm:$0xf]
        %v488 = vld [vmem:[#allocation6 + $0x208] sm:$0xff]
        %v489 = vld [vmem:[#allocation6 + $0x210] sm:$0xff]
        %v490 = vld [vmem:[#allocation6 + $0x218] sm:$0xf]
        %v491 = vld [vmem:[#allocation6 + $0x21c] sm:$0xff]
        %v492 = vld [vmem:[#allocation6 + $0x224] sm:$0xff]
        %v493 = vld [vmem:[#allocation6 + $0x22c] sm:$0xf]
        %v494 = vld [vmem:[#allocation6 + $0x230] sm:$0xff]
        %v495 = vld [vmem:[#allocation6 + $0x238] sm:$0xff]
        %v496 = vld [vmem:[#allocation6 + $0x240] sm:$0xf]
        %v497 = vld [vmem:[#allocation6 + $0x244] sm:$0xff]
        %v498 = vld [vmem:[#allocation6 + $0x24c] sm:$0xff]
        %v499 = vld [vmem:[#allocation6 + $0x254] sm:$0xf]
        %v500 = vld [vmem:[#allocation6 + $0x258] sm:$0xff]
        %v501 = vld [vmem:[#allocation6 + $0x260] sm:$0xff]
        %v502 = vld [vmem:[#allocation6 + $0x268] sm:$0xf]
        %v503 = vld [vmem:[#allocation6 + $0x26c] sm:$0xff]
        %v504 = vld [vmem:[#allocation6 + $0x274] sm:$0xff]
        %v505 = vld [vmem:[#allocation6 + $0x27c] sm:$0xf]
        %v506 = vld [vmem:[#allocation7] sm:$0xff]
        %v507 = vld [vmem:[#allocation7 + $0x8] sm:$0xff]
        %v508 = vld [vmem:[#allocation7 + $0x10] sm:$0xf]
        %v509 = vld [vmem:[#allocation7 + $0x14] sm:$0xff]
        %v510 = vld [vmem:[#allocation7 + $0x1c] sm:$0xff]
        %v511 = vld [vmem:[#allocation7 + $0x24] sm:$0xf]
        %v512 = vld [vmem:[#allocation7 + $0x28] sm:$0xff]
        %v513 = vld [vmem:[#allocation7 + $0x30] sm:$0xff]
        %v514 = vld [vmem:[#allocation7 + $0x38] sm:$0xf]
        %v515 = vld [vmem:[#allocation7 + $0x3c] sm:$0xff]
        %v516 = vld [vmem:[#allocation7 + $0x44] sm:$0xff]
        %v517 = vld [vmem:[#allocation7 + $0x4c] sm:$0xf]
        %v518 = vld [vmem:[#allocation7 + $0x50] sm:$0xff]
        %v519 = vld [vmem:[#allocation7 + $0x58] sm:$0xff]
        %v520 = vld [vmem:[#allocation7 + $0x60] sm:$0xf]
        %v521 = vld [vmem:[#allocation7 + $0x64] sm:$0xff]
        %v522 = vld [vmem:[#allocation7 + $0x6c] sm:$0xff]
        %v523 = vld [vmem:[#allocation7 + $0x74] sm:$0xf]
        %v524 = vld [vmem:[#allocation7 + $0x78] sm:$0xff]
        %v525 = vld [vmem:[#allocation7 + $0x80] sm:$0xff]
        %v526 = vld [vmem:[#allocation7 + $0x88] sm:$0xf]
        %v527 = vld [vmem:[#allocation7 + $0x8c] sm:$0xff]
        %v528 = vld [vmem:[#allocation7 + $0x94] sm:$0xff]
        %v529 = vld [vmem:[#allocation7 + $0x9c] sm:$0xf]
        %v530 = vld [vmem:[#allocation7 + $0xa0] sm:$0xff]
        %v531 = vld [vmem:[#allocation7 + $0xa8] sm:$0xff]
        %v532 = vld [vmem:[#allocation7 + $0xb0] sm:$0xf]
        %v533 = vld [vmem:[#allocation7 + $0xb4] sm:$0xff]
        %v534 = vld [vmem:[#allocation7 + $0xbc] sm:$0xff]
        %v535 = vld [vmem:[#allocation7 + $0xc4] sm:$0xf]
        %v536 = vld [vmem:[#allocation7 + $0xc8] sm:$0xff]
        %v537 = vld [vmem:[#allocation7 + $0xd0] sm:$0xff]
        %v538 = vld [vmem:[#allocation7 + $0xd8] sm:$0xf]
        %v539 = vld [vmem:[#allocation7 + $0xdc] sm:$0xff]
        %v540 = vld [vmem:[#allocation7 + $0xe4] sm:$0xff]
        %v541 = vld [vmem:[#allocation7 + $0xec] sm:$0xf]
        %v542 = vld [vmem:[#allocation7 + $0xf0] sm:$0xff]
        %v543 = vld [vmem:[#allocation7 + $0xf8] sm:$0xff]
        %v544 = vld [vmem:[#allocation7 + $0x100] sm:$0xf]
        %v545 = vld [vmem:[#allocation7 + $0x104] sm:$0xff]
        %v546 = vld [vmem:[#allocation7 + $0x10c] sm:$0xff]
        %v547 = vld [vmem:[#allocation7 + $0x114] sm:$0xf]
        %v548 = vld [vmem:[#allocation7 + $0x118] sm:$0xff]
        %v549 = vld [vmem:[#allocation7 + $0x120] sm:$0xff]
        %v550 = vld [vmem:[#allocation7 + $0x128] sm:$0xf]
        %v551 = vld [vmem:[#allocation7 + $0x12c] sm:$0xff]
        %v552 = vld [vmem:[#allocation7 + $0x134] sm:$0xff]
        %v553 = vld [vmem:[#allocation7 + $0x13c] sm:$0xf]
        %v554 = vld [vmem:[#allocation7 + $0x140] sm:$0xff]
        %v555 = vld [vmem:[#allocation7 + $0x148] sm:$0xff]
        %v556 = vld [vmem:[#allocation7 + $0x150] sm:$0xf]
        %v557 = vld [vmem:[#allocation7 + $0x154] sm:$0xff]
        %v558 = vld [vmem:[#allocation7 + $0x15c] sm:$0xff]
        %v559 = vld [vmem:[#allocation7 + $0x164] sm:$0xf]
        %v560 = vld [vmem:[#allocation7 + $0x168] sm:$0xff]
        %v561 = vld [vmem:[#allocation7 + $0x170] sm:$0xff]
        %v562 = vld [vmem:[#allocation7 + $0x178] sm:$0xf]
        %v563 = vld [vmem:[#allocation7 + $0x17c] sm:$0xff]
        %v564 = vld [vmem:[#allocation7 + $0x184] sm:$0xff]
        %v565 = vld [vmem:[#allocation7 + $0x18c] sm:$0xf]
        %v566 = vld [vmem:[#allocation7 + $0x190] sm:$0xff]
        %v567 = vld [vmem:[#allocation7 + $0x198] sm:$0xff]
        %v568 = vld [vmem:[#allocation7 + $0x1a0] sm:$0xf]
        %v569 = vld [vmem:[#allocation7 + $0x1a4] sm:$0xff]
        %v570 = vld [vmem:[#allocation7 + $0x1ac] sm:$0xff]
        %v571 = vld [vmem:[#allocation7 + $0x1b4] sm:$0xf]
        %v572 = vld [vmem:[#allocation7 + $0x1b8] sm:$0xff]
        %v573 = vld [vmem:[#allocation7 + $0x1c0] sm:$0xff]
        %v574 = vld [vmem:[#allocation7 + $0x1c8] sm:$0xf]
        %v575 = vld [vmem:[#allocation7 + $0x1cc] sm:$0xff]
        %v576 = vld [vmem:[#allocation7 + $0x1d4] sm:$0xff]
        %v577 = vld [vmem:[#allocation7 + $0x1dc] sm:$0xf]
        %v578 = vld [vmem:[#allocation7 + $0x1e0] sm:$0xff]
        %v579 = vld [vmem:[#allocation7 + $0x1e8] sm:$0xff]
        %v580 = vld [vmem:[#allocation7 + $0x1f0] sm:$0xf]
        %v581 = vld [vmem:[#allocation7 + $0x1f4] sm:$0xff]
        %v582 = vld [vmem:[#allocation7 + $0x1fc] sm:$0xff]
        %v583 = vld [vmem:[#allocation7 + $0x204] sm:$0xf]
        %v584 = vld [vmem:[#allocation7 + $0x208] sm:$0xff]
        %v585 = vld [vmem:[#allocation7 + $0x210] sm:$0xff]
        %v586 = vld [vmem:[#allocation7 + $0x218] sm:$0xf]
        %v587 = vld [vmem:[#allocation7 + $0x21c] sm:$0xff]
        %v588 = vld [vmem:[#allocation7 + $0x224] sm:$0xff]
        %v589 = vld [vmem:[#allocation7 + $0x22c] sm:$0xf]
        %v590 = vld [vmem:[#allocation7 + $0x230] sm:$0xff]
        %v591 = vld [vmem:[#allocation7 + $0x238] sm:$0xff]
        %v592 = vld [vmem:[#allocation7 + $0x240] sm:$0xf]
        %v593 = vld [vmem:[#allocation7 + $0x244] sm:$0xff]
        %v594 = vld [vmem:[#allocation7 + $0x24c] sm:$0xff]
        %v595 = vld [vmem:[#allocation7 + $0x254] sm:$0xf]
        %v596 = vld [vmem:[#allocation7 + $0x258] sm:$0xff]
        %v597 = vld [vmem:[#allocation7 + $0x260] sm:$0xff]
        %v598 = vld [vmem:[#allocation7 + $0x268] sm:$0xf]
        %v599 = vld [vmem:[#allocation7 + $0x26c] sm:$0xff]
        %v600 = vld [vmem:[#allocation7 + $0x274] sm:$0xff]
        %v601 = vld [vmem:[#allocation7 + $0x27c] sm:$0xf]
        %v602 = vld [vmem:[#allocation6 + $0x280] sm:$0xff]
        %v603 = vld [vmem:[#allocation6 + $0x288] sm:$0xff]
        %v604 = vld [vmem:[#allocation6 + $0x290] sm:$0xf]
        %v605 = vld [vmem:[#allocation6 + $0x294] sm:$0xff]
        %v606 = vld [vmem:[#allocation6 + $0x29c] sm:$0xff]
        %v607 = vld [vmem:[#allocation6 + $0x2a4] sm:$0xf]
        %v608 = vld [vmem:[#allocation6 + $0x2a8] sm:$0xff]
        %v609 = vld [vmem:[#allocation6 + $0x2b0] sm:$0xff]
        %v610 = vld [vmem:[#allocation6 + $0x2b8] sm:$0xf]
        %v611 = vld [vmem:[#allocation6 + $0x2bc] sm:$0xff]
        %v612 = vld [vmem:[#allocation6 + $0x2c4] sm:$0xff]
        %v613 = vld [vmem:[#allocation6 + $0x2cc] sm:$0xf]
        %v614 = vld [vmem:[#allocation6 + $0x2d0] sm:$0xff]
        %v615 = vld [vmem:[#allocation6 + $0x2d8] sm:$0xff]
        %v616 = vld [vmem:[#allocation6 + $0x2e0] sm:$0xf]
        %v617 = vld [vmem:[#allocation6 + $0x2e4] sm:$0xff]
        %v618 = vld [vmem:[#allocation6 + $0x2ec] sm:$0xff]
        %v619 = vld [vmem:[#allocation6 + $0x2f4] sm:$0xf]
        %v620 = vld [vmem:[#allocation6 + $0x2f8] sm:$0xff]
        %v621 = vld [vmem:[#allocation6 + $0x300] sm:$0xff]
        %v622 = vld [vmem:[#allocation6 + $0x308] sm:$0xf]
        %v623 = vld [vmem:[#allocation6 + $0x30c] sm:$0xff]
        %v624 = vld [vmem:[#allocation6 + $0x314] sm:$0xff]
        %v625 = vld [vmem:[#allocation6 + $0x31c] sm:$0xf]
        %v626 = vld [vmem:[#allocation6 + $0x320] sm:$0xff]
        %v627 = vld [vmem:[#allocation6 + $0x328] sm:$0xff]
        %v628 = vld [vmem:[#allocation6 + $0x330] sm:$0xf]
        %v629 = vld [vmem:[#allocation6 + $0x334] sm:$0xff]
        %v630 = vld [vmem:[#allocation6 + $0x33c] sm:$0xff]
        %v631 = vld [vmem:[#allocation6 + $0x344] sm:$0xf]
        %v632 = vld [vmem:[#allocation6 + $0x348] sm:$0xff]
        %v633 = vld [vmem:[#allocation6 + $0x350] sm:$0xff]
        %v634 = vld [vmem:[#allocation6 + $0x358] sm:$0xf]
        %v635 = vld [vmem:[#allocation6 + $0x35c] sm:$0xff]
        %v636 = vld [vmem:[#allocation6 + $0x364] sm:$0xff]
        %v637 = vld [vmem:[#allocation6 + $0x36c] sm:$0xf]
        %v638 = vld [vmem:[#allocation6 + $0x370] sm:$0xff]
        %v639 = vld [vmem:[#allocation6 + $0x378] sm:$0xff]
        %v640 = vld [vmem:[#allocation6 + $0x380] sm:$0xf]
        %v641 = vld [vmem:[#allocation6 + $0x384] sm:$0xff]
        %v642 = vld [vmem:[#allocation6 + $0x38c] sm:$0xff]
        %v643 = vld [vmem:[#allocation6 + $0x394] sm:$0xf]
        %v644 = vld [vmem:[#allocation6 + $0x398] sm:$0xff]
        %v645 = vld [vmem:[#allocation6 + $0x3a0] sm:$0xff]
        %v646 = vld [vmem:[#allocation6 + $0x3a8] sm:$0xf]
        %v647 = vld [vmem:[#allocation6 + $0x3ac] sm:$0xff]
        %v648 = vld [vmem:[#allocation6 + $0x3b4] sm:$0xff]
        %v649 = vld [vmem:[#allocation6 + $0x3bc] sm:$0xf]
        %v650 = vld [vmem:[#allocation6 + $0x3c0] sm:$0xff]
        %v651 = vld [vmem:[#allocation6 + $0x3c8] sm:$0xff]
        %v652 = vld [vmem:[#allocation6 + $0x3d0] sm:$0xf]
        %v653 = vld [vmem:[#allocation6 + $0x3d4] sm:$0xff]
        %v654 = vld [vmem:[#allocation6 + $0x3dc] sm:$0xff]
        %v655 = vld [vmem:[#allocation6 + $0x3e4] sm:$0xf]
        %v656 = vld [vmem:[#allocation6 + $0x3e8] sm:$0xff]
        %v657 = vld [vmem:[#allocation6 + $0x3f0] sm:$0xff]
        %v658 = vld [vmem:[#allocation6 + $0x3f8] sm:$0xf]
        %v659 = vld [vmem:[#allocation6 + $0x3fc] sm:$0xff]
        %v660 = vld [vmem:[#allocation6 + $0x404] sm:$0xff]
        %v661 = vld [vmem:[#allocation6 + $0x40c] sm:$0xf]
        %v662 = vld [vmem:[#allocation6 + $0x410] sm:$0xff]
        %v663 = vld [vmem:[#allocation6 + $0x418] sm:$0xff]
        %v664 = vld [vmem:[#allocation6 + $0x420] sm:$0xf]
        %v665 = vld [vmem:[#allocation6 + $0x424] sm:$0xff]
        %v666 = vld [vmem:[#allocation6 + $0x42c] sm:$0xff]
        %v667 = vld [vmem:[#allocation6 + $0x434] sm:$0xf]
        %v668 = vld [vmem:[#allocation6 + $0x438] sm:$0xff]
        %v669 = vld [vmem:[#allocation6 + $0x440] sm:$0xff]
        %v670 = vld [vmem:[#allocation6 + $0x448] sm:$0xf]
        %v671 = vld [vmem:[#allocation6 + $0x44c] sm:$0xff]
        %v672 = vld [vmem:[#allocation6 + $0x454] sm:$0xff]
        %v673 = vld [vmem:[#allocation6 + $0x45c] sm:$0xf]
        %v674 = vld [vmem:[#allocation6 + $0x460] sm:$0xff]
        %v675 = vld [vmem:[#allocation6 + $0x468] sm:$0xff]
        %v676 = vld [vmem:[#allocation6 + $0x470] sm:$0xf]
        %v677 = vld [vmem:[#allocation6 + $0x474] sm:$0xff]
        %v678 = vld [vmem:[#allocation6 + $0x47c] sm:$0xff]
        %v679 = vld [vmem:[#allocation6 + $0x484] sm:$0xf]
        %v680 = vld [vmem:[#allocation6 + $0x488] sm:$0xff]
        %v681 = vld [vmem:[#allocation6 + $0x490] sm:$0xff]
        %v682 = vld [vmem:[#allocation6 + $0x498] sm:$0xf]
        %v683 = vld [vmem:[#allocation6 + $0x49c] sm:$0xff]
        %v684 = vld [vmem:[#allocation6 + $0x4a4] sm:$0xff]
        %v685 = vld [vmem:[#allocation6 + $0x4ac] sm:$0xf]
        %v686 = vld [vmem:[#allocation6 + $0x4b0] sm:$0xff]
        %v687 = vld [vmem:[#allocation6 + $0x4b8] sm:$0xff]
        %v688 = vld [vmem:[#allocation6 + $0x4c0] sm:$0xf]
        %v689 = vld [vmem:[#allocation6 + $0x4c4] sm:$0xff]
        %v690 = vld [vmem:[#allocation6 + $0x4cc] sm:$0xff]
        %v691 = vld [vmem:[#allocation6 + $0x4d4] sm:$0xf]
        %v692 = vld [vmem:[#allocation6 + $0x4d8] sm:$0xff]
        %v693 = vld [vmem:[#allocation6 + $0x4e0] sm:$0xff]
        %v694 = vld [vmem:[#allocation6 + $0x4e8] sm:$0xf]
        %v695 = vld [vmem:[#allocation6 + $0x4ec] sm:$0xff]
        %v696 = vld [vmem:[#allocation6 + $0x4f4] sm:$0xff]
        %v697 = vld [vmem:[#allocation6 + $0x4fc] sm:$0xf]
        %vm698 = vsmask.f32 7424
        %v700 = vshrl.u32 %v390, 16
        %v702 = vshll.u32 %v390, 16
        %v704 = vrot.slane %v702, 1
        %v705 = vor.u32 %v700, %v704
        %v706 = vshll.u32 %v404, 16
        %v708 = vrot.slane %v706, 1
        %v709 = vsel %vm698, %v705, %v708
        %v711 = vshrl.u32 %v391, 16
        %v713 = vshll.u32 %v391, 16
        %v715 = vrot.slane %v713, 1
        %v716 = vor.u32 %v711, %v715
        %v717 = vshll.u32 %v408, 16
        %v719 = vrot.slane %v717, 1
        %v720 = vsel %vm698, %v716, %v719
        %v721 = vshrl.u32 %v404, 16
        %v723 = vor.u32 %v721, %v708
        %v724 = vshrl.u32 %v408, 16
        %v726 = vor.u32 %v724, %v719
        %v827 = vunpack.c.l.b16 %v602
        %v828 = vunpack.c.h.b16 %v602
        %v829 = vunpack.c.l.b16 %v603
        %v830 = vunpack.c.h.b16 %v603
        %v831 = vunpack.c.l.b16 %v604
        %v832 = vunpack.c.l.b16 %v605
        %v833 = vunpack.c.h.b16 %v605
        %v834 = vunpack.c.l.b16 %v606
        %v835 = vunpack.c.h.b16 %v606
        %v836 = vunpack.c.l.b16 %v607
        %v837 = vunpack.c.l.b16 %v608
        %v838 = vunpack.c.h.b16 %v608
        %v839 = vunpack.c.l.b16 %v609
        %v840 = vunpack.c.h.b16 %v609
        %v841 = vunpack.c.l.b16 %v610
        %v842 = vunpack.c.l.b16 %v611
        %v843 = vunpack.c.h.b16 %v611
        %v844 = vunpack.c.l.b16 %v612
        %v845 = vunpack.c.h.b16 %v612
        %v846 = vunpack.c.l.b16 %v613
        %v847 = vunpack.c.l.b16 %v614
        %v848 = vunpack.c.h.b16 %v614
        %v849 = vunpack.c.l.b16 %v615
        %v850 = vunpack.c.h.b16 %v615
        %v851 = vunpack.c.l.b16 %v616
        %v852 = vunpack.c.l.b16 %v617
        %v853 = vunpack.c.h.b16 %v617
        %v854 = vunpack.c.l.b16 %v618
        %v855 = vunpack.c.h.b16 %v618
        %v856 = vunpack.c.l.b16 %v619
        %v857 = vunpack.c.l.b16 %v620
        %v858 = vunpack.c.h.b16 %v620
        %v859 = vunpack.c.l.b16 %v621
        %v860 = vunpack.c.h.b16 %v621
        %v861 = vunpack.c.l.b16 %v622
        %v862 = vunpack.c.l.b16 %v623
        %v863 = vunpack.c.h.b16 %v623
        %v864 = vunpack.c.l.b16 %v624
        %v865 = vunpack.c.h.b16 %v624
        %v866 = vunpack.c.l.b16 %v625
        %v867 = vunpack.c.l.b16 %v626
        %v868 = vunpack.c.h.b16 %v626
        %v869 = vunpack.c.l.b16 %v627
        %v870 = vunpack.c.h.b16 %v627
        %v871 = vunpack.c.l.b16 %v628
        %v872 = vunpack.c.l.b16 %v629
        %v873 = vunpack.c.h.b16 %v629
        %v874 = vunpack.c.l.b16 %v630
        %v875 = vunpack.c.h.b16 %v630
        %v876 = vunpack.c.l.b16 %v631
        %v877 = vunpack.c.l.b16 %v632
        %v878 = vunpack.c.h.b16 %v632
        %v879 = vunpack.c.l.b16 %v633
        %v880 = vunpack.c.h.b16 %v633
        %v881 = vunpack.c.l.b16 %v634
        %v882 = vunpack.c.l.b16 %v635
        %v883 = vunpack.c.h.b16 %v635
        %v884 = vunpack.c.l.b16 %v636
        %v885 = vunpack.c.h.b16 %v636
        %v886 = vunpack.c.l.b16 %v637
        %v887 = vunpack.c.l.b16 %v638
        %v888 = vunpack.c.h.b16 %v638
        %v889 = vunpack.c.l.b16 %v639
        %v890 = vunpack.c.h.b16 %v639
        %v891 = vunpack.c.l.b16 %v640
        %v892 = vunpack.c.l.b16 %v641
        %v893 = vunpack.c.h.b16 %v641
        %v894 = vunpack.c.l.b16 %v642
        %v895 = vunpack.c.h.b16 %v642
        %v896 = vunpack.c.l.b16 %v643
        %v897 = vunpack.c.l.b16 %v644
        %v898 = vunpack.c.h.b16 %v644
        %v899 = vunpack.c.l.b16 %v645
        %v900 = vunpack.c.h.b16 %v645
        %v901 = vunpack.c.l.b16 %v646
        %v902 = vunpack.c.l.b16 %v647
        %v903 = vunpack.c.h.b16 %v647
        %v904 = vunpack.c.l.b16 %v648
        %v905 = vunpack.c.h.b16 %v648
        %v906 = vunpack.c.l.b16 %v649
        %v907 = vunpack.c.l.b16 %v650
        %v908 = vunpack.c.h.b16 %v650
        %v909 = vunpack.c.l.b16 %v651
        %v910 = vunpack.c.h.b16 %v651
        %v911 = vunpack.c.l.b16 %v652
        %v912 = vunpack.c.l.b16 %v653
        %v913 = vunpack.c.h.b16 %v653
        %v914 = vunpack.c.l.b16 %v654
        %v915 = vunpack.c.h.b16 %v654
        %v916 = vunpack.c.l.b16 %v655
        %v917 = vunpack.c.l.b16 %v656
        %v918 = vunpack.c.h.b16 %v656
        %v919 = vunpack.c.l.b16 %v657
        %v920 = vunpack.c.h.b16 %v657
        %v921 = vunpack.c.l.b16 %v658
        %v922 = vunpack.c.l.b16 %v659
        %v923 = vunpack.c.h.b16 %v659
        %v924 = vunpack.c.l.b16 %v660
        %v925 = vunpack.c.h.b16 %v660
        %v926 = vunpack.c.l.b16 %v661
        %v927 = vunpack.c.l.b16 %v662
        %v928 = vunpack.c.h.b16 %v662
        %v929 = vunpack.c.l.b16 %v663
        %v930 = vunpack.c.h.b16 %v663
        %v931 = vunpack.c.l.b16 %v664
        %v932 = vunpack.c.l.b16 %v665
        %v933 = vunpack.c.h.b16 %v665
        %v934 = vunpack.c.l.b16 %v666
        %v935 = vunpack.c.h.b16 %v666
        %v936 = vunpack.c.l.b16 %v667
        %v937 = vunpack.c.l.b16 %v668
        %v938 = vunpack.c.h.b16 %v668
        %v939 = vunpack.c.l.b16 %v669
        %v940 = vunpack.c.h.b16 %v669
        %v941 = vunpack.c.l.b16 %v670
        %v942 = vunpack.c.l.b16 %v671
        %v943 = vunpack.c.h.b16 %v671
        %v944 = vunpack.c.l.b16 %v672
        %v945 = vunpack.c.h.b16 %v672
        %v946 = vunpack.c.l.b16 %v673
        %v947 = vunpack.c.l.b16 %v674
        %v948 = vunpack.c.h.b16 %v674
        %v949 = vunpack.c.l.b16 %v675
        %v950 = vunpack.c.h.b16 %v675
        %v951 = vunpack.c.l.b16 %v676
        %v952 = vunpack.c.l.b16 %v677
        %v953 = vunpack.c.h.b16 %v677
        %v954 = vunpack.c.l.b16 %v678
        %v955 = vunpack.c.h.b16 %v678
        %v956 = vunpack.c.l.b16 %v679
        %v957 = vunpack.c.l.b16 %v680
        %v958 = vunpack.c.h.b16 %v680
        %v959 = vunpack.c.l.b16 %v681
        %v960 = vunpack.c.h.b16 %v681
        %v961 = vunpack.c.l.b16 %v682
        %v962 = vunpack.c.l.b16 %v683
        %v963 = vunpack.c.h.b16 %v683
        %v964 = vunpack.c.l.b16 %v684
        %v965 = vunpack.c.h.b16 %v684
        %v966 = vunpack.c.l.b16 %v685
        %v967 = vunpack.c.l.b16 %v686
        %v968 = vunpack.c.h.b16 %v686
        %v969 = vunpack.c.l.b16 %v687
        %v970 = vunpack.c.h.b16 %v687
        %v971 = vunpack.c.l.b16 %v688
        %v972 = vunpack.c.l.b16 %v689
        %v973 = vunpack.c.h.b16 %v689
        %v974 = vunpack.c.l.b16 %v690
        %v975 = vunpack.c.h.b16 %v690
        %v976 = vunpack.c.l.b16 %v691
        %v977 = vunpack.c.l.b16 %v692
        %v978 = vunpack.c.h.b16 %v692
        %v979 = vunpack.c.l.b16 %v693
        %v980 = vunpack.c.h.b16 %v693
        %v981 = vunpack.c.l.b16 %v694
        %v982 = vunpack.c.l.b16 %v695
        %v983 = vunpack.c.h.b16 %v695
        %v984 = vunpack.c.l.b16 %v696
        %v985 = vunpack.c.h.b16 %v696
        %v986 = vunpack.c.l.b16 %v697
        %v987 = vpack.c.b16 %v832, %v827
        %v988 = vpack.c.b16 %v833, %v828
        %v989 = vpack.c.b16 %v834, %v829
        %v990 = vpack.c.b16 %v835, %v830
        %v991 = vpack.c.b16 %v836, %v831
        %v992 = vpack.c.b16 %v842, %v837
        %v993 = vpack.c.b16 %v843, %v838
        %v994 = vpack.c.b16 %v844, %v839
        %v995 = vpack.c.b16 %v845, %v840
        %v996 = vpack.c.b16 %v846, %v841
        %v997 = vpack.c.b16 %v852, %v847
        %v998 = vpack.c.b16 %v853, %v848
        %v999 = vpack.c.b16 %v854, %v849
        %v1000 = vpack.c.b16 %v855, %v850
        %v1001 = vpack.c.b16 %v856, %v851
        %v1002 = vpack.c.b16 %v862, %v857
        %v1003 = vpack.c.b16 %v863, %v858
        %v1004 = vpack.c.b16 %v864, %v859
        %v1005 = vpack.c.b16 %v865, %v860
        %v1006 = vpack.c.b16 %v866, %v861
        %v1007 = vpack.c.b16 %v872, %v867
        %v1008 = vpack.c.b16 %v873, %v868
        %v1009 = vpack.c.b16 %v874, %v869
        %v1010 = vpack.c.b16 %v875, %v870
        %v1011 = vpack.c.b16 %v876, %v871
        %v1012 = vpack.c.b16 %v882, %v877
        %v1013 = vpack.c.b16 %v883, %v878
        %v1014 = vpack.c.b16 %v884, %v879
        %v1015 = vpack.c.b16 %v885, %v880
        %v1016 = vpack.c.b16 %v886, %v881
        %v1017 = vpack.c.b16 %v892, %v887
        %v1018 = vpack.c.b16 %v893, %v888
        %v1019 = vpack.c.b16 %v894, %v889
        %v1020 = vpack.c.b16 %v895, %v890
        %v1021 = vpack.c.b16 %v896, %v891
        %v1022 = vpack.c.b16 %v902, %v897
        %v1023 = vpack.c.b16 %v903, %v898
        %v1024 = vpack.c.b16 %v904, %v899
        %v1025 = vpack.c.b16 %v905, %v900
        %v1026 = vpack.c.b16 %v906, %v901
        %v1027 = vpack.c.b16 %v912, %v907
        %v1028 = vpack.c.b16 %v913, %v908
        %v1029 = vpack.c.b16 %v914, %v909
        %v1030 = vpack.c.b16 %v915, %v910
        %v1031 = vpack.c.b16 %v916, %v911
        %v1032 = vpack.c.b16 %v922, %v917
        %v1033 = vpack.c.b16 %v923, %v918
        %v1034 = vpack.c.b16 %v924, %v919
        %v1035 = vpack.c.b16 %v925, %v920
        %v1036 = vpack.c.b16 %v926, %v921
        %v1037 = vpack.c.b16 %v932, %v927
        %v1038 = vpack.c.b16 %v933, %v928
        %v1039 = vpack.c.b16 %v934, %v929
        %v1040 = vpack.c.b16 %v935, %v930
        %v1041 = vpack.c.b16 %v936, %v931
        %v1042 = vpack.c.b16 %v942, %v937
        %v1043 = vpack.c.b16 %v943, %v938
        %v1044 = vpack.c.b16 %v944, %v939
        %v1045 = vpack.c.b16 %v945, %v940
        %v1046 = vpack.c.b16 %v946, %v941
        %v1047 = vpack.c.b16 %v952, %v947
        %v1048 = vpack.c.b16 %v953, %v948
        %v1049 = vpack.c.b16 %v954, %v949
        %v1050 = vpack.c.b16 %v955, %v950
        %v1051 = vpack.c.b16 %v956, %v951
        %v1052 = vpack.c.b16 %v962, %v957
        %v1053 = vpack.c.b16 %v963, %v958
        %v1054 = vpack.c.b16 %v964, %v959
        %v1055 = vpack.c.b16 %v965, %v960
        %v1056 = vpack.c.b16 %v966, %v961
        %v1057 = vpack.c.b16 %v972, %v967
        %v1058 = vpack.c.b16 %v973, %v968
        %v1059 = vpack.c.b16 %v974, %v969
        %v1060 = vpack.c.b16 %v975, %v970
        %v1061 = vpack.c.b16 %v976, %v971
        %v1062 = vpack.c.b16 %v982, %v977
        %v1063 = vpack.c.b16 %v983, %v978
        %v1064 = vpack.c.b16 %v984, %v979
        %v1065 = vpack.c.b16 %v985, %v980
        %v1066 = vpack.c.b16 %v986, %v981
        %1147 = vmatprep.subr.bf16.mxu0 %v988
        %1148 = vmatpush1.bf16.msra.mxu0 %v987
        %1149 = vmatprep.subr.bf16.mxu0 %v993
        %1150 = vmatpush1.bf16.msra.mxu0 %v992
        %1151 = vmatprep.subr.bf16.mxu0 %v998
        %1152 = vmatpush1.bf16.msra.mxu0 %v997
        %1153 = vmatprep.subr.bf16.mxu0 %v1003
        %1154 = vmatpush1.bf16.msra.mxu0 %v1002
        %1155 = vmatprep.subr.bf16.mxu0 %v1008
        %1156 = vmatpush1.bf16.msra.mxu0 %v1007
        %1157 = vmatprep.subr.bf16.mxu0 %v1013
        %1158 = vmatpush1.bf16.msra.mxu0 %v1012
        %1159 = vmatprep.subr.bf16.mxu0 %v1018
        %1160 = vmatpush1.bf16.msra.mxu0 %v1017
        %1161 = vmatprep.subr.bf16.mxu0 %v1023
        %1162 = vmatpush1.bf16.msra.mxu0 %v1022
        %1163 = vmatprep.subr.bf16.mxu0 %v1028
        %1164 = vmatpush1.bf16.msra.mxu0 %v1027
        %1165 = vmatprep.subr.bf16.mxu0 %v1033
        %1166 = vmatpush1.bf16.msra.mxu0 %v1032
        %1167 = vmatprep.subr.bf16.mxu0 %v1038
        %1168 = vmatpush1.bf16.msra.mxu0 %v1037
        %1169 = vmatprep.subr.bf16.mxu0 %v1043
        %1170 = vmatpush1.bf16.msra.mxu0 %v1042
        %1171 = vmatprep.subr.bf16.mxu0 %v1048
        %1172 = vmatpush1.bf16.msra.mxu0 %v1047
        %1173 = vmatprep.subr.bf16.mxu0 %v1053
        %1174 = vmatpush1.bf16.msra.mxu0 %v1052
        %1175 = vmatprep.subr.bf16.mxu0 %v1058
        %1176 = vmatpush1.bf16.msra.mxu0 %v1057
        %1177 = vmatprep.subr.bf16.mxu0 %v1063
        %1178 = vmatpush1.bf16.msra.mxu0 %v1062
        %1179 = vmatprep.mubr.bf16.mxu0 %v720
        %1180 = vmatmul.mubr.bf16.gmra.mrb[0].mxu0 %v709
        %v1181 = vpop.f32.mrb[0].mxu0
        %v1182 = vadd.f32 0.0, %v1181
        %v1183 = vpop.f32.mrb[0].mxu0
        %v1184 = vadd.f32 0.0, %v1183
        %v1185 = vpop.f32.mrb[0].mxu0
        %v1186 = vadd.f32 0.0, %v1185
        %v1187 = vpop.f32.mrb[0].mxu0
        %v1188 = vadd.f32 0.0, %v1187
        %1189 = vmatprep.mubr.bf16.mxu0 %v726
        %1190 = vmatmul.mubr.bf16.gmra.mrb[0].mxu0 %v723
        %v1191 = vpop.f32.mrb[0].mxu0
        %v1192 = vadd.f32 0.0, %v1191
        %v1193 = vpop.f32.mrb[0].mxu0
        %v1194 = vadd.f32 0.0, %v1193
        %v1195 = vpop.f32.mrb[0].mxu0
        %v1196 = vpop.f32.mrb[0].mxu0
        %1197 = vdwg.mxu0
        %1198 = vmatprep.subr.bf16.mxu0 %v990
        %1199 = vmatpush1.bf16.msra.mxu0 %v989
        %1200 = vmatprep.subr.bf16.mxu0 %v995
        %1201 = vmatpush1.bf16.msra.mxu0 %v994
        %1202 = vmatprep.subr.bf16.mxu0 %v1000
        %1203 = vmatpush1.bf16.msra.mxu0 %v999
        %1204 = vmatprep.subr.bf16.mxu0 %v1005
        %1205 = vmatpush1.bf16.msra.mxu0 %v1004
        %1206 = vmatprep.subr.bf16.mxu0 %v1010
        %1207 = vmatpush1.bf16.msra.mxu0 %v1009
        %1208 = vmatprep.subr.bf16.mxu0 %v1015
        %1209 = vmatpush1.bf16.msra.mxu0 %v1014
        %1210 = vmatprep.subr.bf16.mxu0 %v1020
        %1211 = vmatpush1.bf16.msra.mxu0 %v1019
        %1212 = vmatprep.subr.bf16.mxu0 %v1025
        %1213 = vmatpush1.bf16.msra.mxu0 %v1024
        %1214 = vmatprep.subr.bf16.mxu0 %v1030
        %1215 = vmatpush1.bf16.msra.mxu0 %v1029
        %1216 = vmatprep.subr.bf16.mxu0 %v1035
        %1217 = vmatpush1.bf16.msra.mxu0 %v1034
        %1218 = vmatprep.subr.bf16.mxu0 %v1040
        %1219 = vmatpush1.bf16.msra.mxu0 %v1039
        %1220 = vmatprep.subr.bf16.mxu0 %v1045
        %1221 = vmatpush1.bf16.msra.mxu0 %v1044
        %1222 = vmatprep.subr.bf16.mxu0 %v1050
        %1223 = vmatpush1.bf16.msra.mxu0 %v1049
        %1224 = vmatprep.subr.bf16.mxu0 %v1055
        %1225 = vmatpush1.bf16.msra.mxu0 %v1054
        %1226 = vmatprep.subr.bf16.mxu0 %v1060
        %1227 = vmatpush1.bf16.msra.mxu0 %v1059
        %1228 = vmatprep.subr.bf16.mxu0 %v1065
        %1229 = vmatpush1.bf16.msra.mxu0 %v1064
        %1230 = vmatprep.mubr.bf16.mxu0 %v720
        %1231 = vmatmul.mubr.bf16.gmra.mrb[0].mxu0 %v709
        %v1232 = vpop.f32.mrb[0].mxu0
        %v1233 = vadd.f32 0.0, %v1232
        %v1234 = vpop.f32.mrb[0].mxu0
        %v1235 = vadd.f32 0.0, %v1234
        %v1236 = vpop.f32.mrb[0].mxu0
        %v1237 = vadd.f32 0.0, %v1236
        %v1238 = vpop.f32.mrb[0].mxu0
        %v1239 = vadd.f32 0.0, %v1238
        %1240 = vmatprep.mubr.bf16.mxu0 %v726
        %1241 = vmatmul.mubr.bf16.gmra.mrb[0].mxu0 %v723
        %v1242 = vpop.f32.mrb[0].mxu0
        %v1243 = vadd.f32 0.0, %v1242
        %v1244 = vpop.f32.mrb[0].mxu0
        %v1245 = vadd.f32 0.0, %v1244
        %v1246 = vpop.f32.mrb[0].mxu0
        %v1247 = vpop.f32.mrb[0].mxu0
        %1248 = vdwg.mxu0
        %1249 = vmatprep.subr.bf16.mxu0 0
        %1250 = vmatpush1.bf16.msra.mxu0 %v991
        %1251 = vmatprep.subr.bf16.mxu0 0
        %1252 = vmatpush1.bf16.msra.mxu0 %v996
        %1253 = vmatprep.subr.bf16.mxu0 0
        %1254 = vmatpush1.bf16.msra.mxu0 %v1001
        %1255 = vmatprep.subr.bf16.mxu0 0
        %1256 = vmatpush1.bf16.msra.mxu0 %v1006
        %1257 = vmatprep.subr.bf16.mxu0 0
        %1258 = vmatpush1.bf16.msra.mxu0 %v1011
        %1259 = vmatprep.subr.bf16.mxu0 0
        %1260 = vmatpush1.bf16.msra.mxu0 %v1016
        %1261 = vmatprep.subr.bf16.mxu0 0
        %1262 = vmatpush1.bf16.msra.mxu0 %v1021
        %1263 = vmatprep.subr.bf16.mxu0 0
        %1264 = vmatpush1.bf16.msra.mxu0 %v1026
        %1265 = vmatprep.subr.bf16.mxu0 0
        %1266 = vmatpush1.bf16.msra.mxu0 %v1031
        %1267 = vmatprep.subr.bf16.mxu0 0
        %1268 = vmatpush1.bf16.msra.mxu0 %v1036
        %1269 = vmatprep.subr.bf16.mxu0 0
        %1270 = vmatpush1.bf16.msra.mxu0 %v1041
        %1271 = vmatprep.subr.bf16.mxu0 0
        %1272 = vmatpush1.bf16.msra.mxu0 %v1046
        %1273 = vmatprep.subr.bf16.mxu0 0
        %1274 = vmatpush1.bf16.msra.mxu0 %v1051
        %1275 = vmatprep.subr.bf16.mxu0 0
        %1276 = vmatpush1.bf16.msra.mxu0 %v1056
        %1277 = vmatprep.subr.bf16.mxu0 0
        %1278 = vmatpush1.bf16.msra.mxu0 %v1061
        %1279 = vmatprep.subr.bf16.mxu0 0
        %1280 = vmatpush1.bf16.msra.mxu0 %v1066
        %1281 = vmatprep.mubr.bf16.mxu0 %v720
        %1282 = vmatmul.mubr.bf16.gmra.mrb[0].mxu0 %v709
        %v1283 = vpop.f32.mrb[0].mxu0
        %v1284 = vadd.f32 0.0, %v1283
        %v1285 = vpop.f32.mrb[0].mxu0
        %v1286 = vpop.f32.mrb[0].mxu0
        %v1287 = vadd.f32 0.0, %v1286
        %v1288 = vpop.f32.mrb[0].mxu0
        %1289 = vmatprep.mubr.bf16.mxu0 %v726
        %1290 = vmatmul.mubr.bf16.gmra.mrb[0].mxu0 %v723
        %v1291 = vpop.f32.mrb[0].mxu0
        %v1292 = vadd.f32 0.0, %v1291
        %v1293 = vpop.f32.mrb[0].mxu0
        %v1294 = vpop.f32.mrb[0].mxu0
        %v1295 = vpop.f32.mrb[0].mxu0
        %1296 = vdwg.mxu0
        %v1393 = vunpack.c.l.b16 %v410
        %v1394 = vunpack.c.h.b16 %v410
        %v1395 = vunpack.c.l.b16 %v411
        %v1396 = vunpack.c.h.b16 %v411
        %v1397 = vunpack.c.l.b16 %v412
        %v1398 = vunpack.c.l.b16 %v413
        %v1399 = vunpack.c.h.b16 %v413
        %v1400 = vunpack.c.l.b16 %v414
        %v1401 = vunpack.c.h.b16 %v414
        %v1402 = vunpack.c.l.b16 %v415
        %v1403 = vunpack.c.l.b16 %v416
        %v1404 = vunpack.c.h.b16 %v416
        %v1405 = vunpack.c.l.b16 %v417
        %v1406 = vunpack.c.h.b16 %v417
        %v1407 = vunpack.c.l.b16 %v418
        %v1408 = vunpack.c.l.b16 %v419
        %v1409 = vunpack.c.h.b16 %v419
        %v1410 = vunpack.c.l.b16 %v420
        %v1411 = vunpack.c.h.b16 %v420
        %v1412 = vunpack.c.l.b16 %v421
        %v1413 = vunpack.c.l.b16 %v422
        %v1414 = vunpack.c.h.b16 %v422
        %v1415 = vunpack.c.l.b16 %v423
        %v1416 = vunpack.c.h.b16 %v423
        %v1417 = vunpack.c.l.b16 %v424
        %v1418 = vunpack.c.l.b16 %v425
        %v1419 = vunpack.c.h.b16 %v425
        %v1420 = vunpack.c.l.b16 %v426
        %v1421 = vunpack.c.h.b16 %v426
        %v1422 = vunpack.c.l.b16 %v427
        %v1423 = vunpack.c.l.b16 %v428
        %v1424 = vunpack.c.h.b16 %v428
        %v1425 = vunpack.c.l.b16 %v429
        %v1426 = vunpack.c.h.b16 %v429
        %v1427 = vunpack.c.l.b16 %v430
        %v1428 = vunpack.c.l.b16 %v431
        %v1429 = vunpack.c.h.b16 %v431
        %v1430 = vunpack.c.l.b16 %v432
        %v1431 = vunpack.c.h.b16 %v432
        %v1432 = vunpack.c.l.b16 %v433
        %v1433 = vunpack.c.l.b16 %v434
        %v1434 = vunpack.c.h.b16 %v434
        %v1435 = vunpack.c.l.b16 %v435
        %v1436 = vunpack.c.h.b16 %v435
        %v1437 = vunpack.c.l.b16 %v436
        %v1438 = vunpack.c.l.b16 %v437
        %v1439 = vunpack.c.h.b16 %v437
        %v1440 = vunpack.c.l.b16 %v438
        %v1441 = vunpack.c.h.b16 %v438
        %v1442 = vunpack.c.l.b16 %v439
        %v1443 = vunpack.c.l.b16 %v440
        %v1444 = vunpack.c.h.b16 %v440
        %v1445 = vunpack.c.l.b16 %v441
        %v1446 = vunpack.c.h.b16 %v441
        %v1447 = vunpack.c.l.b16 %v442
        %v1448 = vunpack.c.l.b16 %v443
        %v1449 = vunpack.c.h.b16 %v443
        %v1450 = vunpack.c.l.b16 %v444
        %v1451 = vunpack.c.h.b16 %v444
        %v1452 = vunpack.c.l.b16 %v445
        %v1453 = vunpack.c.l.b16 %v446
        %v1454 = vunpack.c.h.b16 %v446
        %v1455 = vunpack.c.l.b16 %v447
        %v1456 = vunpack.c.h.b16 %v447
        %v1457 = vunpack.c.l.b16 %v448
        %v1458 = vunpack.c.l.b16 %v449
        %v1459 = vunpack.c.h.b16 %v449
        %v1460 = vunpack.c.l.b16 %v450
        %v1461 = vunpack.c.h.b16 %v450
        %v1462 = vunpack.c.l.b16 %v451
        %v1463 = vunpack.c.l.b16 %v452
        %v1464 = vunpack.c.h.b16 %v452
        %v1465 = vunpack.c.l.b16 %v453
        %v1466 = vunpack.c.h.b16 %v453
        %v1467 = vunpack.c.l.b16 %v454
        %v1468 = vunpack.c.l.b16 %v455
        %v1469 = vunpack.c.h.b16 %v455
        %v1470 = vunpack.c.l.b16 %v456
        %v1471 = vunpack.c.h.b16 %v456
        %v1472 = vunpack.c.l.b16 %v457
        %v1473 = vunpack.c.l.b16 %v458
        %v1474 = vunpack.c.h.b16 %v458
        %v1475 = vunpack.c.l.b16 %v459
        %v1476 = vunpack.c.h.b16 %v459
        %v1477 = vunpack.c.l.b16 %v460
        %v1478 = vunpack.c.l.b16 %v461
        %v1479 = vunpack.c.h.b16 %v461
        %v1480 = vunpack.c.l.b16 %v462
        %v1481 = vunpack.c.h.b16 %v462
        %v1482 = vunpack.c.l.b16 %v463
        %v1483 = vunpack.c.l.b16 %v464
        %v1484 = vunpack.c.h.b16 %v464
        %v1485 = vunpack.c.l.b16 %v465
        %v1486 = vunpack.c.h.b16 %v465
        %v1487 = vunpack.c.l.b16 %v466
        %v1488 = vunpack.c.l.b16 %v467
        %v1489 = vunpack.c.h.b16 %v467
        %v1490 = vunpack.c.l.b16 %v468
        %v1491 = vunpack.c.h.b16 %v468
        %v1492 = vunpack.c.l.b16 %v469
        %v1493 = vunpack.c.l.b16 %v470
        %v1494 = vunpack.c.h.b16 %v470
        %v1495 = vunpack.c.l.b16 %v471
        %v1496 = vunpack.c.h.b16 %v471
        %v1497 = vunpack.c.l.b16 %v472
        %v1498 = vunpack.c.l.b16 %v473
        %v1499 = vunpack.c.h.b16 %v473
        %v1500 = vunpack.c.l.b16 %v474
        %v1501 = vunpack.c.h.b16 %v474
        %v1502 = vunpack.c.l.b16 %v475
        %v1503 = vunpack.c.l.b16 %v476
        %v1504 = vunpack.c.h.b16 %v476
        %v1505 = vunpack.c.l.b16 %v477
        %v1506 = vunpack.c.h.b16 %v477
        %v1507 = vunpack.c.l.b16 %v478
        %v1508 = vunpack.c.l.b16 %v479
        %v1509 = vunpack.c.h.b16 %v479
        %v1510 = vunpack.c.l.b16 %v480
        %v1511 = vunpack.c.h.b16 %v480
        %v1512 = vunpack.c.l.b16 %v481
        %v1513 = vunpack.c.l.b16 %v482
        %v1514 = vunpack.c.h.b16 %v482
        %v1515 = vunpack.c.l.b16 %v483
        %v1516 = vunpack.c.h.b16 %v483
        %v1517 = vunpack.c.l.b16 %v484
        %v1518 = vunpack.c.l.b16 %v485
        %v1519 = vunpack.c.h.b16 %v485
        %v1520 = vunpack.c.l.b16 %v486
        %v1521 = vunpack.c.h.b16 %v486
        %v1522 = vunpack.c.l.b16 %v487
        %v1523 = vunpack.c.l.b16 %v488
        %v1524 = vunpack.c.h.b16 %v488
        %v1525 = vunpack.c.l.b16 %v489
        %v1526 = vunpack.c.h.b16 %v489
        %v1527 = vunpack.c.l.b16 %v490
        %v1528 = vunpack.c.l.b16 %v491
        %v1529 = vunpack.c.h.b16 %v491
        %v1530 = vunpack.c.l.b16 %v492
        %v1531 = vunpack.c.h.b16 %v492
        %v1532 = vunpack.c.l.b16 %v493
        %v1533 = vunpack.c.l.b16 %v494
        %v1534 = vunpack.c.h.b16 %v494
        %v1535 = vunpack.c.l.b16 %v495
        %v1536 = vunpack.c.h.b16 %v495
        %v1537 = vunpack.c.l.b16 %v496
        %v1538 = vunpack.c.l.b16 %v497
        %v1539 = vunpack.c.h.b16 %v497
        %v1540 = vunpack.c.l.b16 %v498
        %v1541 = vunpack.c.h.b16 %v498
        %v1542 = vunpack.c.l.b16 %v499
        %v1543 = vunpack.c.l.b16 %v500
        %v1544 = vunpack.c.h.b16 %v500
        %v1545 = vunpack.c.l.b16 %v501
        %v1546 = vunpack.c.h.b16 %v501
        %v1547 = vunpack.c.l.b16 %v502
        %v1548 = vunpack.c.l.b16 %v503
        %v1549 = vunpack.c.h.b16 %v503
        %v1550 = vunpack.c.l.b16 %v504
        %v1551 = vunpack.c.h.b16 %v504
        %v1552 = vunpack.c.l.b16 %v505
        %v1553 = vpack.c.b16 %v1398, %v1393
        %v1554 = vpack.c.b16 %v1399, %v1394
        %v1555 = vpack.c.b16 %v1400, %v1395
        %v1556 = vpack.c.b16 %v1401, %v1396
        %v1557 = vpack.c.b16 %v1402, %v1397
        %v1558 = vpack.c.b16 %v1408, %v1403
        %v1559 = vpack.c.b16 %v1409, %v1404
        %v1560 = vpack.c.b16 %v1410, %v1405
        %v1561 = vpack.c.b16 %v1411, %v1406
        %v1562 = vpack.c.b16 %v1412, %v1407
        %v1563 = vpack.c.b16 %v1418, %v1413
        %v1564 = vpack.c.b16 %v1419, %v1414
        %v1565 = vpack.c.b16 %v1420, %v1415
        %v1566 = vpack.c.b16 %v1421, %v1416
        %v1567 = vpack.c.b16 %v1422, %v1417
        %v1568 = vpack.c.b16 %v1428, %v1423
        %v1569 = vpack.c.b16 %v1429, %v1424
        %v1570 = vpack.c.b16 %v1430, %v1425
        %v1571 = vpack.c.b16 %v1431, %v1426
        %v1572 = vpack.c.b16 %v1432, %v1427
        %v1573 = vpack.c.b16 %v1438, %v1433
        %v1574 = vpack.c.b16 %v1439, %v1434
        %v1575 = vpack.c.b16 %v1440, %v1435
        %v1576 = vpack.c.b16 %v1441, %v1436
        %v1577 = vpack.c.b16 %v1442, %v1437
        %v1578 = vpack.c.b16 %v1448, %v1443
        %v1579 = vpack.c.b16 %v1449, %v1444
        %v1580 = vpack.c.b16 %v1450, %v1445
        %v1581 = vpack.c.b16 %v1451, %v1446
        %v1582 = vpack.c.b16 %v1452, %v1447
        %v1583 = vpack.c.b16 %v1458, %v1453
        %v1584 = vpack.c.b16 %v1459, %v1454
        %v1585 = vpack.c.b16 %v1460, %v1455
        %v1586 = vpack.c.b16 %v1461, %v1456
        %v1587 = vpack.c.b16 %v1462, %v1457
        %v1588 = vpack.c.b16 %v1468, %v1463
        %v1589 = vpack.c.b16 %v1469, %v1464
        %v1590 = vpack.c.b16 %v1470, %v1465
        %v1591 = vpack.c.b16 %v1471, %v1466
        %v1592 = vpack.c.b16 %v1472, %v1467
        %v1593 = vpack.c.b16 %v1478, %v1473
        %v1594 = vpack.c.b16 %v1479, %v1474
        %v1595 = vpack.c.b16 %v1480, %v1475
        %v1596 = vpack.c.b16 %v1481, %v1476
        %v1597 = vpack.c.b16 %v1482, %v1477
        %v1598 = vpack.c.b16 %v1488, %v1483
        %v1599 = vpack.c.b16 %v1489, %v1484
        %v1600 = vpack.c.b16 %v1490, %v1485
        %v1601 = vpack.c.b16 %v1491, %v1486
        %v1602 = vpack.c.b16 %v1492, %v1487
        %v1603 = vpack.c.b16 %v1498, %v1493
        %v1604 = vpack.c.b16 %v1499, %v1494
        %v1605 = vpack.c.b16 %v1500, %v1495
        %v1606 = vpack.c.b16 %v1501, %v1496
        %v1607 = vpack.c.b16 %v1502, %v1497
        %v1608 = vpack.c.b16 %v1508, %v1503
        %v1609 = vpack.c.b16 %v1509, %v1504
        %v1610 = vpack.c.b16 %v1510, %v1505
        %v1611 = vpack.c.b16 %v1511, %v1506
        %v1612 = vpack.c.b16 %v1512, %v1507
        %v1613 = vpack.c.b16 %v1518, %v1513
        %v1614 = vpack.c.b16 %v1519, %v1514
        %v1615 = vpack.c.b16 %v1520, %v1515
        %v1616 = vpack.c.b16 %v1521, %v1516
        %v1617 = vpack.c.b16 %v1522, %v1517
        %v1618 = vpack.c.b16 %v1528, %v1523
        %v1619 = vpack.c.b16 %v1529, %v1524
        %v1620 = vpack.c.b16 %v1530, %v1525
        %v1621 = vpack.c.b16 %v1531, %v1526
        %v1622 = vpack.c.b16 %v1532, %v1527
        %v1623 = vpack.c.b16 %v1538, %v1533
        %v1624 = vpack.c.b16 %v1539, %v1534
        %v1625 = vpack.c.b16 %v1540, %v1535
        %v1626 = vpack.c.b16 %v1541, %v1536
        %v1627 = vpack.c.b16 %v1542, %v1537
        %v1628 = vpack.c.b16 %v1548, %v1543
        %v1629 = vpack.c.b16 %v1549, %v1544
        %v1630 = vpack.c.b16 %v1550, %v1545
        %v1631 = vpack.c.b16 %v1551, %v1546
        %v1632 = vpack.c.b16 %v1552, %v1547
        %1713 = vmatprep.subr.bf16.mxu0 %v1554
        %1714 = vmatpush1.bf16.msra.mxu0 %v1553
        %1715 = vmatprep.subr.bf16.mxu0 %v1559
        %1716 = vmatpush1.bf16.msra.mxu0 %v1558
        %1717 = vmatprep.subr.bf16.mxu0 %v1564
        %1718 = vmatpush1.bf16.msra.mxu0 %v1563
        %1719 = vmatprep.subr.bf16.mxu0 %v1569
        %1720 = vmatpush1.bf16.msra.mxu0 %v1568
        %1721 = vmatprep.subr.bf16.mxu0 %v1574
        %1722 = vmatpush1.bf16.msra.mxu0 %v1573
        %1723 = vmatprep.subr.bf16.mxu0 %v1579
        %1724 = vmatpush1.bf16.msra.mxu0 %v1578
        %1725 = vmatprep.subr.bf16.mxu0 %v1584
        %1726 = vmatpush1.bf16.msra.mxu0 %v1583
        %1727 = vmatprep.subr.bf16.mxu0 %v1589
        %1728 = vmatpush1.bf16.msra.mxu0 %v1588
        %1729 = vmatprep.subr.bf16.mxu0 %v1594
        %1730 = vmatpush1.bf16.msra.mxu0 %v1593
        %1731 = vmatprep.subr.bf16.mxu0 %v1599
        %1732 = vmatpush1.bf16.msra.mxu0 %v1598
        %1733 = vmatprep.subr.bf16.mxu0 %v1604
        %1734 = vmatpush1.bf16.msra.mxu0 %v1603
        %1735 = vmatprep.subr.bf16.mxu0 %v1609
        %1736 = vmatpush1.bf16.msra.mxu0 %v1608
        %1737 = vmatprep.subr.bf16.mxu0 %v1614
        %1738 = vmatpush1.bf16.msra.mxu0 %v1613
        %1739 = vmatprep.subr.bf16.mxu0 %v1619
        %1740 = vmatpush1.bf16.msra.mxu0 %v1618
        %1741 = vmatprep.subr.bf16.mxu0 %v1624
        %1742 = vmatpush1.bf16.msra.mxu0 %v1623
        %1743 = vmatprep.subr.bf16.mxu0 %v1629
        %1744 = vmatpush1.bf16.msra.mxu0 %v1628
        %1745 = vmatprep.mubr.bf16.mxu0 %v391
        %1746 = vmatmul.mubr.bf16.gmra.mrb[0].mxu0 %v390
        %v1747 = vpop.f32.mrb[0].mxu0
        %v1748 = vadd.f32 %v1182, %v1747
        %v1749 = vpop.f32.mrb[0].mxu0
        %v1750 = vadd.f32 %v1184, %v1749
        %v1751 = vpop.f32.mrb[0].mxu0
        %v1752 = vadd.f32 %v1186, %v1751
        %v1753 = vpop.f32.mrb[0].mxu0
        %v1754 = vadd.f32 %v1188, %v1753
        %1755 = vmatprep.mubr.bf16.mxu0 %v408
        %1756 = vmatmul.mubr.bf16.gmra.mrb[0].mxu0 %v404
        %v1757 = vpop.f32.mrb[0].mxu0
        %v1758 = vadd.f32 %v1192, %v1757
        %v1759 = vpop.f32.mrb[0].mxu0
        %v1760 = vadd.f32 %v1194, %v1759
        %v1761 = vpop.f32.mrb[0].mxu0
        %v1762 = vpop.f32.mrb[0].mxu0
        %1763 = vdwg.mxu0
        %1764 = vmatprep.subr.bf16.mxu0 %v1556
        %1765 = vmatpush1.bf16.msra.mxu0 %v1555
        %1766 = vmatprep.subr.bf16.mxu0 %v1561
        %1767 = vmatpush1.bf16.msra.mxu0 %v1560
        %1768 = vmatprep.subr.bf16.mxu0 %v1566
        %1769 = vmatpush1.bf16.msra.mxu0 %v1565
        %1770 = vmatprep.subr.bf16.mxu0 %v1571
        %1771 = vmatpush1.bf16.msra.mxu0 %v1570
        %1772 = vmatprep.subr.bf16.mxu0 %v1576
        %1773 = vmatpush1.bf16.msra.mxu0 %v1575
        %1774 = vmatprep.subr.bf16.mxu0 %v1581
        %1775 = vmatpush1.bf16.msra.mxu0 %v1580
        %1776 = vmatprep.subr.bf16.mxu0 %v1586
        %1777 = vmatpush1.bf16.msra.mxu0 %v1585
        %1778 = vmatprep.subr.bf16.mxu0 %v1591
        %1779 = vmatpush1.bf16.msra.mxu0 %v1590
        %1780 = vmatprep.subr.bf16.mxu0 %v1596
        %1781 = vmatpush1.bf16.msra.mxu0 %v1595
        %1782 = vmatprep.subr.bf16.mxu0 %v1601
        %1783 = vmatpush1.bf16.msra.mxu0 %v1600
        %1784 = vmatprep.subr.bf16.mxu0 %v1606
        %1785 = vmatpush1.bf16.msra.mxu0 %v1605
        %1786 = vmatprep.subr.bf16.mxu0 %v1611
        %1787 = vmatpush1.bf16.msra.mxu0 %v1610
        %1788 = vmatprep.subr.bf16.mxu0 %v1616
        %1789 = vmatpush1.bf16.msra.mxu0 %v1615
        %1790 = vmatprep.subr.bf16.mxu0 %v1621
        %1791 = vmatpush1.bf16.msra.mxu0 %v1620
        %1792 = vmatprep.subr.bf16.mxu0 %v1626
        %1793 = vmatpush1.bf16.msra.mxu0 %v1625
        %1794 = vmatprep.subr.bf16.mxu0 %v1631
        %1795 = vmatpush1.bf16.msra.mxu0 %v1630
        %1796 = vmatprep.mubr.bf16.mxu0 %v391
        %1797 = vmatmul.mubr.bf16.gmra.mrb[0].mxu0 %v390
        %v1798 = vpop.f32.mrb[0].mxu0
        %v1799 = vadd.f32 %v1233, %v1798
        %v1800 = vpop.f32.mrb[0].mxu0
        %v1801 = vadd.f32 %v1235, %v1800
        %v1802 = vpop.f32.mrb[0].mxu0
        %v1803 = vadd.f32 %v1237, %v1802
        %v1804 = vpop.f32.mrb[0].mxu0
        %v1805 = vadd.f32 %v1239, %v1804
        %1806 = vmatprep.mubr.bf16.mxu0 %v408
        %1807 = vmatmul.mubr.bf16.gmra.mrb[0].mxu0 %v404
        %v1808 = vpop.f32.mrb[0].mxu0
        %v1809 = vadd.f32 %v1243, %v1808
        %v1810 = vpop.f32.mrb[0].mxu0
        %v1811 = vadd.f32 %v1245, %v1810
        %v1812 = vpop.f32.mrb[0].mxu0
        %v1813 = vpop.f32.mrb[0].mxu0
        %1814 = vdwg.mxu0
        %1815 = vmatprep.subr.bf16.mxu0 0
        %1816 = vmatpush1.bf16.msra.mxu0 %v1557
        %1817 = vmatprep.subr.bf16.mxu0 0
        %1818 = vmatpush1.bf16.msra.mxu0 %v1562
        %1819 = vmatprep.subr.bf16.mxu0 0
        %1820 = vmatpush1.bf16.msra.mxu0 %v1567
        %1821 = vmatprep.subr.bf16.mxu0 0
        %1822 = vmatpush1.bf16.msra.mxu0 %v1572
        %1823 = vmatprep.subr.bf16.mxu0 0
        %1824 = vmatpush1.bf16.msra.mxu0 %v1577
        %1825 = vmatprep.subr.bf16.mxu0 0
        %1826 = vmatpush1.bf16.msra.mxu0 %v1582
        %1827 = vmatprep.subr.bf16.mxu0 0
        %1828 = vmatpush1.bf16.msra.mxu0 %v1587
        %1829 = vmatprep.subr.bf16.mxu0 0
        %1830 = vmatpush1.bf16.msra.mxu0 %v1592
        %1831 = vmatprep.subr.bf16.mxu0 0
        %1832 = vmatpush1.bf16.msra.mxu0 %v1597
        %1833 = vmatprep.subr.bf16.mxu0 0
        %1834 = vmatpush1.bf16.msra.mxu0 %v1602
        %1835 = vmatprep.subr.bf16.mxu0 0
        %1836 = vmatpush1.bf16.msra.mxu0 %v1607
        %1837 = vmatprep.subr.bf16.mxu0 0
        %1838 = vmatpush1.bf16.msra.mxu0 %v1612
        %1839 = vmatprep.subr.bf16.mxu0 0
        %1840 = vmatpush1.bf16.msra.mxu0 %v1617
        %1841 = vmatprep.subr.bf16.mxu0 0
        %1842 = vmatpush1.bf16.msra.mxu0 %v1622
        %1843 = vmatprep.subr.bf16.mxu0 0
        %1844 = vmatpush1.bf16.msra.mxu0 %v1627
        %1845 = vmatprep.subr.bf16.mxu0 0
        %1846 = vmatpush1.bf16.msra.mxu0 %v1632
        %1847 = vmatprep.mubr.bf16.mxu0 %v391
        %1848 = vmatmul.mubr.bf16.gmra.mrb[0].mxu0 %v390
        %v1849 = vpop.f32.mrb[0].mxu0
        %v1850 = vadd.f32 %v1284, %v1849
        %v1851 = vpop.f32.mrb[0].mxu0
        %v1852 = vpop.f32.mrb[0].mxu0
        %v1853 = vadd.f32 %v1287, %v1852
        %v1854 = vpop.f32.mrb[0].mxu0
        %1855 = vmatprep.mubr.bf16.mxu0 %v408
        %1856 = vmatmul.mubr.bf16.gmra.mrb[0].mxu0 %v404
        %v1857 = vpop.f32.mrb[0].mxu0
        %v1858 = vadd.f32 %v1292, %v1857
        %v1859 = vpop.f32.mrb[0].mxu0
        %v1860 = vpop.f32.mrb[0].mxu0
        %v1861 = vpop.f32.mrb[0].mxu0
        %1862 = vdwg.mxu0
        %v1863 = vld [vmem:[#allocation7 + $0x280] sm:$0xff]
        %v1864 = vld [vmem:[#allocation7 + $0x288] sm:$0xff]
        %v1865 = vld [vmem:[#allocation7 + $0x290] sm:$0xf]
        %v1866 = vld [vmem:[#allocation7 + $0x294] sm:$0xff]
        %v1867 = vld [vmem:[#allocation7 + $0x29c] sm:$0xff]
        %v1868 = vld [vmem:[#allocation7 + $0x2a4] sm:$0xf]
        %v1869 = vld [vmem:[#allocation7 + $0x2a8] sm:$0xff]
        %v1870 = vld [vmem:[#allocation7 + $0x2b0] sm:$0xff]
        %v1871 = vld [vmem:[#allocation7 + $0x2b8] sm:$0xf]
        %v1872 = vld [vmem:[#allocation7 + $0x2bc] sm:$0xff]
        %v1873 = vld [vmem:[#allocation7 + $0x2c4] sm:$0xff]
        %v1874 = vld [vmem:[#allocation7 + $0x2cc] sm:$0xf]
        %v1875 = vld [vmem:[#allocation7 + $0x2d0] sm:$0xff]
        %v1876 = vld [vmem:[#allocation7 + $0x2d8] sm:$0xff]
        %v1877 = vld [vmem:[#allocation7 + $0x2e0] sm:$0xf]
        %v1878 = vld [vmem:[#allocation7 + $0x2e4] sm:$0xff]
        %v1879 = vld [vmem:[#allocation7 + $0x2ec] sm:$0xff]
        %v1880 = vld [vmem:[#allocation7 + $0x2f4] sm:$0xf]
        %v1881 = vld [vmem:[#allocation7 + $0x2f8] sm:$0xff]
        %v1882 = vld [vmem:[#allocation7 + $0x300] sm:$0xff]
        %v1883 = vld [vmem:[#allocation7 + $0x308] sm:$0xf]
        %v1884 = vld [vmem:[#allocation7 + $0x30c] sm:$0xff]
        %v1885 = vld [vmem:[#allocation7 + $0x314] sm:$0xff]
        %v1886 = vld [vmem:[#allocation7 + $0x31c] sm:$0xf]
        %v1887 = vld [vmem:[#allocation7 + $0x320] sm:$0xff]
        %v1888 = vld [vmem:[#allocation7 + $0x328] sm:$0xff]
        %v1889 = vld [vmem:[#allocation7 + $0x330] sm:$0xf]
        %v1890 = vld [vmem:[#allocation7 + $0x334] sm:$0xff]
        %v1891 = vld [vmem:[#allocation7 + $0x33c] sm:$0xff]
        %v1892 = vld [vmem:[#allocation7 + $0x344] sm:$0xf]
        %v1893 = vld [vmem:[#allocation7 + $0x348] sm:$0xff]
        %v1894 = vld [vmem:[#allocation7 + $0x350] sm:$0xff]
        %v1895 = vld [vmem:[#allocation7 + $0x358] sm:$0xf]
        %v1896 = vld [vmem:[#allocation7 + $0x35c] sm:$0xff]
        %v1897 = vld [vmem:[#allocation7 + $0x364] sm:$0xff]
        %v1898 = vld [vmem:[#allocation7 + $0x36c] sm:$0xf]
        %v1899 = vld [vmem:[#allocation7 + $0x370] sm:$0xff]
        %v1900 = vld [vmem:[#allocation7 + $0x378] sm:$0xff]
        %v1901 = vld [vmem:[#allocation7 + $0x380] sm:$0xf]
        %v1902 = vld [vmem:[#allocation7 + $0x384] sm:$0xff]
        %v1903 = vld [vmem:[#allocation7 + $0x38c] sm:$0xff]
        %v1904 = vld [vmem:[#allocation7 + $0x394] sm:$0xf]
        %v1905 = vld [vmem:[#allocation7 + $0x398] sm:$0xff]
        %v1906 = vld [vmem:[#allocation7 + $0x3a0] sm:$0xff]
        %v1907 = vld [vmem:[#allocation7 + $0x3a8] sm:$0xf]
        %v1908 = vld [vmem:[#allocation7 + $0x3ac] sm:$0xff]
        %v1909 = vld [vmem:[#allocation7 + $0x3b4] sm:$0xff]
        %v1910 = vld [vmem:[#allocation7 + $0x3bc] sm:$0xf]
        %v1911 = vld [vmem:[#allocation7 + $0x3c0] sm:$0xff]
        %v1912 = vld [vmem:[#allocation7 + $0x3c8] sm:$0xff]
        %v1913 = vld [vmem:[#allocation7 + $0x3d0] sm:$0xf]
        %v1914 = vld [vmem:[#allocation7 + $0x3d4] sm:$0xff]
        %v1915 = vld [vmem:[#allocation7 + $0x3dc] sm:$0xff]
        %v1916 = vld [vmem:[#allocation7 + $0x3e4] sm:$0xf]
        %v1917 = vld [vmem:[#allocation7 + $0x3e8] sm:$0xff]
        %v1918 = vld [vmem:[#allocation7 + $0x3f0] sm:$0xff]
        %v1919 = vld [vmem:[#allocation7 + $0x3f8] sm:$0xf]
        %v1920 = vld [vmem:[#allocation7 + $0x3fc] sm:$0xff]
        %v1921 = vld [vmem:[#allocation7 + $0x404] sm:$0xff]
        %v1922 = vld [vmem:[#allocation7 + $0x40c] sm:$0xf]
        %v1923 = vld [vmem:[#allocation7 + $0x410] sm:$0xff]
        %v1924 = vld [vmem:[#allocation7 + $0x418] sm:$0xff]
        %v1925 = vld [vmem:[#allocation7 + $0x420] sm:$0xf]
        %v1926 = vld [vmem:[#allocation7 + $0x424] sm:$0xff]
        %v1927 = vld [vmem:[#allocation7 + $0x42c] sm:$0xff]
        %v1928 = vld [vmem:[#allocation7 + $0x434] sm:$0xf]
        %v1929 = vld [vmem:[#allocation7 + $0x438] sm:$0xff]
        %v1930 = vld [vmem:[#allocation7 + $0x440] sm:$0xff]
        %v1931 = vld [vmem:[#allocation7 + $0x448] sm:$0xf]
        %v1932 = vld [vmem:[#allocation7 + $0x44c] sm:$0xff]
        %v1933 = vld [vmem:[#allocation7 + $0x454] sm:$0xff]
        %v1934 = vld [vmem:[#allocation7 + $0x45c] sm:$0xf]
        %v1935 = vld [vmem:[#allocation7 + $0x460] sm:$0xff]
        %v1936 = vld [vmem:[#allocation7 + $0x468] sm:$0xff]
        %v1937 = vld [vmem:[#allocation7 + $0x470] sm:$0xf]
        %v1938 = vld [vmem:[#allocation7 + $0x474] sm:$0xff]
        %v1939 = vld [vmem:[#allocation7 + $0x47c] sm:$0xff]
        %v1940 = vld [vmem:[#allocation7 + $0x484] sm:$0xf]
        %v1941 = vld [vmem:[#allocation7 + $0x488] sm:$0xff]
        %v1942 = vld [vmem:[#allocation7 + $0x490] sm:$0xff]
        %v1943 = vld [vmem:[#allocation7 + $0x498] sm:$0xf]
        %v1944 = vld [vmem:[#allocation7 + $0x49c] sm:$0xff]
        %v1945 = vld [vmem:[#allocation7 + $0x4a4] sm:$0xff]
        %v1946 = vld [vmem:[#allocation7 + $0x4ac] sm:$0xf]
        %v1947 = vld [vmem:[#allocation7 + $0x4b0] sm:$0xff]
        %v1948 = vld [vmem:[#allocation7 + $0x4b8] sm:$0xff]
        %v1949 = vld [vmem:[#allocation7 + $0x4c0] sm:$0xf]
        %v1950 = vld [vmem:[#allocation7 + $0x4c4] sm:$0xff]
        %v1951 = vld [vmem:[#allocation7 + $0x4cc] sm:$0xff]
        %v1952 = vld [vmem:[#allocation7 + $0x4d4] sm:$0xf]
        %v1953 = vld [vmem:[#allocation7 + $0x4d8] sm:$0xff]
        %v1954 = vld [vmem:[#allocation7 + $0x4e0] sm:$0xff]
        %v1955 = vld [vmem:[#allocation7 + $0x4e8] sm:$0xf]
        %v1956 = vld [vmem:[#allocation7 + $0x4ec] sm:$0xff]
        %v1957 = vld [vmem:[#allocation7 + $0x4f4] sm:$0xff]
        %v1958 = vld [vmem:[#allocation7 + $0x4fc] sm:$0xf]
        %v2055 = vunpack.c.l.b16 %v1863
        %v2056 = vunpack.c.h.b16 %v1863
        %v2057 = vunpack.c.l.b16 %v1864
        %v2058 = vunpack.c.h.b16 %v1864
        %v2059 = vunpack.c.l.b16 %v1865
        %v2060 = vunpack.c.l.b16 %v1866
        %v2061 = vunpack.c.h.b16 %v1866
        %v2062 = vunpack.c.l.b16 %v1867
        %v2063 = vunpack.c.h.b16 %v1867
        %v2064 = vunpack.c.l.b16 %v1868
        %v2065 = vunpack.c.l.b16 %v1869
        %v2066 = vunpack.c.h.b16 %v1869
        %v2067 = vunpack.c.l.b16 %v1870
        %v2068 = vunpack.c.h.b16 %v1870
        %v2069 = vunpack.c.l.b16 %v1871
        %v2070 = vunpack.c.l.b16 %v1872
        %v2071 = vunpack.c.h.b16 %v1872
        %v2072 = vunpack.c.l.b16 %v1873
        %v2073 = vunpack.c.h.b16 %v1873
        %v2074 = vunpack.c.l.b16 %v1874
        %v2075 = vunpack.c.l.b16 %v1875
        %v2076 = vunpack.c.h.b16 %v1875
        %v2077 = vunpack.c.l.b16 %v1876
        %v2078 = vunpack.c.h.b16 %v1876
        %v2079 = vunpack.c.l.b16 %v1877
        %v2080 = vunpack.c.l.b16 %v1878
        %v2081 = vunpack.c.h.b16 %v1878
        %v2082 = vunpack.c.l.b16 %v1879
        %v2083 = vunpack.c.h.b16 %v1879
        %v2084 = vunpack.c.l.b16 %v1880
        %v2085 = vunpack.c.l.b16 %v1881
        %v2086 = vunpack.c.h.b16 %v1881
        %v2087 = vunpack.c.l.b16 %v1882
        %v2088 = vunpack.c.h.b16 %v1882
        %v2089 = vunpack.c.l.b16 %v1883
        %v2090 = vunpack.c.l.b16 %v1884
        %v2091 = vunpack.c.h.b16 %v1884
        %v2092 = vunpack.c.l.b16 %v1885
        %v2093 = vunpack.c.h.b16 %v1885
        %v2094 = vunpack.c.l.b16 %v1886
        %v2095 = vunpack.c.l.b16 %v1887
        %v2096 = vunpack.c.h.b16 %v1887
        %v2097 = vunpack.c.l.b16 %v1888
        %v2098 = vunpack.c.h.b16 %v1888
        %v2099 = vunpack.c.l.b16 %v1889
        %v2100 = vunpack.c.l.b16 %v1890
        %v2101 = vunpack.c.h.b16 %v1890
        %v2102 = vunpack.c.l.b16 %v1891
        %v2103 = vunpack.c.h.b16 %v1891
        %v2104 = vunpack.c.l.b16 %v1892
        %v2105 = vunpack.c.l.b16 %v1893
        %v2106 = vunpack.c.h.b16 %v1893
        %v2107 = vunpack.c.l.b16 %v1894
        %v2108 = vunpack.c.h.b16 %v1894
        %v2109 = vunpack.c.l.b16 %v1895
        %v2110 = vunpack.c.l.b16 %v1896
        %v2111 = vunpack.c.h.b16 %v1896
        %v2112 = vunpack.c.l.b16 %v1897
        %v2113 = vunpack.c.h.b16 %v1897
        %v2114 = vunpack.c.l.b16 %v1898
        %v2115 = vunpack.c.l.b16 %v1899
        %v2116 = vunpack.c.h.b16 %v1899
        %v2117 = vunpack.c.l.b16 %v1900
        %v2118 = vunpack.c.h.b16 %v1900
        %v2119 = vunpack.c.l.b16 %v1901
        %v2120 = vunpack.c.l.b16 %v1902
        %v2121 = vunpack.c.h.b16 %v1902
        %v2122 = vunpack.c.l.b16 %v1903
        %v2123 = vunpack.c.h.b16 %v1903
        %v2124 = vunpack.c.l.b16 %v1904
        %v2125 = vunpack.c.l.b16 %v1905
        %v2126 = vunpack.c.h.b16 %v1905
        %v2127 = vunpack.c.l.b16 %v1906
        %v2128 = vunpack.c.h.b16 %v1906
        %v2129 = vunpack.c.l.b16 %v1907
        %v2130 = vunpack.c.l.b16 %v1908
        %v2131 = vunpack.c.h.b16 %v1908
        %v2132 = vunpack.c.l.b16 %v1909
        %v2133 = vunpack.c.h.b16 %v1909
        %v2134 = vunpack.c.l.b16 %v1910
        %v2135 = vunpack.c.l.b16 %v1911
        %v2136 = vunpack.c.h.b16 %v1911
        %v2137 = vunpack.c.l.b16 %v1912
        %v2138 = vunpack.c.h.b16 %v1912
        %v2139 = vunpack.c.l.b16 %v1913
        %v2140 = vunpack.c.l.b16 %v1914
        %v2141 = vunpack.c.h.b16 %v1914
        %v2142 = vunpack.c.l.b16 %v1915
        %v2143 = vunpack.c.h.b16 %v1915
        %v2144 = vunpack.c.l.b16 %v1916
        %v2145 = vunpack.c.l.b16 %v1917
        %v2146 = vunpack.c.h.b16 %v1917
        %v2147 = vunpack.c.l.b16 %v1918
        %v2148 = vunpack.c.h.b16 %v1918
        %v2149 = vunpack.c.l.b16 %v1919
        %v2150 = vunpack.c.l.b16 %v1920
        %v2151 = vunpack.c.h.b16 %v1920
        %v2152 = vunpack.c.l.b16 %v1921
        %v2153 = vunpack.c.h.b16 %v1921
        %v2154 = vunpack.c.l.b16 %v1922
        %v2155 = vunpack.c.l.b16 %v1923
        %v2156 = vunpack.c.h.b16 %v1923
        %v2157 = vunpack.c.l.b16 %v1924
        %v2158 = vunpack.c.h.b16 %v1924
        %v2159 = vunpack.c.l.b16 %v1925
        %v2160 = vunpack.c.l.b16 %v1926
        %v2161 = vunpack.c.h.b16 %v1926
        %v2162 = vunpack.c.l.b16 %v1927
        %v2163 = vunpack.c.h.b16 %v1927
        %v2164 = vunpack.c.l.b16 %v1928
        %v2165 = vunpack.c.l.b16 %v1929
        %v2166 = vunpack.c.h.b16 %v1929
        %v2167 = vunpack.c.l.b16 %v1930
        %v2168 = vunpack.c.h.b16 %v1930
        %v2169 = vunpack.c.l.b16 %v1931
        %v2170 = vunpack.c.l.b16 %v1932
        %v2171 = vunpack.c.h.b16 %v1932
        %v2172 = vunpack.c.l.b16 %v1933
        %v2173 = vunpack.c.h.b16 %v1933
        %v2174 = vunpack.c.l.b16 %v1934
        %v2175 = vunpack.c.l.b16 %v1935
        %v2176 = vunpack.c.h.b16 %v1935
        %v2177 = vunpack.c.l.b16 %v1936
        %v2178 = vunpack.c.h.b16 %v1936
        %v2179 = vunpack.c.l.b16 %v1937
        %v2180 = vunpack.c.l.b16 %v1938
        %v2181 = vunpack.c.h.b16 %v1938
        %v2182 = vunpack.c.l.b16 %v1939
        %v2183 = vunpack.c.h.b16 %v1939
        %v2184 = vunpack.c.l.b16 %v1940
        %v2185 = vunpack.c.l.b16 %v1941
        %v2186 = vunpack.c.h.b16 %v1941
        %v2187 = vunpack.c.l.b16 %v1942
        %v2188 = vunpack.c.h.b16 %v1942
        %v2189 = vunpack.c.l.b16 %v1943
        %v2190 = vunpack.c.l.b16 %v1944
        %v2191 = vunpack.c.h.b16 %v1944
        %v2192 = vunpack.c.l.b16 %v1945
        %v2193 = vunpack.c.h.b16 %v1945
        %v2194 = vunpack.c.l.b16 %v1946
        %v2195 = vunpack.c.l.b16 %v1947
        %v2196 = vunpack.c.h.b16 %v1947
        %v2197 = vunpack.c.l.b16 %v1948
        %v2198 = vunpack.c.h.b16 %v1948
        %v2199 = vunpack.c.l.b16 %v1949
        %v2200 = vunpack.c.l.b16 %v1950
        %v2201 = vunpack.c.h.b16 %v1950
        %v2202 = vunpack.c.l.b16 %v1951
        %v2203 = vunpack.c.h.b16 %v1951
        %v2204 = vunpack.c.l.b16 %v1952
        %v2205 = vunpack.c.l.b16 %v1953
        %v2206 = vunpack.c.h.b16 %v1953
        %v2207 = vunpack.c.l.b16 %v1954
        %v2208 = vunpack.c.h.b16 %v1954
        %v2209 = vunpack.c.l.b16 %v1955
        %v2210 = vunpack.c.l.b16 %v1956
        %v2211 = vunpack.c.h.b16 %v1956
        %v2212 = vunpack.c.l.b16 %v1957
        %v2213 = vunpack.c.h.b16 %v1957
        %v2214 = vunpack.c.l.b16 %v1958
        %v2215 = vpack.c.b16 %v2060, %v2055
        %v2216 = vpack.c.b16 %v2061, %v2056
        %v2217 = vpack.c.b16 %v2062, %v2057
        %v2218 = vpack.c.b16 %v2063, %v2058
        %v2219 = vpack.c.b16 %v2064, %v2059
        %v2220 = vpack.c.b16 %v2070, %v2065
        %v2221 = vpack.c.b16 %v2071, %v2066
        %v2222 = vpack.c.b16 %v2072, %v2067
        %v2223 = vpack.c.b16 %v2073, %v2068
        %v2224 = vpack.c.b16 %v2074, %v2069
        %v2225 = vpack.c.b16 %v2080, %v2075
        %v2226 = vpack.c.b16 %v2081, %v2076
        %v2227 = vpack.c.b16 %v2082, %v2077
        %v2228 = vpack.c.b16 %v2083, %v2078
        %v2229 = vpack.c.b16 %v2084, %v2079
        %v2230 = vpack.c.b16 %v2090, %v2085
        %v2231 = vpack.c.b16 %v2091, %v2086
        %v2232 = vpack.c.b16 %v2092, %v2087
        %v2233 = vpack.c.b16 %v2093, %v2088
        %v2234 = vpack.c.b16 %v2094, %v2089
        %v2235 = vpack.c.b16 %v2100, %v2095
        %v2236 = vpack.c.b16 %v2101, %v2096
        %v2237 = vpack.c.b16 %v2102, %v2097
        %v2238 = vpack.c.b16 %v2103, %v2098
        %v2239 = vpack.c.b16 %v2104, %v2099
        %v2240 = vpack.c.b16 %v2110, %v2105
        %v2241 = vpack.c.b16 %v2111, %v2106
        %v2242 = vpack.c.b16 %v2112, %v2107
        %v2243 = vpack.c.b16 %v2113, %v2108
        %v2244 = vpack.c.b16 %v2114, %v2109
        %v2245 = vpack.c.b16 %v2120, %v2115
        %v2246 = vpack.c.b16 %v2121, %v2116
        %v2247 = vpack.c.b16 %v2122, %v2117
        %v2248 = vpack.c.b16 %v2123, %v2118
        %v2249 = vpack.c.b16 %v2124, %v2119
        %v2250 = vpack.c.b16 %v2130, %v2125
        %v2251 = vpack.c.b16 %v2131, %v2126
        %v2252 = vpack.c.b16 %v2132, %v2127
        %v2253 = vpack.c.b16 %v2133, %v2128
        %v2254 = vpack.c.b16 %v2134, %v2129
        %v2255 = vpack.c.b16 %v2140, %v2135
        %v2256 = vpack.c.b16 %v2141, %v2136
        %v2257 = vpack.c.b16 %v2142, %v2137
        %v2258 = vpack.c.b16 %v2143, %v2138
        %v2259 = vpack.c.b16 %v2144, %v2139
        %v2260 = vpack.c.b16 %v2150, %v2145
        %v2261 = vpack.c.b16 %v2151, %v2146
        %v2262 = vpack.c.b16 %v2152, %v2147
        %v2263 = vpack.c.b16 %v2153, %v2148
        %v2264 = vpack.c.b16 %v2154, %v2149
        %v2265 = vpack.c.b16 %v2160, %v2155
        %v2266 = vpack.c.b16 %v2161, %v2156
        %v2267 = vpack.c.b16 %v2162, %v2157
        %v2268 = vpack.c.b16 %v2163, %v2158
        %v2269 = vpack.c.b16 %v2164, %v2159
        %v2270 = vpack.c.b16 %v2170, %v2165
        %v2271 = vpack.c.b16 %v2171, %v2166
        %v2272 = vpack.c.b16 %v2172, %v2167
        %v2273 = vpack.c.b16 %v2173, %v2168
        %v2274 = vpack.c.b16 %v2174, %v2169
        %v2275 = vpack.c.b16 %v2180, %v2175
        %v2276 = vpack.c.b16 %v2181, %v2176
        %v2277 = vpack.c.b16 %v2182, %v2177
        %v2278 = vpack.c.b16 %v2183, %v2178
        %v2279 = vpack.c.b16 %v2184, %v2179
        %v2280 = vpack.c.b16 %v2190, %v2185
        %v2281 = vpack.c.b16 %v2191, %v2186
        %v2282 = vpack.c.b16 %v2192, %v2187
        %v2283 = vpack.c.b16 %v2193, %v2188
        %v2284 = vpack.c.b16 %v2194, %v2189
        %v2285 = vpack.c.b16 %v2200, %v2195
        %v2286 = vpack.c.b16 %v2201, %v2196
        %v2287 = vpack.c.b16 %v2202, %v2197
        %v2288 = vpack.c.b16 %v2203, %v2198
        %v2289 = vpack.c.b16 %v2204, %v2199
        %v2290 = vpack.c.b16 %v2210, %v2205
        %v2291 = vpack.c.b16 %v2211, %v2206
        %v2292 = vpack.c.b16 %v2212, %v2207
        %v2293 = vpack.c.b16 %v2213, %v2208
        %v2294 = vpack.c.b16 %v2214, %v2209
        %2375 = vmatprep.subr.bf16.mxu0 %v2216
        %2376 = vmatpush1.bf16.msra.mxu0 %v2215
        %2377 = vmatprep.subr.bf16.mxu0 %v2221
        %2378 = vmatpush1.bf16.msra.mxu0 %v2220
        %2379 = vmatprep.subr.bf16.mxu0 %v2226
        %2380 = vmatpush1.bf16.msra.mxu0 %v2225
        %2381 = vmatprep.subr.bf16.mxu0 %v2231
        %2382 = vmatpush1.bf16.msra.mxu0 %v2230
        %2383 = vmatprep.subr.bf16.mxu0 %v2236
        %2384 = vmatpush1.bf16.msra.mxu0 %v2235
        %2385 = vmatprep.subr.bf16.mxu0 %v2241
        %2386 = vmatpush1.bf16.msra.mxu0 %v2240
        %2387 = vmatprep.subr.bf16.mxu0 %v2246
        %2388 = vmatpush1.bf16.msra.mxu0 %v2245
        %2389 = vmatprep.subr.bf16.mxu0 %v2251
        %2390 = vmatpush1.bf16.msra.mxu0 %v2250
        %2391 = vmatprep.subr.bf16.mxu0 %v2256
        %2392 = vmatpush1.bf16.msra.mxu0 %v2255
        %2393 = vmatprep.subr.bf16.mxu0 %v2261
        %2394 = vmatpush1.bf16.msra.mxu0 %v2260
        %2395 = vmatprep.subr.bf16.mxu0 %v2266
        %2396 = vmatpush1.bf16.msra.mxu0 %v2265
        %2397 = vmatprep.subr.bf16.mxu0 %v2271
        %2398 = vmatpush1.bf16.msra.mxu0 %v2270
        %2399 = vmatprep.subr.bf16.mxu0 %v2276
        %2400 = vmatpush1.bf16.msra.mxu0 %v2275
        %2401 = vmatprep.subr.bf16.mxu0 %v2281
        %2402 = vmatpush1.bf16.msra.mxu0 %v2280
        %2403 = vmatprep.subr.bf16.mxu0 %v2286
        %2404 = vmatpush1.bf16.msra.mxu0 %v2285
        %2405 = vmatprep.subr.bf16.mxu0 %v2291
        %2406 = vmatpush1.bf16.msra.mxu0 %v2290
        %2407 = vmatprep.mubr.bf16.mxu0 %v720
        %2408 = vmatmul.mubr.bf16.gmra.mrb[0].mxu0 %v709
        %v2409 = vpop.f32.mrb[0].mxu0
        %v2410 = vadd.f32 0.0, %v2409
        %v2411 = vpop.f32.mrb[0].mxu0
        %v2412 = vadd.f32 0.0, %v2411
        %v2413 = vpop.f32.mrb[0].mxu0
        %v2414 = vadd.f32 0.0, %v2413
        %v2415 = vpop.f32.mrb[0].mxu0
        %v2416 = vadd.f32 0.0, %v2415
        %2417 = vmatprep.mubr.bf16.mxu0 %v726
        %2418 = vmatmul.mubr.bf16.gmra.mrb[0].mxu0 %v723
        %v2419 = vpop.f32.mrb[0].mxu0
        %v2420 = vadd.f32 0.0, %v2419
        %v2421 = vpop.f32.mrb[0].mxu0
        %v2422 = vadd.f32 0.0, %v2421
        %v2423 = vpop.f32.mrb[0].mxu0
        %v2424 = vpop.f32.mrb[0].mxu0
        %2425 = vdwg.mxu0
        %2426 = vmatprep.subr.bf16.mxu0 %v2218
        %2427 = vmatpush1.bf16.msra.mxu0 %v2217
        %2428 = vmatprep.subr.bf16.mxu0 %v2223
        %2429 = vmatpush1.bf16.msra.mxu0 %v2222
        %2430 = vmatprep.subr.bf16.mxu0 %v2228
        %2431 = vmatpush1.bf16.msra.mxu0 %v2227
        %2432 = vmatprep.subr.bf16.mxu0 %v2233
        %2433 = vmatpush1.bf16.msra.mxu0 %v2232
        %2434 = vmatprep.subr.bf16.mxu0 %v2238
        %2435 = vmatpush1.bf16.msra.mxu0 %v2237
        %2436 = vmatprep.subr.bf16.mxu0 %v2243
        %2437 = vmatpush1.bf16.msra.mxu0 %v2242
        %2438 = vmatprep.subr.bf16.mxu0 %v2248
        %2439 = vmatpush1.bf16.msra.mxu0 %v2247
        %2440 = vmatprep.subr.bf16.mxu0 %v2253
        %2441 = vmatpush1.bf16.msra.mxu0 %v2252
        %2442 = vmatprep.subr.bf16.mxu0 %v2258
        %2443 = vmatpush1.bf16.msra.mxu0 %v2257
        %2444 = vmatprep.subr.bf16.mxu0 %v2263
        %2445 = vmatpush1.bf16.msra.mxu0 %v2262
        %2446 = vmatprep.subr.bf16.mxu0 %v2268
        %2447 = vmatpush1.bf16.msra.mxu0 %v2267
        %2448 = vmatprep.subr.bf16.mxu0 %v2273
        %2449 = vmatpush1.bf16.msra.mxu0 %v2272
        %2450 = vmatprep.subr.bf16.mxu0 %v2278
        %2451 = vmatpush1.bf16.msra.mxu0 %v2277
        %2452 = vmatprep.subr.bf16.mxu0 %v2283
        %2453 = vmatpush1.bf16.msra.mxu0 %v2282
        %2454 = vmatprep.subr.bf16.mxu0 %v2288
        %2455 = vmatpush1.bf16.msra.mxu0 %v2287
        %2456 = vmatprep.subr.bf16.mxu0 %v2293
        %2457 = vmatpush1.bf16.msra.mxu0 %v2292
        %2458 = vmatprep.mubr.bf16.mxu0 %v720
        %2459 = vmatmul.mubr.bf16.gmra.mrb[0].mxu0 %v709
        %v2460 = vpop.f32.mrb[0].mxu0
        %v2461 = vadd.f32 0.0, %v2460
        %v2462 = vpop.f32.mrb[0].mxu0
        %v2463 = vadd.f32 0.0, %v2462
        %v2464 = vpop.f32.mrb[0].mxu0
        %v2465 = vadd.f32 0.0, %v2464
        %v2466 = vpop.f32.mrb[0].mxu0
        %v2467 = vadd.f32 0.0, %v2466
        %2468 = vmatprep.mubr.bf16.mxu0 %v726
        %2469 = vmatmul.mubr.bf16.gmra.mrb[0].mxu0 %v723
        %v2470 = vpop.f32.mrb[0].mxu0
        %v2471 = vadd.f32 0.0, %v2470
        %v2472 = vpop.f32.mrb[0].mxu0
        %v2473 = vadd.f32 0.0, %v2472
        %v2474 = vpop.f32.mrb[0].mxu0
        %v2475 = vpop.f32.mrb[0].mxu0
        %2476 = vdwg.mxu0
        %2477 = vmatprep.subr.bf16.mxu0 0
        %2478 = vmatpush1.bf16.msra.mxu0 %v2219
        %2479 = vmatprep.subr.bf16.mxu0 0
        %2480 = vmatpush1.bf16.msra.mxu0 %v2224
        %2481 = vmatprep.subr.bf16.mxu0 0
        %2482 = vmatpush1.bf16.msra.mxu0 %v2229
        %2483 = vmatprep.subr.bf16.mxu0 0
        %2484 = vmatpush1.bf16.msra.mxu0 %v2234
        %2485 = vmatprep.subr.bf16.mxu0 0
        %2486 = vmatpush1.bf16.msra.mxu0 %v2239
        %2487 = vmatprep.subr.bf16.mxu0 0
        %2488 = vmatpush1.bf16.msra.mxu0 %v2244
        %2489 = vmatprep.subr.bf16.mxu0 0
        %2490 = vmatpush1.bf16.msra.mxu0 %v2249
        %2491 = vmatprep.subr.bf16.mxu0 0
        %2492 = vmatpush1.bf16.msra.mxu0 %v2254
        %2493 = vmatprep.subr.bf16.mxu0 0
        %2494 = vmatpush1.bf16.msra.mxu0 %v2259
        %2495 = vmatprep.subr.bf16.mxu0 0
        %2496 = vmatpush1.bf16.msra.mxu0 %v2264
        %2497 = vmatprep.subr.bf16.mxu0 0
        %2498 = vmatpush1.bf16.msra.mxu0 %v2269
        %2499 = vmatprep.subr.bf16.mxu0 0
        %2500 = vmatpush1.bf16.msra.mxu0 %v2274
        %2501 = vmatprep.subr.bf16.mxu0 0
        %2502 = vmatpush1.bf16.msra.mxu0 %v2279
        %2503 = vmatprep.subr.bf16.mxu0 0
        %2504 = vmatpush1.bf16.msra.mxu0 %v2284
        %2505 = vmatprep.subr.bf16.mxu0 0
        %2506 = vmatpush1.bf16.msra.mxu0 %v2289
        %2507 = vmatprep.subr.bf16.mxu0 0
        %2508 = vmatpush1.bf16.msra.mxu0 %v2294
        %2509 = vmatprep.mubr.bf16.mxu0 %v720
        %2510 = vmatmul.mubr.bf16.gmra.mrb[0].mxu0 %v709
        %v2511 = vpop.f32.mrb[0].mxu0
        %v2512 = vadd.f32 0.0, %v2511
        %v2513 = vpop.f32.mrb[0].mxu0
        %v2514 = vpop.f32.mrb[0].mxu0
        %v2515 = vadd.f32 0.0, %v2514
        %v2516 = vpop.f32.mrb[0].mxu0
        %2517 = vmatprep.mubr.bf16.mxu0 %v726
        %2518 = vmatmul.mubr.bf16.gmra.mrb[0].mxu0 %v723
        %v2519 = vpop.f32.mrb[0].mxu0
        %v2520 = vadd.f32 0.0, %v2519
        %v2521 = vpop.f32.mrb[0].mxu0
        %v2522 = vpop.f32.mrb[0].mxu0
        %v2523 = vpop.f32.mrb[0].mxu0
        %2524 = vdwg.mxu0
        %v2621 = vunpack.c.l.b16 %v506
        %v2622 = vunpack.c.h.b16 %v506
        %v2623 = vunpack.c.l.b16 %v507
        %v2624 = vunpack.c.h.b16 %v507
        %v2625 = vunpack.c.l.b16 %v508
        %v2626 = vunpack.c.l.b16 %v509
        %v2627 = vunpack.c.h.b16 %v509
        %v2628 = vunpack.c.l.b16 %v510
        %v2629 = vunpack.c.h.b16 %v510
        %v2630 = vunpack.c.l.b16 %v511
        %v2631 = vunpack.c.l.b16 %v512
        %v2632 = vunpack.c.h.b16 %v512
        %v2633 = vunpack.c.l.b16 %v513
        %v2634 = vunpack.c.h.b16 %v513
        %v2635 = vunpack.c.l.b16 %v514
        %v2636 = vunpack.c.l.b16 %v515
        %v2637 = vunpack.c.h.b16 %v515
        %v2638 = vunpack.c.l.b16 %v516
        %v2639 = vunpack.c.h.b16 %v516
        %v2640 = vunpack.c.l.b16 %v517
        %v2641 = vunpack.c.l.b16 %v518
        %v2642 = vunpack.c.h.b16 %v518
        %v2643 = vunpack.c.l.b16 %v519
        %v2644 = vunpack.c.h.b16 %v519
        %v2645 = vunpack.c.l.b16 %v520
        %v2646 = vunpack.c.l.b16 %v521
        %v2647 = vunpack.c.h.b16 %v521
        %v2648 = vunpack.c.l.b16 %v522
        %v2649 = vunpack.c.h.b16 %v522
        %v2650 = vunpack.c.l.b16 %v523
        %v2651 = vunpack.c.l.b16 %v524
        %v2652 = vunpack.c.h.b16 %v524
        %v2653 = vunpack.c.l.b16 %v525
        %v2654 = vunpack.c.h.b16 %v525
        %v2655 = vunpack.c.l.b16 %v526
        %v2656 = vunpack.c.l.b16 %v527
        %v2657 = vunpack.c.h.b16 %v527
        %v2658 = vunpack.c.l.b16 %v528
        %v2659 = vunpack.c.h.b16 %v528
        %v2660 = vunpack.c.l.b16 %v529
        %v2661 = vunpack.c.l.b16 %v530
        %v2662 = vunpack.c.h.b16 %v530
        %v2663 = vunpack.c.l.b16 %v531
        %v2664 = vunpack.c.h.b16 %v531
        %v2665 = vunpack.c.l.b16 %v532
        %v2666 = vunpack.c.l.b16 %v533
        %v2667 = vunpack.c.h.b16 %v533
        %v2668 = vunpack.c.l.b16 %v534
        %v2669 = vunpack.c.h.b16 %v534
        %v2670 = vunpack.c.l.b16 %v535
        %v2671 = vunpack.c.l.b16 %v536
        %v2672 = vunpack.c.h.b16 %v536
        %v2673 = vunpack.c.l.b16 %v537
        %v2674 = vunpack.c.h.b16 %v537
        %v2675 = vunpack.c.l.b16 %v538
        %v2676 = vunpack.c.l.b16 %v539
        %v2677 = vunpack.c.h.b16 %v539
        %v2678 = vunpack.c.l.b16 %v540
        %v2679 = vunpack.c.h.b16 %v540
        %v2680 = vunpack.c.l.b16 %v541
        %v2681 = vunpack.c.l.b16 %v542
        %v2682 = vunpack.c.h.b16 %v542
        %v2683 = vunpack.c.l.b16 %v543
        %v2684 = vunpack.c.h.b16 %v543
        %v2685 = vunpack.c.l.b16 %v544
        %v2686 = vunpack.c.l.b16 %v545
        %v2687 = vunpack.c.h.b16 %v545
        %v2688 = vunpack.c.l.b16 %v546
        %v2689 = vunpack.c.h.b16 %v546
        %v2690 = vunpack.c.l.b16 %v547
        %v2691 = vunpack.c.l.b16 %v548
        %v2692 = vunpack.c.h.b16 %v548
        %v2693 = vunpack.c.l.b16 %v549
        %v2694 = vunpack.c.h.b16 %v549
        %v2695 = vunpack.c.l.b16 %v550
        %v2696 = vunpack.c.l.b16 %v551
        %v2697 = vunpack.c.h.b16 %v551
        %v2698 = vunpack.c.l.b16 %v552
        %v2699 = vunpack.c.h.b16 %v552
        %v2700 = vunpack.c.l.b16 %v553
        %v2701 = vunpack.c.l.b16 %v554
        %v2702 = vunpack.c.h.b16 %v554
        %v2703 = vunpack.c.l.b16 %v555
        %v2704 = vunpack.c.h.b16 %v555
        %v2705 = vunpack.c.l.b16 %v556
        %v2706 = vunpack.c.l.b16 %v557
        %v2707 = vunpack.c.h.b16 %v557
        %v2708 = vunpack.c.l.b16 %v558
        %v2709 = vunpack.c.h.b16 %v558
        %v2710 = vunpack.c.l.b16 %v559
        %v2711 = vunpack.c.l.b16 %v560
        %v2712 = vunpack.c.h.b16 %v560
        %v2713 = vunpack.c.l.b16 %v561
        %v2714 = vunpack.c.h.b16 %v561
        %v2715 = vunpack.c.l.b16 %v562
        %v2716 = vunpack.c.l.b16 %v563
        %v2717 = vunpack.c.h.b16 %v563
        %v2718 = vunpack.c.l.b16 %v564
        %v2719 = vunpack.c.h.b16 %v564
        %v2720 = vunpack.c.l.b16 %v565
        %v2721 = vunpack.c.l.b16 %v566
        %v2722 = vunpack.c.h.b16 %v566
        %v2723 = vunpack.c.l.b16 %v567
        %v2724 = vunpack.c.h.b16 %v567
        %v2725 = vunpack.c.l.b16 %v568
        %v2726 = vunpack.c.l.b16 %v569
        %v2727 = vunpack.c.h.b16 %v569
        %v2728 = vunpack.c.l.b16 %v570
        %v2729 = vunpack.c.h.b16 %v570
        %v2730 = vunpack.c.l.b16 %v571
        %v2731 = vunpack.c.l.b16 %v572
        %v2732 = vunpack.c.h.b16 %v572
        %v2733 = vunpack.c.l.b16 %v573
        %v2734 = vunpack.c.h.b16 %v573
        %v2735 = vunpack.c.l.b16 %v574
        %v2736 = vunpack.c.l.b16 %v575
        %v2737 = vunpack.c.h.b16 %v575
        %v2738 = vunpack.c.l.b16 %v576
        %v2739 = vunpack.c.h.b16 %v576
        %v2740 = vunpack.c.l.b16 %v577
        %v2741 = vunpack.c.l.b16 %v578
        %v2742 = vunpack.c.h.b16 %v578
        %v2743 = vunpack.c.l.b16 %v579
        %v2744 = vunpack.c.h.b16 %v579
        %v2745 = vunpack.c.l.b16 %v580
        %v2746 = vunpack.c.l.b16 %v581
        %v2747 = vunpack.c.h.b16 %v581
        %v2748 = vunpack.c.l.b16 %v582
        %v2749 = vunpack.c.h.b16 %v582
        %v2750 = vunpack.c.l.b16 %v583
        %v2751 = vunpack.c.l.b16 %v584
        %v2752 = vunpack.c.h.b16 %v584
        %v2753 = vunpack.c.l.b16 %v585
        %v2754 = vunpack.c.h.b16 %v585
        %v2755 = vunpack.c.l.b16 %v586
        %v2756 = vunpack.c.l.b16 %v587
        %v2757 = vunpack.c.h.b16 %v587
        %v2758 = vunpack.c.l.b16 %v588
        %v2759 = vunpack.c.h.b16 %v588
        %v2760 = vunpack.c.l.b16 %v589
        %v2761 = vunpack.c.l.b16 %v590
        %v2762 = vunpack.c.h.b16 %v590
        %v2763 = vunpack.c.l.b16 %v591
        %v2764 = vunpack.c.h.b16 %v591
        %v2765 = vunpack.c.l.b16 %v592
        %v2766 = vunpack.c.l.b16 %v593
        %v2767 = vunpack.c.h.b16 %v593
        %v2768 = vunpack.c.l.b16 %v594
        %v2769 = vunpack.c.h.b16 %v594
        %v2770 = vunpack.c.l.b16 %v595
        %v2771 = vunpack.c.l.b16 %v596
        %v2772 = vunpack.c.h.b16 %v596
        %v2773 = vunpack.c.l.b16 %v597
        %v2774 = vunpack.c.h.b16 %v597
        %v2775 = vunpack.c.l.b16 %v598
        %v2776 = vunpack.c.l.b16 %v599
        %v2777 = vunpack.c.h.b16 %v599
        %v2778 = vunpack.c.l.b16 %v600
        %v2779 = vunpack.c.h.b16 %v600
        %v2780 = vunpack.c.l.b16 %v601
        %v2781 = vpack.c.b16 %v2626, %v2621
        %v2782 = vpack.c.b16 %v2627, %v2622
        %v2783 = vpack.c.b16 %v2628, %v2623
        %v2784 = vpack.c.b16 %v2629, %v2624
        %v2785 = vpack.c.b16 %v2630, %v2625
        %v2786 = vpack.c.b16 %v2636, %v2631
        %v2787 = vpack.c.b16 %v2637, %v2632
        %v2788 = vpack.c.b16 %v2638, %v2633
        %v2789 = vpack.c.b16 %v2639, %v2634
        %v2790 = vpack.c.b16 %v2640, %v2635
        %v2791 = vpack.c.b16 %v2646, %v2641
        %v2792 = vpack.c.b16 %v2647, %v2642
        %v2793 = vpack.c.b16 %v2648, %v2643
        %v2794 = vpack.c.b16 %v2649, %v2644
        %v2795 = vpack.c.b16 %v2650, %v2645
        %v2796 = vpack.c.b16 %v2656, %v2651
        %v2797 = vpack.c.b16 %v2657, %v2652
        %v2798 = vpack.c.b16 %v2658, %v2653
        %v2799 = vpack.c.b16 %v2659, %v2654
        %v2800 = vpack.c.b16 %v2660, %v2655
        %v2801 = vpack.c.b16 %v2666, %v2661
        %v2802 = vpack.c.b16 %v2667, %v2662
        %v2803 = vpack.c.b16 %v2668, %v2663
        %v2804 = vpack.c.b16 %v2669, %v2664
        %v2805 = vpack.c.b16 %v2670, %v2665
        %v2806 = vpack.c.b16 %v2676, %v2671
        %v2807 = vpack.c.b16 %v2677, %v2672
        %v2808 = vpack.c.b16 %v2678, %v2673
        %v2809 = vpack.c.b16 %v2679, %v2674
        %v2810 = vpack.c.b16 %v2680, %v2675
        %v2811 = vpack.c.b16 %v2686, %v2681
        %v2812 = vpack.c.b16 %v2687, %v2682
        %v2813 = vpack.c.b16 %v2688, %v2683
        %v2814 = vpack.c.b16 %v2689, %v2684
        %v2815 = vpack.c.b16 %v2690, %v2685
        %v2816 = vpack.c.b16 %v2696, %v2691
        %v2817 = vpack.c.b16 %v2697, %v2692
        %v2818 = vpack.c.b16 %v2698, %v2693
        %v2819 = vpack.c.b16 %v2699, %v2694
        %v2820 = vpack.c.b16 %v2700, %v2695
        %v2821 = vpack.c.b16 %v2706, %v2701
        %v2822 = vpack.c.b16 %v2707, %v2702
        %v2823 = vpack.c.b16 %v2708, %v2703
        %v2824 = vpack.c.b16 %v2709, %v2704
        %v2825 = vpack.c.b16 %v2710, %v2705
        %v2826 = vpack.c.b16 %v2716, %v2711
        %v2827 = vpack.c.b16 %v2717, %v2712
        %v2828 = vpack.c.b16 %v2718, %v2713
        %v2829 = vpack.c.b16 %v2719, %v2714
        %v2830 = vpack.c.b16 %v2720, %v2715
        %v2831 = vpack.c.b16 %v2726, %v2721
        %v2832 = vpack.c.b16 %v2727, %v2722
        %v2833 = vpack.c.b16 %v2728, %v2723
        %v2834 = vpack.c.b16 %v2729, %v2724
        %v2835 = vpack.c.b16 %v2730, %v2725
        %v2836 = vpack.c.b16 %v2736, %v2731
        %v2837 = vpack.c.b16 %v2737, %v2732
        %v2838 = vpack.c.b16 %v2738, %v2733
        %v2839 = vpack.c.b16 %v2739, %v2734
        %v2840 = vpack.c.b16 %v2740, %v2735
        %v2841 = vpack.c.b16 %v2746, %v2741
        %v2842 = vpack.c.b16 %v2747, %v2742
        %v2843 = vpack.c.b16 %v2748, %v2743
        %v2844 = vpack.c.b16 %v2749, %v2744
        %v2845 = vpack.c.b16 %v2750, %v2745
        %v2846 = vpack.c.b16 %v2756, %v2751
        %v2847 = vpack.c.b16 %v2757, %v2752
        %v2848 = vpack.c.b16 %v2758, %v2753
        %v2849 = vpack.c.b16 %v2759, %v2754
        %v2850 = vpack.c.b16 %v2760, %v2755
        %v2851 = vpack.c.b16 %v2766, %v2761
        %v2852 = vpack.c.b16 %v2767, %v2762
        %v2853 = vpack.c.b16 %v2768, %v2763
        %v2854 = vpack.c.b16 %v2769, %v2764
        %v2855 = vpack.c.b16 %v2770, %v2765
        %v2856 = vpack.c.b16 %v2776, %v2771
        %v2857 = vpack.c.b16 %v2777, %v2772
        %v2858 = vpack.c.b16 %v2778, %v2773
        %v2859 = vpack.c.b16 %v2779, %v2774
        %v2860 = vpack.c.b16 %v2780, %v2775
        %2941 = vmatprep.subr.bf16.mxu0 %v2782
        %2942 = vmatpush1.bf16.msra.mxu0 %v2781
        %2943 = vmatprep.subr.bf16.mxu0 %v2787
        %2944 = vmatpush1.bf16.msra.mxu0 %v2786
        %2945 = vmatprep.subr.bf16.mxu0 %v2792
        %2946 = vmatpush1.bf16.msra.mxu0 %v2791
        %2947 = vmatprep.subr.bf16.mxu0 %v2797
        %2948 = vmatpush1.bf16.msra.mxu0 %v2796
        %2949 = vmatprep.subr.bf16.mxu0 %v2802
        %2950 = vmatpush1.bf16.msra.mxu0 %v2801
        %2951 = vmatprep.subr.bf16.mxu0 %v2807
        %2952 = vmatpush1.bf16.msra.mxu0 %v2806
        %2953 = vmatprep.subr.bf16.mxu0 %v2812
        %2954 = vmatpush1.bf16.msra.mxu0 %v2811
        %2955 = vmatprep.subr.bf16.mxu0 %v2817
        %2956 = vmatpush1.bf16.msra.mxu0 %v2816
        %2957 = vmatprep.subr.bf16.mxu0 %v2822
        %2958 = vmatpush1.bf16.msra.mxu0 %v2821
        %2959 = vmatprep.subr.bf16.mxu0 %v2827
        %2960 = vmatpush1.bf16.msra.mxu0 %v2826
        %2961 = vmatprep.subr.bf16.mxu0 %v2832
        %2962 = vmatpush1.bf16.msra.mxu0 %v2831
        %2963 = vmatprep.subr.bf16.mxu0 %v2837
        %2964 = vmatpush1.bf16.msra.mxu0 %v2836
        %2965 = vmatprep.subr.bf16.mxu0 %v2842
        %2966 = vmatpush1.bf16.msra.mxu0 %v2841
        %2967 = vmatprep.subr.bf16.mxu0 %v2847
        %2968 = vmatpush1.bf16.msra.mxu0 %v2846
        %2969 = vmatprep.subr.bf16.mxu0 %v2852
        %2970 = vmatpush1.bf16.msra.mxu0 %v2851
        %2971 = vmatprep.subr.bf16.mxu0 %v2857
        %2972 = vmatpush1.bf16.msra.mxu0 %v2856
        %2973 = vmatprep.mubr.bf16.mxu0 %v391
        %2974 = vmatmul.mubr.bf16.gmra.mrb[0].mxu0 %v390
        %v2975 = vpop.f32.mrb[0].mxu0
        %v2976 = vadd.f32 %v2410, %v2975
        %v2977 = vpop.f32.mrb[0].mxu0
        %v2978 = vadd.f32 %v2412, %v2977
        %v2979 = vpop.f32.mrb[0].mxu0
        %v2980 = vadd.f32 %v2414, %v2979
        %v2981 = vpop.f32.mrb[0].mxu0
        %v2982 = vadd.f32 %v2416, %v2981
        %2983 = vmatprep.mubr.bf16.mxu0 %v408
        %2984 = vmatmul.mubr.bf16.gmra.mrb[0].mxu0 %v404
        %v2985 = vpop.f32.mrb[0].mxu0
        %v2986 = vadd.f32 %v2420, %v2985
        %v2987 = vpop.f32.mrb[0].mxu0
        %v2988 = vadd.f32 %v2422, %v2987
        %v2989 = vpop.f32.mrb[0].mxu0
        %v2990 = vpop.f32.mrb[0].mxu0
        %2991 = vdwg.mxu0
        %2992 = vmatprep.subr.bf16.mxu0 %v2784
        %2993 = vmatpush1.bf16.msra.mxu0 %v2783
        %2994 = vmatprep.subr.bf16.mxu0 %v2789
        %2995 = vmatpush1.bf16.msra.mxu0 %v2788
        %2996 = vmatprep.subr.bf16.mxu0 %v2794
        %2997 = vmatpush1.bf16.msra.mxu0 %v2793
        %2998 = vmatprep.subr.bf16.mxu0 %v2799
        %2999 = vmatpush1.bf16.msra.mxu0 %v2798
        %3000 = vmatprep.subr.bf16.mxu0 %v2804
        %3001 = vmatpush1.bf16.msra.mxu0 %v2803
        %3002 = vmatprep.subr.bf16.mxu0 %v2809
        %3003 = vmatpush1.bf16.msra.mxu0 %v2808
        %3004 = vmatprep.subr.bf16.mxu0 %v2814
        %3005 = vmatpush1.bf16.msra.mxu0 %v2813
        %3006 = vmatprep.subr.bf16.mxu0 %v2819
        %3007 = vmatpush1.bf16.msra.mxu0 %v2818
        %3008 = vmatprep.subr.bf16.mxu0 %v2824
        %3009 = vmatpush1.bf16.msra.mxu0 %v2823
        %3010 = vmatprep.subr.bf16.mxu0 %v2829
        %3011 = vmatpush1.bf16.msra.mxu0 %v2828
        %3012 = vmatprep.subr.bf16.mxu0 %v2834
        %3013 = vmatpush1.bf16.msra.mxu0 %v2833
        %3014 = vmatprep.subr.bf16.mxu0 %v2839
        %3015 = vmatpush1.bf16.msra.mxu0 %v2838
        %3016 = vmatprep.subr.bf16.mxu0 %v2844
        %3017 = vmatpush1.bf16.msra.mxu0 %v2843
        %3018 = vmatprep.subr.bf16.mxu0 %v2849
        %3019 = vmatpush1.bf16.msra.mxu0 %v2848
        %3020 = vmatprep.subr.bf16.mxu0 %v2854
        %3021 = vmatpush1.bf16.msra.mxu0 %v2853
        %3022 = vmatprep.subr.bf16.mxu0 %v2859
        %3023 = vmatpush1.bf16.msra.mxu0 %v2858
        %3024 = vmatprep.mubr.bf16.mxu0 %v391
        %3025 = vmatmul.mubr.bf16.gmra.mrb[0].mxu0 %v390
        %v3026 = vpop.f32.mrb[0].mxu0
        %v3027 = vadd.f32 %v2461, %v3026
        %v3028 = vpop.f32.mrb[0].mxu0
        %v3029 = vadd.f32 %v2463, %v3028
        %v3030 = vpop.f32.mrb[0].mxu0
        %v3031 = vadd.f32 %v2465, %v3030
        %v3032 = vpop.f32.mrb[0].mxu0
        %v3033 = vadd.f32 %v2467, %v3032
        %3034 = vmatprep.mubr.bf16.mxu0 %v408
        %3035 = vmatmul.mubr.bf16.gmra.mrb[0].mxu0 %v404
        %v3036 = vpop.f32.mrb[0].mxu0
        %v3037 = vadd.f32 %v2471, %v3036
        %v3038 = vpop.f32.mrb[0].mxu0
        %v3039 = vadd.f32 %v2473, %v3038
        %v3040 = vpop.f32.mrb[0].mxu0
        %v3041 = vpop.f32.mrb[0].mxu0
        %3042 = vdwg.mxu0
        %3043 = vmatprep.subr.bf16.mxu0 0
        %3044 = vmatpush1.bf16.msra.mxu0 %v2785
        %3045 = vmatprep.subr.bf16.mxu0 0
        %3046 = vmatpush1.bf16.msra.mxu0 %v2790
        %3047 = vmatprep.subr.bf16.mxu0 0
        %3048 = vmatpush1.bf16.msra.mxu0 %v2795
        %3049 = vmatprep.subr.bf16.mxu0 0
        %3050 = vmatpush1.bf16.msra.mxu0 %v2800
        %3051 = vmatprep.subr.bf16.mxu0 0
        %3052 = vmatpush1.bf16.msra.mxu0 %v2805
        %3053 = vmatprep.subr.bf16.mxu0 0
        %3054 = vmatpush1.bf16.msra.mxu0 %v2810
        %3055 = vmatprep.subr.bf16.mxu0 0
        %3056 = vmatpush1.bf16.msra.mxu0 %v2815
        %3057 = vmatprep.subr.bf16.mxu0 0
        %3058 = vmatpush1.bf16.msra.mxu0 %v2820
        %3059 = vmatprep.subr.bf16.mxu0 0
        %3060 = vmatpush1.bf16.msra.mxu0 %v2825
        %3061 = vmatprep.subr.bf16.mxu0 0
        %3062 = vmatpush1.bf16.msra.mxu0 %v2830
        %3063 = vmatprep.subr.bf16.mxu0 0
        %3064 = vmatpush1.bf16.msra.mxu0 %v2835
        %3065 = vmatprep.subr.bf16.mxu0 0
        %3066 = vmatpush1.bf16.msra.mxu0 %v2840
        %3067 = vmatprep.subr.bf16.mxu0 0
        %3068 = vmatpush1.bf16.msra.mxu0 %v2845
        %3069 = vmatprep.subr.bf16.mxu0 0
        %3070 = vmatpush1.bf16.msra.mxu0 %v2850
        %3071 = vmatprep.subr.bf16.mxu0 0
        %3072 = vmatpush1.bf16.msra.mxu0 %v2855
        %3073 = vmatprep.subr.bf16.mxu0 0
        %3074 = vmatpush1.bf16.msra.mxu0 %v2860
        %3075 = vmatprep.mubr.bf16.mxu0 %v391
        %3076 = vmatmul.mubr.bf16.gmra.mrb[0].mxu0 %v390
        %v3077 = vpop.f32.mrb[0].mxu0
        %v3078 = vadd.f32 %v2512, %v3077
        %v3079 = vpop.f32.mrb[0].mxu0
        %v3080 = vpop.f32.mrb[0].mxu0
        %v3081 = vadd.f32 %v2515, %v3080
        %v3082 = vpop.f32.mrb[0].mxu0
        %3083 = vmatprep.mubr.bf16.mxu0 %v408
        %3084 = vmatmul.mubr.bf16.gmra.mrb[0].mxu0 %v404
        %v3085 = vpop.f32.mrb[0].mxu0
        %v3086 = vadd.f32 %v2520, %v3085
        %v3087 = vpop.f32.mrb[0].mxu0
        %v3088 = vpop.f32.mrb[0].mxu0
        %v3089 = vpop.f32.mrb[0].mxu0
        %3090 = vdwg.mxu0
        %v3091 = vld [vmem:[#allocation6 + $0x500] sm:$0xff]
        %v3092 = vld [vmem:[#allocation6 + $0x508] sm:$0xff]
        %v3093 = vld [vmem:[#allocation6 + $0x510] sm:$0xf]
        %v3094 = vld [vmem:[#allocation6 + $0x514] sm:$0xff]
        %v3095 = vld [vmem:[#allocation6 + $0x51c] sm:$0xff]
        %v3096 = vld [vmem:[#allocation6 + $0x524] sm:$0xf]
        %v3097 = vld [vmem:[#allocation6 + $0x528] sm:$0xff]
        %v3098 = vld [vmem:[#allocation6 + $0x530] sm:$0xff]
        %v3099 = vld [vmem:[#allocation6 + $0x538] sm:$0xf]
        %v3100 = vld [vmem:[#allocation6 + $0x53c] sm:$0xff]
        %v3101 = vld [vmem:[#allocation6 + $0x544] sm:$0xff]
        %v3102 = vld [vmem:[#allocation6 + $0x54c] sm:$0xf]
        %v3103 = vld [vmem:[#allocation6 + $0x550] sm:$0xff]
        %v3104 = vld [vmem:[#allocation6 + $0x558] sm:$0xff]
        %v3105 = vld [vmem:[#allocation6 + $0x560] sm:$0xf]
        %v3106 = vld [vmem:[#allocation6 + $0x564] sm:$0xff]
        %v3107 = vld [vmem:[#allocation6 + $0x56c] sm:$0xff]
        %v3108 = vld [vmem:[#allocation6 + $0x574] sm:$0xf]
        %v3109 = vld [vmem:[#allocation6 + $0x578] sm:$0xff]
        %v3110 = vld [vmem:[#allocation6 + $0x580] sm:$0xff]
        %v3111 = vld [vmem:[#allocation6 + $0x588] sm:$0xf]
        %v3112 = vld [vmem:[#allocation6 + $0x58c] sm:$0xff]
        %v3113 = vld [vmem:[#allocation6 + $0x594] sm:$0xff]
        %v3114 = vld [vmem:[#allocation6 + $0x59c] sm:$0xf]
        %v3115 = vld [vmem:[#allocation6 + $0x5a0] sm:$0xff]
        %v3116 = vld [vmem:[#allocation6 + $0x5a8] sm:$0xff]
        %v3117 = vld [vmem:[#allocation6 + $0x5b0] sm:$0xf]
        %v3118 = vld [vmem:[#allocation6 + $0x5b4] sm:$0xff]
        %v3119 = vld [vmem:[#allocation6 + $0x5bc] sm:$0xff]
        %v3120 = vld [vmem:[#allocation6 + $0x5c4] sm:$0xf]
        %v3121 = vld [vmem:[#allocation6 + $0x5c8] sm:$0xff]
        %v3122 = vld [vmem:[#allocation6 + $0x5d0] sm:$0xff]
        %v3123 = vld [vmem:[#allocation6 + $0x5d8] sm:$0xf]
        %v3124 = vld [vmem:[#allocation6 + $0x5dc] sm:$0xff]
        %v3125 = vld [vmem:[#allocation6 + $0x5e4] sm:$0xff]
        %v3126 = vld [vmem:[#allocation6 + $0x5ec] sm:$0xf]
        %v3127 = vld [vmem:[#allocation6 + $0x5f0] sm:$0xff]
        %v3128 = vld [vmem:[#allocation6 + $0x5f8] sm:$0xff]
        %v3129 = vld [vmem:[#allocation6 + $0x600] sm:$0xf]
        %v3130 = vld [vmem:[#allocation6 + $0x604] sm:$0xff]
        %v3131 = vld [vmem:[#allocation6 + $0x60c] sm:$0xff]
        %v3132 = vld [vmem:[#allocation6 + $0x614] sm:$0xf]
        %v3133 = vld [vmem:[#allocation6 + $0x618] sm:$0xff]
        %v3134 = vld [vmem:[#allocation6 + $0x620] sm:$0xff]
        %v3135 = vld [vmem:[#allocation6 + $0x628] sm:$0xf]
        %v3136 = vld [vmem:[#allocation6 + $0x62c] sm:$0xff]
        %v3137 = vld [vmem:[#allocation6 + $0x634] sm:$0xff]
        %v3138 = vld [vmem:[#allocation6 + $0x63c] sm:$0xf]
        %v3139 = vld [vmem:[#allocation6 + $0x640] sm:$0xff]
        %v3140 = vld [vmem:[#allocation6 + $0x648] sm:$0xff]
        %v3141 = vld [vmem:[#allocation6 + $0x650] sm:$0xf]
        %v3142 = vld [vmem:[#allocation6 + $0x654] sm:$0xff]
        %v3143 = vld [vmem:[#allocation6 + $0x65c] sm:$0xff]
        %v3144 = vld [vmem:[#allocation6 + $0x664] sm:$0xf]
        %v3145 = vld [vmem:[#allocation6 + $0x668] sm:$0xff]
        %v3146 = vld [vmem:[#allocation6 + $0x670] sm:$0xff]
        %v3147 = vld [vmem:[#allocation6 + $0x678] sm:$0xf]
        %v3148 = vld [vmem:[#allocation6 + $0x67c] sm:$0xff]
        %v3149 = vld [vmem:[#allocation6 + $0x684] sm:$0xff]
        %v3150 = vld [vmem:[#allocation6 + $0x68c] sm:$0xf]
        %v3151 = vld [vmem:[#allocation6 + $0x690] sm:$0xff]
        %v3152 = vld [vmem:[#allocation6 + $0x698] sm:$0xff]
        %v3153 = vld [vmem:[#allocation6 + $0x6a0] sm:$0xf]
        %v3154 = vld [vmem:[#allocation6 + $0x6a4] sm:$0xff]
        %v3155 = vld [vmem:[#allocation6 + $0x6ac] sm:$0xff]
        %v3156 = vld [vmem:[#allocation6 + $0x6b4] sm:$0xf]
        %v3157 = vld [vmem:[#allocation6 + $0x6b8] sm:$0xff]
        %v3158 = vld [vmem:[#allocation6 + $0x6c0] sm:$0xff]
        %v3159 = vld [vmem:[#allocation6 + $0x6c8] sm:$0xf]
        %v3160 = vld [vmem:[#allocation6 + $0x6cc] sm:$0xff]
        %v3161 = vld [vmem:[#allocation6 + $0x6d4] sm:$0xff]
        %v3162 = vld [vmem:[#allocation6 + $0x6dc] sm:$0xf]
        %v3163 = vld [vmem:[#allocation6 + $0x6e0] sm:$0xff]
        %v3164 = vld [vmem:[#allocation6 + $0x6e8] sm:$0xff]
        %v3165 = vld [vmem:[#allocation6 + $0x6f0] sm:$0xf]
        %v3166 = vld [vmem:[#allocation6 + $0x6f4] sm:$0xff]
        %v3167 = vld [vmem:[#allocation6 + $0x6fc] sm:$0xff]
        %v3168 = vld [vmem:[#allocation6 + $0x704] sm:$0xf]
        %v3169 = vld [vmem:[#allocation6 + $0x708] sm:$0xff]
        %v3170 = vld [vmem:[#allocation6 + $0x710] sm:$0xff]
        %v3171 = vld [vmem:[#allocation6 + $0x718] sm:$0xf]
        %v3172 = vld [vmem:[#allocation6 + $0x71c] sm:$0xff]
        %v3173 = vld [vmem:[#allocation6 + $0x724] sm:$0xff]
        %v3174 = vld [vmem:[#allocation6 + $0x72c] sm:$0xf]
        %v3175 = vld [vmem:[#allocation6 + $0x730] sm:$0xff]
        %v3176 = vld [vmem:[#allocation6 + $0x738] sm:$0xff]
        %v3177 = vld [vmem:[#allocation6 + $0x740] sm:$0xf]
        %v3178 = vld [vmem:[#allocation6 + $0x744] sm:$0xff]
        %v3179 = vld [vmem:[#allocation6 + $0x74c] sm:$0xff]
        %v3180 = vld [vmem:[#allocation6 + $0x754] sm:$0xf]
        %v3181 = vld [vmem:[#allocation6 + $0x758] sm:$0xff]
        %v3182 = vld [vmem:[#allocation6 + $0x760] sm:$0xff]
        %v3183 = vld [vmem:[#allocation6 + $0x768] sm:$0xf]
        %v3184 = vld [vmem:[#allocation6 + $0x76c] sm:$0xff]
        %v3185 = vld [vmem:[#allocation6 + $0x774] sm:$0xff]
        %v3186 = vld [vmem:[#allocation6 + $0x77c] sm:$0xf]
        %vm3189 = vcmask 1046528
        %v3190 = vrot.slane %v390, 1
        %v3191 = vrot.slane %v404, 1
        %v3192 = vsel %vm3189, %v3190, %v3191
        %v3193 = vrot.slane %v391, 1
        %v3194 = vrot.slane %v408, 1
        %v3195 = vsel %vm3189, %v3193, %v3194
        %v3296 = vunpack.c.l.b16 %v3091
        %v3297 = vunpack.c.h.b16 %v3091
        %v3298 = vunpack.c.l.b16 %v3092
        %v3299 = vunpack.c.h.b16 %v3092
        %v3300 = vunpack.c.l.b16 %v3093
        %v3301 = vunpack.c.l.b16 %v3094
        %v3302 = vunpack.c.h.b16 %v3094
        %v3303 = vunpack.c.l.b16 %v3095
        %v3304 = vunpack.c.h.b16 %v3095
        %v3305 = vunpack.c.l.b16 %v3096
        %v3306 = vunpack.c.l.b16 %v3097
        %v3307 = vunpack.c.h.b16 %v3097
        %v3308 = vunpack.c.l.b16 %v3098
        %v3309 = vunpack.c.h.b16 %v3098
        %v3310 = vunpack.c.l.b16 %v3099
        %v3311 = vunpack.c.l.b16 %v3100
        %v3312 = vunpack.c.h.b16 %v3100
        %v3313 = vunpack.c.l.b16 %v3101
        %v3314 = vunpack.c.h.b16 %v3101
        %v3315 = vunpack.c.l.b16 %v3102
        %v3316 = vunpack.c.l.b16 %v3103
        %v3317 = vunpack.c.h.b16 %v3103
        %v3318 = vunpack.c.l.b16 %v3104
        %v3319 = vunpack.c.h.b16 %v3104
        %v3320 = vunpack.c.l.b16 %v3105
        %v3321 = vunpack.c.l.b16 %v3106
        %v3322 = vunpack.c.h.b16 %v3106
        %v3323 = vunpack.c.l.b16 %v3107
        %v3324 = vunpack.c.h.b16 %v3107
        %v3325 = vunpack.c.l.b16 %v3108
        %v3326 = vunpack.c.l.b16 %v3109
        %v3327 = vunpack.c.h.b16 %v3109
        %v3328 = vunpack.c.l.b16 %v3110
        %v3329 = vunpack.c.h.b16 %v3110
        %v3330 = vunpack.c.l.b16 %v3111
        %v3331 = vunpack.c.l.b16 %v3112
        %v3332 = vunpack.c.h.b16 %v3112
        %v3333 = vunpack.c.l.b16 %v3113
        %v3334 = vunpack.c.h.b16 %v3113
        %v3335 = vunpack.c.l.b16 %v3114
        %v3336 = vunpack.c.l.b16 %v3115
        %v3337 = vunpack.c.h.b16 %v3115
        %v3338 = vunpack.c.l.b16 %v3116
        %v3339 = vunpack.c.h.b16 %v3116
        %v3340 = vunpack.c.l.b16 %v3117
        %v3341 = vunpack.c.l.b16 %v3118
        %v3342 = vunpack.c.h.b16 %v3118
        %v3343 = vunpack.c.l.b16 %v3119
        %v3344 = vunpack.c.h.b16 %v3119
        %v3345 = vunpack.c.l.b16 %v3120
        %v3346 = vunpack.c.l.b16 %v3121
        %v3347 = vunpack.c.h.b16 %v3121
        %v3348 = vunpack.c.l.b16 %v3122
        %v3349 = vunpack.c.h.b16 %v3122
        %v3350 = vunpack.c.l.b16 %v3123
        %v3351 = vunpack.c.l.b16 %v3124
        %v3352 = vunpack.c.h.b16 %v3124
        %v3353 = vunpack.c.l.b16 %v3125
        %v3354 = vunpack.c.h.b16 %v3125
        %v3355 = vunpack.c.l.b16 %v3126
        %v3356 = vunpack.c.l.b16 %v3127
        %v3357 = vunpack.c.h.b16 %v3127
        %v3358 = vunpack.c.l.b16 %v3128
        %v3359 = vunpack.c.h.b16 %v3128
        %v3360 = vunpack.c.l.b16 %v3129
        %v3361 = vunpack.c.l.b16 %v3130
        %v3362 = vunpack.c.h.b16 %v3130
        %v3363 = vunpack.c.l.b16 %v3131
        %v3364 = vunpack.c.h.b16 %v3131
        %v3365 = vunpack.c.l.b16 %v3132
        %v3366 = vunpack.c.l.b16 %v3133
        %v3367 = vunpack.c.h.b16 %v3133
        %v3368 = vunpack.c.l.b16 %v3134
        %v3369 = vunpack.c.h.b16 %v3134
        %v3370 = vunpack.c.l.b16 %v3135
        %v3371 = vunpack.c.l.b16 %v3136
        %v3372 = vunpack.c.h.b16 %v3136
        %v3373 = vunpack.c.l.b16 %v3137
        %v3374 = vunpack.c.h.b16 %v3137
        %v3375 = vunpack.c.l.b16 %v3138
        %v3376 = vunpack.c.l.b16 %v3139
        %v3377 = vunpack.c.h.b16 %v3139
        %v3378 = vunpack.c.l.b16 %v3140
        %v3379 = vunpack.c.h.b16 %v3140
        %v3380 = vunpack.c.l.b16 %v3141
        %v3381 = vunpack.c.l.b16 %v3142
        %v3382 = vunpack.c.h.b16 %v3142
        %v3383 = vunpack.c.l.b16 %v3143
        %v3384 = vunpack.c.h.b16 %v3143
        %v3385 = vunpack.c.l.b16 %v3144
        %v3386 = vunpack.c.l.b16 %v3145
        %v3387 = vunpack.c.h.b16 %v3145
        %v3388 = vunpack.c.l.b16 %v3146
        %v3389 = vunpack.c.h.b16 %v3146
        %v3390 = vunpack.c.l.b16 %v3147
        %v3391 = vunpack.c.l.b16 %v3148
        %v3392 = vunpack.c.h.b16 %v3148
        %v3393 = vunpack.c.l.b16 %v3149
        %v3394 = vunpack.c.h.b16 %v3149
        %v3395 = vunpack.c.l.b16 %v3150
        %v3396 = vunpack.c.l.b16 %v3151
        %v3397 = vunpack.c.h.b16 %v3151
        %v3398 = vunpack.c.l.b16 %v3152
        %v3399 = vunpack.c.h.b16 %v3152
        %v3400 = vunpack.c.l.b16 %v3153
        %v3401 = vunpack.c.l.b16 %v3154
        %v3402 = vunpack.c.h.b16 %v3154
        %v3403 = vunpack.c.l.b16 %v3155
        %v3404 = vunpack.c.h.b16 %v3155
        %v3405 = vunpack.c.l.b16 %v3156
        %v3406 = vunpack.c.l.b16 %v3157
        %v3407 = vunpack.c.h.b16 %v3157
        %v3408 = vunpack.c.l.b16 %v3158
        %v3409 = vunpack.c.h.b16 %v3158
        %v3410 = vunpack.c.l.b16 %v3159
        %v3411 = vunpack.c.l.b16 %v3160
        %v3412 = vunpack.c.h.b16 %v3160
        %v3413 = vunpack.c.l.b16 %v3161
        %v3414 = vunpack.c.h.b16 %v3161
        %v3415 = vunpack.c.l.b16 %v3162
        %v3416 = vunpack.c.l.b16 %v3163
        %v3417 = vunpack.c.h.b16 %v3163
        %v3418 = vunpack.c.l.b16 %v3164
        %v3419 = vunpack.c.h.b16 %v3164
        %v3420 = vunpack.c.l.b16 %v3165
        %v3421 = vunpack.c.l.b16 %v3166
        %v3422 = vunpack.c.h.b16 %v3166
        %v3423 = vunpack.c.l.b16 %v3167
        %v3424 = vunpack.c.h.b16 %v3167
        %v3425 = vunpack.c.l.b16 %v3168
        %v3426 = vunpack.c.l.b16 %v3169
        %v3427 = vunpack.c.h.b16 %v3169
        %v3428 = vunpack.c.l.b16 %v3170
        %v3429 = vunpack.c.h.b16 %v3170
        %v3430 = vunpack.c.l.b16 %v3171
        %v3431 = vunpack.c.l.b16 %v3172
        %v3432 = vunpack.c.h.b16 %v3172
        %v3433 = vunpack.c.l.b16 %v3173
        %v3434 = vunpack.c.h.b16 %v3173
        %v3435 = vunpack.c.l.b16 %v3174
        %v3436 = vunpack.c.l.b16 %v3175
        %v3437 = vunpack.c.h.b16 %v3175
        %v3438 = vunpack.c.l.b16 %v3176
        %v3439 = vunpack.c.h.b16 %v3176
        %v3440 = vunpack.c.l.b16 %v3177
        %v3441 = vunpack.c.l.b16 %v3178
        %v3442 = vunpack.c.h.b16 %v3178
        %v3443 = vunpack.c.l.b16 %v3179
        %v3444 = vunpack.c.h.b16 %v3179
        %v3445 = vunpack.c.l.b16 %v3180
        %v3446 = vunpack.c.l.b16 %v3181
        %v3447 = vunpack.c.h.b16 %v3181
        %v3448 = vunpack.c.l.b16 %v3182
        %v3449 = vunpack.c.h.b16 %v3182
        %v3450 = vunpack.c.l.b16 %v3183
        %v3451 = vunpack.c.l.b16 %v3184
        %v3452 = vunpack.c.h.b16 %v3184
        %v3453 = vunpack.c.l.b16 %v3185
        %v3454 = vunpack.c.h.b16 %v3185
        %v3455 = vunpack.c.l.b16 %v3186
        %v3456 = vpack.c.b16 %v3301, %v3296
        %v3457 = vpack.c.b16 %v3302, %v3297
        %v3458 = vpack.c.b16 %v3303, %v3298
        %v3459 = vpack.c.b16 %v3304, %v3299
        %v3460 = vpack.c.b16 %v3305, %v3300
        %v3461 = vpack.c.b16 %v3311, %v3306
        %v3462 = vpack.c.b16 %v3312, %v3307
        %v3463 = vpack.c.b16 %v3313, %v3308
        %v3464 = vpack.c.b16 %v3314, %v3309
        %v3465 = vpack.c.b16 %v3315, %v3310
        %v3466 = vpack.c.b16 %v3321, %v3316
        %v3467 = vpack.c.b16 %v3322, %v3317
        %v3468 = vpack.c.b16 %v3323, %v3318
        %v3469 = vpack.c.b16 %v3324, %v3319
        %v3470 = vpack.c.b16 %v3325, %v3320
        %v3471 = vpack.c.b16 %v3331, %v3326
        %v3472 = vpack.c.b16 %v3332, %v3327
        %v3473 = vpack.c.b16 %v3333, %v3328
        %v3474 = vpack.c.b16 %v3334, %v3329
        %v3475 = vpack.c.b16 %v3335, %v3330
        %v3476 = vpack.c.b16 %v3341, %v3336
        %v3477 = vpack.c.b16 %v3342, %v3337
        %v3478 = vpack.c.b16 %v3343, %v3338
        %v3479 = vpack.c.b16 %v3344, %v3339
        %v3480 = vpack.c.b16 %v3345, %v3340
        %v3481 = vpack.c.b16 %v3351, %v3346
        %v3482 = vpack.c.b16 %v3352, %v3347
        %v3483 = vpack.c.b16 %v3353, %v3348
        %v3484 = vpack.c.b16 %v3354, %v3349
        %v3485 = vpack.c.b16 %v3355, %v3350
        %v3486 = vpack.c.b16 %v3361, %v3356
        %v3487 = vpack.c.b16 %v3362, %v3357
        %v3488 = vpack.c.b16 %v3363, %v3358
        %v3489 = vpack.c.b16 %v3364, %v3359
        %v3490 = vpack.c.b16 %v3365, %v3360
        %v3491 = vpack.c.b16 %v3371, %v3366
        %v3492 = vpack.c.b16 %v3372, %v3367
        %v3493 = vpack.c.b16 %v3373, %v3368
        %v3494 = vpack.c.b16 %v3374, %v3369
        %v3495 = vpack.c.b16 %v3375, %v3370
        %v3496 = vpack.c.b16 %v3381, %v3376
        %v3497 = vpack.c.b16 %v3382, %v3377
        %v3498 = vpack.c.b16 %v3383, %v3378
        %v3499 = vpack.c.b16 %v3384, %v3379
        %v3500 = vpack.c.b16 %v3385, %v3380
        %v3501 = vpack.c.b16 %v3391, %v3386
        %v3502 = vpack.c.b16 %v3392, %v3387
        %v3503 = vpack.c.b16 %v3393, %v3388
        %v3504 = vpack.c.b16 %v3394, %v3389
        %v3505 = vpack.c.b16 %v3395, %v3390
        %v3506 = vpack.c.b16 %v3401, %v3396
        %v3507 = vpack.c.b16 %v3402, %v3397
        %v3508 = vpack.c.b16 %v3403, %v3398
        %v3509 = vpack.c.b16 %v3404, %v3399
        %v3510 = vpack.c.b16 %v3405, %v3400
        %v3511 = vpack.c.b16 %v3411, %v3406
        %v3512 = vpack.c.b16 %v3412, %v3407
        %v3513 = vpack.c.b16 %v3413, %v3408
        %v3514 = vpack.c.b16 %v3414, %v3409
        %v3515 = vpack.c.b16 %v3415, %v3410
        %v3516 = vpack.c.b16 %v3421, %v3416
        %v3517 = vpack.c.b16 %v3422, %v3417
        %v3518 = vpack.c.b16 %v3423, %v3418
        %v3519 = vpack.c.b16 %v3424, %v3419
        %v3520 = vpack.c.b16 %v3425, %v3420
        %v3521 = vpack.c.b16 %v3431, %v3426
        %v3522 = vpack.c.b16 %v3432, %v3427
        %v3523 = vpack.c.b16 %v3433, %v3428
        %v3524 = vpack.c.b16 %v3434, %v3429
        %v3525 = vpack.c.b16 %v3435, %v3430
        %v3526 = vpack.c.b16 %v3441, %v3436
        %v3527 = vpack.c.b16 %v3442, %v3437
        %v3528 = vpack.c.b16 %v3443, %v3438
        %v3529 = vpack.c.b16 %v3444, %v3439
        %v3530 = vpack.c.b16 %v3445, %v3440
        %v3531 = vpack.c.b16 %v3451, %v3446
        %v3532 = vpack.c.b16 %v3452, %v3447
        %v3533 = vpack.c.b16 %v3453, %v3448
        %v3534 = vpack.c.b16 %v3454, %v3449
        %v3535 = vpack.c.b16 %v3455, %v3450
        %3616 = vmatprep.subr.bf16.mxu0 %v3457
        %3617 = vmatpush1.bf16.msra.mxu0 %v3456
        %3618 = vmatprep.subr.bf16.mxu0 %v3462
        %3619 = vmatpush1.bf16.msra.mxu0 %v3461
        %3620 = vmatprep.subr.bf16.mxu0 %v3467
        %3621 = vmatpush1.bf16.msra.mxu0 %v3466
        %3622 = vmatprep.subr.bf16.mxu0 %v3472
        %3623 = vmatpush1.bf16.msra.mxu0 %v3471
        %3624 = vmatprep.subr.bf16.mxu0 %v3477
        %3625 = vmatpush1.bf16.msra.mxu0 %v3476
        %3626 = vmatprep.subr.bf16.mxu0 %v3482
        %3627 = vmatpush1.bf16.msra.mxu0 %v3481
        %3628 = vmatprep.subr.bf16.mxu0 %v3487
        %3629 = vmatpush1.bf16.msra.mxu0 %v3486
        %3630 = vmatprep.subr.bf16.mxu0 %v3492
        %3631 = vmatpush1.bf16.msra.mxu0 %v3491
        %3632 = vmatprep.subr.bf16.mxu0 %v3497
        %3633 = vmatpush1.bf16.msra.mxu0 %v3496
        %3634 = vmatprep.subr.bf16.mxu0 %v3502
        %3635 = vmatpush1.bf16.msra.mxu0 %v3501
        %3636 = vmatprep.subr.bf16.mxu0 %v3507
        %3637 = vmatpush1.bf16.msra.mxu0 %v3506
        %3638 = vmatprep.subr.bf16.mxu0 %v3512
        %3639 = vmatpush1.bf16.msra.mxu0 %v3511
        %3640 = vmatprep.subr.bf16.mxu0 %v3517
        %3641 = vmatpush1.bf16.msra.mxu0 %v3516
        %3642 = vmatprep.subr.bf16.mxu0 %v3522
        %3643 = vmatpush1.bf16.msra.mxu0 %v3521
        %3644 = vmatprep.subr.bf16.mxu0 %v3527
        %3645 = vmatpush1.bf16.msra.mxu0 %v3526
        %3646 = vmatprep.subr.bf16.mxu0 %v3532
        %3647 = vmatpush1.bf16.msra.mxu0 %v3531
        %3648 = vmatprep.mubr.bf16.mxu0 %v3195
        %3649 = vmatmul.mubr.bf16.gmra.mrb[0].mxu0 %v3192
        %v3650 = vpop.f32.mrb[0].mxu0
        %v3651 = vadd.f32 0.0, %v3650
        %v3652 = vpop.f32.mrb[0].mxu0
        %v3653 = vadd.f32 0.0, %v3652
        %v3654 = vpop.f32.mrb[0].mxu0
        %v3655 = vadd.f32 0.0, %v3654
        %v3656 = vpop.f32.mrb[0].mxu0
        %v3657 = vadd.f32 0.0, %v3656
        %3658 = vmatprep.mubr.bf16.mxu0 %v3194
        %3659 = vmatmul.mubr.bf16.gmra.mrb[0].mxu0 %v3191
        %v3660 = vpop.f32.mrb[0].mxu0
        %v3661 = vadd.f32 0.0, %v3660
        %v3662 = vpop.f32.mrb[0].mxu0
        %v3663 = vadd.f32 0.0, %v3662
        %v3664 = vpop.f32.mrb[0].mxu0
        %v3665 = vpop.f32.mrb[0].mxu0
        %3666 = vdwg.mxu0
        %3667 = vmatprep.subr.bf16.mxu0 %v3459
        %3668 = vmatpush1.bf16.msra.mxu0 %v3458
        %3669 = vmatprep.subr.bf16.mxu0 %v3464
        %3670 = vmatpush1.bf16.msra.mxu0 %v3463
        %3671 = vmatprep.subr.bf16.mxu0 %v3469
        %3672 = vmatpush1.bf16.msra.mxu0 %v3468
        %3673 = vmatprep.subr.bf16.mxu0 %v3474
        %3674 = vmatpush1.bf16.msra.mxu0 %v3473
        %3675 = vmatprep.subr.bf16.mxu0 %v3479
        %3676 = vmatpush1.bf16.msra.mxu0 %v3478
        %3677 = vmatprep.subr.bf16.mxu0 %v3484
        %3678 = vmatpush1.bf16.msra.mxu0 %v3483
        %3679 = vmatprep.subr.bf16.mxu0 %v3489
        %3680 = vmatpush1.bf16.msra.mxu0 %v3488
        %3681 = vmatprep.subr.bf16.mxu0 %v3494
        %3682 = vmatpush1.bf16.msra.mxu0 %v3493
        %3683 = vmatprep.subr.bf16.mxu0 %v3499
        %3684 = vmatpush1.bf16.msra.mxu0 %v3498
        %3685 = vmatprep.subr.bf16.mxu0 %v3504
        %3686 = vmatpush1.bf16.msra.mxu0 %v3503
        %3687 = vmatprep.subr.bf16.mxu0 %v3509
        %3688 = vmatpush1.bf16.msra.mxu0 %v3508
        %3689 = vmatprep.subr.bf16.mxu0 %v3514
        %3690 = vmatpush1.bf16.msra.mxu0 %v3513
        %3691 = vmatprep.subr.bf16.mxu0 %v3519
        %3692 = vmatpush1.bf16.msra.mxu0 %v3518
        %3693 = vmatprep.subr.bf16.mxu0 %v3524
        %3694 = vmatpush1.bf16.msra.mxu0 %v3523
        %3695 = vmatprep.subr.bf16.mxu0 %v3529
        %3696 = vmatpush1.bf16.msra.mxu0 %v3528
        %3697 = vmatprep.subr.bf16.mxu0 %v3534
        %3698 = vmatpush1.bf16.msra.mxu0 %v3533
        %3699 = vmatprep.mubr.bf16.mxu0 %v3195
        %3700 = vmatmul.mubr.bf16.gmra.mrb[0].mxu0 %v3192
        %v3701 = vpop.f32.mrb[0].mxu0
        %v3702 = vadd.f32 0.0, %v3701
        %v3703 = vpop.f32.mrb[0].mxu0
        %v3704 = vadd.f32 0.0, %v3703
        %v3705 = vpop.f32.mrb[0].mxu0
        %v3706 = vadd.f32 0.0, %v3705
        %v3707 = vpop.f32.mrb[0].mxu0
        %v3708 = vadd.f32 0.0, %v3707
        %3709 = vmatprep.mubr.bf16.mxu0 %v3194
        %3710 = vmatmul.mubr.bf16.gmra.mrb[0].mxu0 %v3191
        %v3711 = vpop.f32.mrb[0].mxu0
        %v3712 = vadd.f32 0.0, %v3711
        %v3713 = vpop.f32.mrb[0].mxu0
        %v3714 = vadd.f32 0.0, %v3713
        %v3715 = vpop.f32.mrb[0].mxu0
        %v3716 = vpop.f32.mrb[0].mxu0
        %3717 = vdwg.mxu0
        %3718 = vmatprep.subr.bf16.mxu0 0
        %3719 = vmatpush1.bf16.msra.mxu0 %v3460
        %3720 = vmatprep.subr.bf16.mxu0 0
        %3721 = vmatpush1.bf16.msra.mxu0 %v3465
        %3722 = vmatprep.subr.bf16.mxu0 0
        %3723 = vmatpush1.bf16.msra.mxu0 %v3470
        %3724 = vmatprep.subr.bf16.mxu0 0
        %3725 = vmatpush1.bf16.msra.mxu0 %v3475
        %3726 = vmatprep.subr.bf16.mxu0 0
        %3727 = vmatpush1.bf16.msra.mxu0 %v3480
        %3728 = vmatprep.subr.bf16.mxu0 0
        %3729 = vmatpush1.bf16.msra.mxu0 %v3485
        %3730 = vmatprep.subr.bf16.mxu0 0
        %3731 = vmatpush1.bf16.msra.mxu0 %v3490
        %3732 = vmatprep.subr.bf16.mxu0 0
        %3733 = vmatpush1.bf16.msra.mxu0 %v3495
        %3734 = vmatprep.subr.bf16.mxu0 0
        %3735 = vmatpush1.bf16.msra.mxu0 %v3500
        %3736 = vmatprep.subr.bf16.mxu0 0
        %3737 = vmatpush1.bf16.msra.mxu0 %v3505
        %3738 = vmatprep.subr.bf16.mxu0 0
        %3739 = vmatpush1.bf16.msra.mxu0 %v3510
        %3740 = vmatprep.subr.bf16.mxu0 0
        %3741 = vmatpush1.bf16.msra.mxu0 %v3515
        %3742 = vmatprep.subr.bf16.mxu0 0
        %3743 = vmatpush1.bf16.msra.mxu0 %v3520
        %3744 = vmatprep.subr.bf16.mxu0 0
        %3745 = vmatpush1.bf16.msra.mxu0 %v3525
        %3746 = vmatprep.subr.bf16.mxu0 0
        %3747 = vmatpush1.bf16.msra.mxu0 %v3530
        %3748 = vmatprep.subr.bf16.mxu0 0
        %3749 = vmatpush1.bf16.msra.mxu0 %v3535
        %3750 = vmatprep.mubr.bf16.mxu0 %v3195
        %3751 = vmatmul.mubr.bf16.gmra.mrb[0].mxu0 %v3192
        %v3752 = vpop.f32.mrb[0].mxu0
        %v3753 = vadd.f32 0.0, %v3752
        %v3754 = vpop.f32.mrb[0].mxu0
        %v3755 = vpop.f32.mrb[0].mxu0
        %v3756 = vadd.f32 0.0, %v3755
        %v3757 = vpop.f32.mrb[0].mxu0
        %3758 = vmatprep.mubr.bf16.mxu0 %v3194
        %3759 = vmatmul.mubr.bf16.gmra.mrb[0].mxu0 %v3191
        %v3760 = vpop.f32.mrb[0].mxu0
        %v3761 = vadd.f32 0.0, %v3760
        %v3762 = vpop.f32.mrb[0].mxu0
        %v3763 = vpop.f32.mrb[0].mxu0
        %v3764 = vpop.f32.mrb[0].mxu0
        %3765 = vdwg.mxu0
        %v3766 = vadd.f32 %v1748, %v3651
        %v3767 = vadd.f32 %v1750, %v3653
        %v3768 = vadd.f32 %v1799, %v3702
        %v3769 = vadd.f32 %v1801, %v3704
        %v3770 = vadd.f32 %v1850, %v3753
        %v3771 = vadd.f32 %v1752, %v3655
        %v3772 = vadd.f32 %v1754, %v3657
        %v3773 = vadd.f32 %v1803, %v3706
        %v3774 = vadd.f32 %v1805, %v3708
        %v3775 = vadd.f32 %v1853, %v3756
        %v3776 = vadd.f32 %v1758, %v3661
        %v3777 = vadd.f32 %v1760, %v3663
        %v3778 = vadd.f32 %v1809, %v3712
        %v3779 = vadd.f32 %v1811, %v3714
        %v3780 = vadd.f32 %v1858, %v3761
        %v3781 = vld [vmem:[#allocation7 + $0x500] sm:$0xff]
        %v3782 = vld [vmem:[#allocation7 + $0x508] sm:$0xff]
        %v3783 = vld [vmem:[#allocation7 + $0x510] sm:$0xf]
        %v3784 = vld [vmem:[#allocation7 + $0x514] sm:$0xff]
        %v3785 = vld [vmem:[#allocation7 + $0x51c] sm:$0xff]
        %v3786 = vld [vmem:[#allocation7 + $0x524] sm:$0xf]
        %v3787 = vld [vmem:[#allocation7 + $0x528] sm:$0xff]
        %v3788 = vld [vmem:[#allocation7 + $0x530] sm:$0xff]
        %v3789 = vld [vmem:[#allocation7 + $0x538] sm:$0xf]
        %v3790 = vld [vmem:[#allocation7 + $0x53c] sm:$0xff]
        %v3791 = vld [vmem:[#allocation7 + $0x544] sm:$0xff]
        %v3792 = vld [vmem:[#allocation7 + $0x54c] sm:$0xf]
        %v3793 = vld [vmem:[#allocation7 + $0x550] sm:$0xff]
        %v3794 = vld [vmem:[#allocation7 + $0x558] sm:$0xff]
        %v3795 = vld [vmem:[#allocation7 + $0x560] sm:$0xf]
        %v3796 = vld [vmem:[#allocation7 + $0x564] sm:$0xff]
        %v3797 = vld [vmem:[#allocation7 + $0x56c] sm:$0xff]
        %v3798 = vld [vmem:[#allocation7 + $0x574] sm:$0xf]
        %v3799 = vld [vmem:[#allocation7 + $0x578] sm:$0xff]
        %v3800 = vld [vmem:[#allocation7 + $0x580] sm:$0xff]
        %v3801 = vld [vmem:[#allocation7 + $0x588] sm:$0xf]
        %v3802 = vld [vmem:[#allocation7 + $0x58c] sm:$0xff]
        %v3803 = vld [vmem:[#allocation7 + $0x594] sm:$0xff]
        %v3804 = vld [vmem:[#allocation7 + $0x59c] sm:$0xf]
        %v3805 = vld [vmem:[#allocation7 + $0x5a0] sm:$0xff]
        %v3806 = vld [vmem:[#allocation7 + $0x5a8] sm:$0xff]
        %v3807 = vld [vmem:[#allocation7 + $0x5b0] sm:$0xf]
        %v3808 = vld [vmem:[#allocation7 + $0x5b4] sm:$0xff]
        %v3809 = vld [vmem:[#allocation7 + $0x5bc] sm:$0xff]
        %v3810 = vld [vmem:[#allocation7 + $0x5c4] sm:$0xf]
        %v3811 = vld [vmem:[#allocation7 + $0x5c8] sm:$0xff]
        %v3812 = vld [vmem:[#allocation7 + $0x5d0] sm:$0xff]
        %v3813 = vld [vmem:[#allocation7 + $0x5d8] sm:$0xf]
        %v3814 = vld [vmem:[#allocation7 + $0x5dc] sm:$0xff]
        %v3815 = vld [vmem:[#allocation7 + $0x5e4] sm:$0xff]
        %v3816 = vld [vmem:[#allocation7 + $0x5ec] sm:$0xf]
        %v3817 = vld [vmem:[#allocation7 + $0x5f0] sm:$0xff]
        %v3818 = vld [vmem:[#allocation7 + $0x5f8] sm:$0xff]
        %v3819 = vld [vmem:[#allocation7 + $0x600] sm:$0xf]
        %v3820 = vld [vmem:[#allocation7 + $0x604] sm:$0xff]
        %v3821 = vld [vmem:[#allocation7 + $0x60c] sm:$0xff]
        %v3822 = vld [vmem:[#allocation7 + $0x614] sm:$0xf]
        %v3823 = vld [vmem:[#allocation7 + $0x618] sm:$0xff]
        %v3824 = vld [vmem:[#allocation7 + $0x620] sm:$0xff]
        %v3825 = vld [vmem:[#allocation7 + $0x628] sm:$0xf]
        %v3826 = vld [vmem:[#allocation7 + $0x62c] sm:$0xff]
        %v3827 = vld [vmem:[#allocation7 + $0x634] sm:$0xff]
        %v3828 = vld [vmem:[#allocation7 + $0x63c] sm:$0xf]
        %v3829 = vld [vmem:[#allocation7 + $0x640] sm:$0xff]
        %v3830 = vld [vmem:[#allocation7 + $0x648] sm:$0xff]
        %v3831 = vld [vmem:[#allocation7 + $0x650] sm:$0xf]
        %v3832 = vld [vmem:[#allocation7 + $0x654] sm:$0xff]
        %v3833 = vld [vmem:[#allocation7 + $0x65c] sm:$0xff]
        %v3834 = vld [vmem:[#allocation7 + $0x664] sm:$0xf]
        %v3835 = vld [vmem:[#allocation7 + $0x668] sm:$0xff]
        %v3836 = vld [vmem:[#allocation7 + $0x670] sm:$0xff]
        %v3837 = vld [vmem:[#allocation7 + $0x678] sm:$0xf]
        %v3838 = vld [vmem:[#allocation7 + $0x67c] sm:$0xff]
        %v3839 = vld [vmem:[#allocation7 + $0x684] sm:$0xff]
        %v3840 = vld [vmem:[#allocation7 + $0x68c] sm:$0xf]
        %v3841 = vld [vmem:[#allocation7 + $0x690] sm:$0xff]
        %v3842 = vld [vmem:[#allocation7 + $0x698] sm:$0xff]
        %v3843 = vld [vmem:[#allocation7 + $0x6a0] sm:$0xf]
        %v3844 = vld [vmem:[#allocation7 + $0x6a4] sm:$0xff]
        %v3845 = vld [vmem:[#allocation7 + $0x6ac] sm:$0xff]
        %v3846 = vld [vmem:[#allocation7 + $0x6b4] sm:$0xf]
        %v3847 = vld [vmem:[#allocation7 + $0x6b8] sm:$0xff]
        %v3848 = vld [vmem:[#allocation7 + $0x6c0] sm:$0xff]
        %v3849 = vld [vmem:[#allocation7 + $0x6c8] sm:$0xf]
        %v3850 = vld [vmem:[#allocation7 + $0x6cc] sm:$0xff]
        %v3851 = vld [vmem:[#allocation7 + $0x6d4] sm:$0xff]
        %v3852 = vld [vmem:[#allocation7 + $0x6dc] sm:$0xf]
        %v3853 = vld [vmem:[#allocation7 + $0x6e0] sm:$0xff]
        %v3854 = vld [vmem:[#allocation7 + $0x6e8] sm:$0xff]
        %v3855 = vld [vmem:[#allocation7 + $0x6f0] sm:$0xf]
        %v3856 = vld [vmem:[#allocation7 + $0x6f4] sm:$0xff]
        %v3857 = vld [vmem:[#allocation7 + $0x6fc] sm:$0xff]
        %v3858 = vld [vmem:[#allocation7 + $0x704] sm:$0xf]
        %v3859 = vld [vmem:[#allocation7 + $0x708] sm:$0xff]
        %v3860 = vld [vmem:[#allocation7 + $0x710] sm:$0xff]
        %v3861 = vld [vmem:[#allocation7 + $0x718] sm:$0xf]
        %v3862 = vld [vmem:[#allocation7 + $0x71c] sm:$0xff]
        %v3863 = vld [vmem:[#allocation7 + $0x724] sm:$0xff]
        %v3864 = vld [vmem:[#allocation7 + $0x72c] sm:$0xf]
        %v3865 = vld [vmem:[#allocation7 + $0x730] sm:$0xff]
        %v3866 = vld [vmem:[#allocation7 + $0x738] sm:$0xff]
        %v3867 = vld [vmem:[#allocation7 + $0x740] sm:$0xf]
        %v3868 = vld [vmem:[#allocation7 + $0x744] sm:$0xff]
        %v3869 = vld [vmem:[#allocation7 + $0x74c] sm:$0xff]
        %v3870 = vld [vmem:[#allocation7 + $0x754] sm:$0xf]
        %v3871 = vld [vmem:[#allocation7 + $0x758] sm:$0xff]
        %v3872 = vld [vmem:[#allocation7 + $0x760] sm:$0xff]
        %v3873 = vld [vmem:[#allocation7 + $0x768] sm:$0xf]
        %v3874 = vld [vmem:[#allocation7 + $0x76c] sm:$0xff]
        %v3875 = vld [vmem:[#allocation7 + $0x774] sm:$0xff]
        %v3876 = vld [vmem:[#allocation7 + $0x77c] sm:$0xf]
        %v3973 = vunpack.c.l.b16 %v3781
        %v3974 = vunpack.c.h.b16 %v3781
        %v3975 = vunpack.c.l.b16 %v3782
        %v3976 = vunpack.c.h.b16 %v3782
        %v3977 = vunpack.c.l.b16 %v3783
        %v3978 = vunpack.c.l.b16 %v3784
        %v3979 = vunpack.c.h.b16 %v3784
        %v3980 = vunpack.c.l.b16 %v3785
        %v3981 = vunpack.c.h.b16 %v3785
        %v3982 = vunpack.c.l.b16 %v3786
        %v3983 = vunpack.c.l.b16 %v3787
        %v3984 = vunpack.c.h.b16 %v3787
        %v3985 = vunpack.c.l.b16 %v3788
        %v3986 = vunpack.c.h.b16 %v3788
        %v3987 = vunpack.c.l.b16 %v3789
        %v3988 = vunpack.c.l.b16 %v3790
        %v3989 = vunpack.c.h.b16 %v3790
        %v3990 = vunpack.c.l.b16 %v3791
        %v3991 = vunpack.c.h.b16 %v3791
        %v3992 = vunpack.c.l.b16 %v3792
        %v3993 = vunpack.c.l.b16 %v3793
        %v3994 = vunpack.c.h.b16 %v3793
        %v3995 = vunpack.c.l.b16 %v3794
        %v3996 = vunpack.c.h.b16 %v3794
        %v3997 = vunpack.c.l.b16 %v3795
        %v3998 = vunpack.c.l.b16 %v3796
        %v3999 = vunpack.c.h.b16 %v3796
        %v4000 = vunpack.c.l.b16 %v3797
        %v4001 = vunpack.c.h.b16 %v3797
        %v4002 = vunpack.c.l.b16 %v3798
        %v4003 = vunpack.c.l.b16 %v3799
        %v4004 = vunpack.c.h.b16 %v3799
        %v4005 = vunpack.c.l.b16 %v3800
        %v4006 = vunpack.c.h.b16 %v3800
        %v4007 = vunpack.c.l.b16 %v3801
        %v4008 = vunpack.c.l.b16 %v3802
        %v4009 = vunpack.c.h.b16 %v3802
        %v4010 = vunpack.c.l.b16 %v3803
        %v4011 = vunpack.c.h.b16 %v3803
        %v4012 = vunpack.c.l.b16 %v3804
        %v4013 = vunpack.c.l.b16 %v3805
        %v4014 = vunpack.c.h.b16 %v3805
        %v4015 = vunpack.c.l.b16 %v3806
        %v4016 = vunpack.c.h.b16 %v3806
        %v4017 = vunpack.c.l.b16 %v3807
        %v4018 = vunpack.c.l.b16 %v3808
        %v4019 = vunpack.c.h.b16 %v3808
        %v4020 = vunpack.c.l.b16 %v3809
        %v4021 = vunpack.c.h.b16 %v3809
        %v4022 = vunpack.c.l.b16 %v3810
        %v4023 = vunpack.c.l.b16 %v3811
        %v4024 = vunpack.c.h.b16 %v3811
        %v4025 = vunpack.c.l.b16 %v3812
        %v4026 = vunpack.c.h.b16 %v3812
        %v4027 = vunpack.c.l.b16 %v3813
        %v4028 = vunpack.c.l.b16 %v3814
        %v4029 = vunpack.c.h.b16 %v3814
        %v4030 = vunpack.c.l.b16 %v3815
        %v4031 = vunpack.c.h.b16 %v3815
        %v4032 = vunpack.c.l.b16 %v3816
        %v4033 = vunpack.c.l.b16 %v3817
        %v4034 = vunpack.c.h.b16 %v3817
        %v4035 = vunpack.c.l.b16 %v3818
        %v4036 = vunpack.c.h.b16 %v3818
        %v4037 = vunpack.c.l.b16 %v3819
        %v4038 = vunpack.c.l.b16 %v3820
        %v4039 = vunpack.c.h.b16 %v3820
        %v4040 = vunpack.c.l.b16 %v3821
        %v4041 = vunpack.c.h.b16 %v3821
        %v4042 = vunpack.c.l.b16 %v3822
        %v4043 = vunpack.c.l.b16 %v3823
        %v4044 = vunpack.c.h.b16 %v3823
        %v4045 = vunpack.c.l.b16 %v3824
        %v4046 = vunpack.c.h.b16 %v3824
        %v4047 = vunpack.c.l.b16 %v3825
        %v4048 = vunpack.c.l.b16 %v3826
        %v4049 = vunpack.c.h.b16 %v3826
        %v4050 = vunpack.c.l.b16 %v3827
        %v4051 = vunpack.c.h.b16 %v3827
        %v4052 = vunpack.c.l.b16 %v3828
        %v4053 = vunpack.c.l.b16 %v3829
        %v4054 = vunpack.c.h.b16 %v3829
        %v4055 = vunpack.c.l.b16 %v3830
        %v4056 = vunpack.c.h.b16 %v3830
        %v4057 = vunpack.c.l.b16 %v3831
        %v4058 = vunpack.c.l.b16 %v3832
        %v4059 = vunpack.c.h.b16 %v3832
        %v4060 = vunpack.c.l.b16 %v3833
        %v4061 = vunpack.c.h.b16 %v3833
        %v4062 = vunpack.c.l.b16 %v3834
        %v4063 = vunpack.c.l.b16 %v3835
        %v4064 = vunpack.c.h.b16 %v3835
        %v4065 = vunpack.c.l.b16 %v3836
        %v4066 = vunpack.c.h.b16 %v3836
        %v4067 = vunpack.c.l.b16 %v3837
        %v4068 = vunpack.c.l.b16 %v3838
        %v4069 = vunpack.c.h.b16 %v3838
        %v4070 = vunpack.c.l.b16 %v3839
        %v4071 = vunpack.c.h.b16 %v3839
        %v4072 = vunpack.c.l.b16 %v3840
        %v4073 = vunpack.c.l.b16 %v3841
        %v4074 = vunpack.c.h.b16 %v3841
        %v4075 = vunpack.c.l.b16 %v3842
        %v4076 = vunpack.c.h.b16 %v3842
        %v4077 = vunpack.c.l.b16 %v3843
        %v4078 = vunpack.c.l.b16 %v3844
        %v4079 = vunpack.c.h.b16 %v3844
        %v4080 = vunpack.c.l.b16 %v3845
        %v4081 = vunpack.c.h.b16 %v3845
        %v4082 = vunpack.c.l.b16 %v3846
        %v4083 = vunpack.c.l.b16 %v3847
        %v4084 = vunpack.c.h.b16 %v3847
        %v4085 = vunpack.c.l.b16 %v3848
        %v4086 = vunpack.c.h.b16 %v3848
        %v4087 = vunpack.c.l.b16 %v3849
        %v4088 = vunpack.c.l.b16 %v3850
        %v4089 = vunpack.c.h.b16 %v3850
        %v4090 = vunpack.c.l.b16 %v3851
        %v4091 = vunpack.c.h.b16 %v3851
        %v4092 = vunpack.c.l.b16 %v3852
        %v4093 = vunpack.c.l.b16 %v3853
        %v4094 = vunpack.c.h.b16 %v3853
        %v4095 = vunpack.c.l.b16 %v3854
        %v4096 = vunpack.c.h.b16 %v3854
        %v4097 = vunpack.c.l.b16 %v3855
        %v4098 = vunpack.c.l.b16 %v3856
        %v4099 = vunpack.c.h.b16 %v3856
        %v4100 = vunpack.c.l.b16 %v3857
        %v4101 = vunpack.c.h.b16 %v3857
        %v4102 = vunpack.c.l.b16 %v3858
        %v4103 = vunpack.c.l.b16 %v3859
        %v4104 = vunpack.c.h.b16 %v3859
        %v4105 = vunpack.c.l.b16 %v3860
        %v4106 = vunpack.c.h.b16 %v3860
        %v4107 = vunpack.c.l.b16 %v3861
        %v4108 = vunpack.c.l.b16 %v3862
        %v4109 = vunpack.c.h.b16 %v3862
        %v4110 = vunpack.c.l.b16 %v3863
        %v4111 = vunpack.c.h.b16 %v3863
        %v4112 = vunpack.c.l.b16 %v3864
        %v4113 = vunpack.c.l.b16 %v3865
        %v4114 = vunpack.c.h.b16 %v3865
        %v4115 = vunpack.c.l.b16 %v3866
        %v4116 = vunpack.c.h.b16 %v3866
        %v4117 = vunpack.c.l.b16 %v3867
        %v4118 = vunpack.c.l.b16 %v3868
        %v4119 = vunpack.c.h.b16 %v3868
        %v4120 = vunpack.c.l.b16 %v3869
        %v4121 = vunpack.c.h.b16 %v3869
        %v4122 = vunpack.c.l.b16 %v3870
        %v4123 = vunpack.c.l.b16 %v3871
        %v4124 = vunpack.c.h.b16 %v3871
        %v4125 = vunpack.c.l.b16 %v3872
        %v4126 = vunpack.c.h.b16 %v3872
        %v4127 = vunpack.c.l.b16 %v3873
        %v4128 = vunpack.c.l.b16 %v3874
        %v4129 = vunpack.c.h.b16 %v3874
        %v4130 = vunpack.c.l.b16 %v3875
        %v4131 = vunpack.c.h.b16 %v3875
        %v4132 = vunpack.c.l.b16 %v3876
        %v4133 = vpack.c.b16 %v3978, %v3973
        %v4134 = vpack.c.b16 %v3979, %v3974
        %v4135 = vpack.c.b16 %v3980, %v3975
        %v4136 = vpack.c.b16 %v3981, %v3976
        %v4137 = vpack.c.b16 %v3982, %v3977
        %v4138 = vpack.c.b16 %v3988, %v3983
        %v4139 = vpack.c.b16 %v3989, %v3984
        %v4140 = vpack.c.b16 %v3990, %v3985
        %v4141 = vpack.c.b16 %v3991, %v3986
        %v4142 = vpack.c.b16 %v3992, %v3987
        %v4143 = vpack.c.b16 %v3998, %v3993
        %v4144 = vpack.c.b16 %v3999, %v3994
        %v4145 = vpack.c.b16 %v4000, %v3995
        %v4146 = vpack.c.b16 %v4001, %v3996
        %v4147 = vpack.c.b16 %v4002, %v3997
        %v4148 = vpack.c.b16 %v4008, %v4003
        %v4149 = vpack.c.b16 %v4009, %v4004
        %v4150 = vpack.c.b16 %v4010, %v4005
        %v4151 = vpack.c.b16 %v4011, %v4006
        %v4152 = vpack.c.b16 %v4012, %v4007
        %v4153 = vpack.c.b16 %v4018, %v4013
        %v4154 = vpack.c.b16 %v4019, %v4014
        %v4155 = vpack.c.b16 %v4020, %v4015
        %v4156 = vpack.c.b16 %v4021, %v4016
        %v4157 = vpack.c.b16 %v4022, %v4017
        %v4158 = vpack.c.b16 %v4028, %v4023
        %v4159 = vpack.c.b16 %v4029, %v4024
        %v4160 = vpack.c.b16 %v4030, %v4025
        %v4161 = vpack.c.b16 %v4031, %v4026
        %v4162 = vpack.c.b16 %v4032, %v4027
        %v4163 = vpack.c.b16 %v4038, %v4033
        %v4164 = vpack.c.b16 %v4039, %v4034
        %v4165 = vpack.c.b16 %v4040, %v4035
        %v4166 = vpack.c.b16 %v4041, %v4036
        %v4167 = vpack.c.b16 %v4042, %v4037
        %v4168 = vpack.c.b16 %v4048, %v4043
        %v4169 = vpack.c.b16 %v4049, %v4044
        %v4170 = vpack.c.b16 %v4050, %v4045
        %v4171 = vpack.c.b16 %v4051, %v4046
        %v4172 = vpack.c.b16 %v4052, %v4047
        %v4173 = vpack.c.b16 %v4058, %v4053
        %v4174 = vpack.c.b16 %v4059, %v4054
        %v4175 = vpack.c.b16 %v4060, %v4055
        %v4176 = vpack.c.b16 %v4061, %v4056
        %v4177 = vpack.c.b16 %v4062, %v4057
        %v4178 = vpack.c.b16 %v4068, %v4063
        %v4179 = vpack.c.b16 %v4069, %v4064
        %v4180 = vpack.c.b16 %v4070, %v4065
        %v4181 = vpack.c.b16 %v4071, %v4066
        %v4182 = vpack.c.b16 %v4072, %v4067
        %v4183 = vpack.c.b16 %v4078, %v4073
        %v4184 = vpack.c.b16 %v4079, %v4074
        %v4185 = vpack.c.b16 %v4080, %v4075
        %v4186 = vpack.c.b16 %v4081, %v4076
        %v4187 = vpack.c.b16 %v4082, %v4077
        %v4188 = vpack.c.b16 %v4088, %v4083
        %v4189 = vpack.c.b16 %v4089, %v4084
        %v4190 = vpack.c.b16 %v4090, %v4085
        %v4191 = vpack.c.b16 %v4091, %v4086
        %v4192 = vpack.c.b16 %v4092, %v4087
        %v4193 = vpack.c.b16 %v4098, %v4093
        %v4194 = vpack.c.b16 %v4099, %v4094
        %v4195 = vpack.c.b16 %v4100, %v4095
        %v4196 = vpack.c.b16 %v4101, %v4096
        %v4197 = vpack.c.b16 %v4102, %v4097
        %v4198 = vpack.c.b16 %v4108, %v4103
        %v4199 = vpack.c.b16 %v4109, %v4104
        %v4200 = vpack.c.b16 %v4110, %v4105
        %v4201 = vpack.c.b16 %v4111, %v4106
        %v4202 = vpack.c.b16 %v4112, %v4107
        %v4203 = vpack.c.b16 %v4118, %v4113
        %v4204 = vpack.c.b16 %v4119, %v4114
        %v4205 = vpack.c.b16 %v4120, %v4115
        %v4206 = vpack.c.b16 %v4121, %v4116
        %v4207 = vpack.c.b16 %v4122, %v4117
        %v4208 = vpack.c.b16 %v4128, %v4123
        %v4209 = vpack.c.b16 %v4129, %v4124
        %v4210 = vpack.c.b16 %v4130, %v4125
        %v4211 = vpack.c.b16 %v4131, %v4126
        %v4212 = vpack.c.b16 %v4132, %v4127
        %4293 = vmatprep.subr.bf16.mxu0 %v4134
        %4294 = vmatpush1.bf16.msra.mxu0 %v4133
        %4295 = vmatprep.subr.bf16.mxu0 %v4139
        %4296 = vmatpush1.bf16.msra.mxu0 %v4138
        %4297 = vmatprep.subr.bf16.mxu0 %v4144
        %4298 = vmatpush1.bf16.msra.mxu0 %v4143
        %4299 = vmatprep.subr.bf16.mxu0 %v4149
        %4300 = vmatpush1.bf16.msra.mxu0 %v4148
        %4301 = vmatprep.subr.bf16.mxu0 %v4154
        %4302 = vmatpush1.bf16.msra.mxu0 %v4153
        %4303 = vmatprep.subr.bf16.mxu0 %v4159
        %4304 = vmatpush1.bf16.msra.mxu0 %v4158
        %4305 = vmatprep.subr.bf16.mxu0 %v4164
        %4306 = vmatpush1.bf16.msra.mxu0 %v4163
        %4307 = vmatprep.subr.bf16.mxu0 %v4169
        %4308 = vmatpush1.bf16.msra.mxu0 %v4168
        %4309 = vmatprep.subr.bf16.mxu0 %v4174
        %4310 = vmatpush1.bf16.msra.mxu0 %v4173
        %4311 = vmatprep.subr.bf16.mxu0 %v4179
        %4312 = vmatpush1.bf16.msra.mxu0 %v4178
        %4313 = vmatprep.subr.bf16.mxu0 %v4184
        %4314 = vmatpush1.bf16.msra.mxu0 %v4183
        %4315 = vmatprep.subr.bf16.mxu0 %v4189
        %4316 = vmatpush1.bf16.msra.mxu0 %v4188
        %4317 = vmatprep.subr.bf16.mxu0 %v4194
        %4318 = vmatpush1.bf16.msra.mxu0 %v4193
        %4319 = vmatprep.subr.bf16.mxu0 %v4199
        %4320 = vmatpush1.bf16.msra.mxu0 %v4198
        %4321 = vmatprep.subr.bf16.mxu0 %v4204
        %4322 = vmatpush1.bf16.msra.mxu0 %v4203
        %4323 = vmatprep.subr.bf16.mxu0 %v4209
        %4324 = vmatpush1.bf16.msra.mxu0 %v4208
        %4325 = vmatprep.mubr.bf16.mxu0 %v3195
        %4326 = vmatmul.mubr.bf16.gmra.mrb[0].mxu0 %v3192
        %v4327 = vpop.f32.mrb[0].mxu0
        %v4328 = vadd.f32 0.0, %v4327
        %v4329 = vpop.f32.mrb[0].mxu0
        %v4330 = vadd.f32 0.0, %v4329
        %v4331 = vpop.f32.mrb[0].mxu0
        %v4332 = vadd.f32 0.0, %v4331
        %v4333 = vpop.f32.mrb[0].mxu0
        %v4334 = vadd.f32 0.0, %v4333
        %4335 = vmatprep.mubr.bf16.mxu0 %v3194
        %4336 = vmatmul.mubr.bf16.gmra.mrb[0].mxu0 %v3191
        %v4337 = vpop.f32.mrb[0].mxu0
        %v4338 = vadd.f32 0.0, %v4337
        %v4339 = vpop.f32.mrb[0].mxu0
        %v4340 = vadd.f32 0.0, %v4339
        %v4341 = vpop.f32.mrb[0].mxu0
        %v4342 = vpop.f32.mrb[0].mxu0
        %4343 = vdwg.mxu0
        %4344 = vmatprep.subr.bf16.mxu0 %v4136
        %4345 = vmatpush1.bf16.msra.mxu0 %v4135
        %4346 = vmatprep.subr.bf16.mxu0 %v4141
        %4347 = vmatpush1.bf16.msra.mxu0 %v4140
        %4348 = vmatprep.subr.bf16.mxu0 %v4146
        %4349 = vmatpush1.bf16.msra.mxu0 %v4145
        %4350 = vmatprep.subr.bf16.mxu0 %v4151
        %4351 = vmatpush1.bf16.msra.mxu0 %v4150
        %4352 = vmatprep.subr.bf16.mxu0 %v4156
        %4353 = vmatpush1.bf16.msra.mxu0 %v4155
        %4354 = vmatprep.subr.bf16.mxu0 %v4161
        %4355 = vmatpush1.bf16.msra.mxu0 %v4160
        %4356 = vmatprep.subr.bf16.mxu0 %v4166
        %4357 = vmatpush1.bf16.msra.mxu0 %v4165
        %4358 = vmatprep.subr.bf16.mxu0 %v4171
        %4359 = vmatpush1.bf16.msra.mxu0 %v4170
        %4360 = vmatprep.subr.bf16.mxu0 %v4176
        %4361 = vmatpush1.bf16.msra.mxu0 %v4175
        %4362 = vmatprep.subr.bf16.mxu0 %v4181
        %4363 = vmatpush1.bf16.msra.mxu0 %v4180
        %4364 = vmatprep.subr.bf16.mxu0 %v4186
        %4365 = vmatpush1.bf16.msra.mxu0 %v4185
        %4366 = vmatprep.subr.bf16.mxu0 %v4191
        %4367 = vmatpush1.bf16.msra.mxu0 %v4190
        %4368 = vmatprep.subr.bf16.mxu0 %v4196
        %4369 = vmatpush1.bf16.msra.mxu0 %v4195
        %4370 = vmatprep.subr.bf16.mxu0 %v4201
        %4371 = vmatpush1.bf16.msra.mxu0 %v4200
        %4372 = vmatprep.subr.bf16.mxu0 %v4206
        %4373 = vmatpush1.bf16.msra.mxu0 %v4205
        %4374 = vmatprep.subr.bf16.mxu0 %v4211
        %4375 = vmatpush1.bf16.msra.mxu0 %v4210
        %4376 = vmatprep.mubr.bf16.mxu0 %v3195
        %4377 = vmatmul.mubr.bf16.gmra.mrb[0].mxu0 %v3192
        %v4378 = vpop.f32.mrb[0].mxu0
        %v4379 = vadd.f32 0.0, %v4378
        %v4380 = vpop.f32.mrb[0].mxu0
        %v4381 = vadd.f32 0.0, %v4380
        %v4382 = vpop.f32.mrb[0].mxu0
        %v4383 = vadd.f32 0.0, %v4382
        %v4384 = vpop.f32.mrb[0].mxu0
        %v4385 = vadd.f32 0.0, %v4384
        %4386 = vmatprep.mubr.bf16.mxu0 %v3194
        %4387 = vmatmul.mubr.bf16.gmra.mrb[0].mxu0 %v3191
        %v4388 = vpop.f32.mrb[0].mxu0
        %v4389 = vadd.f32 0.0, %v4388
        %v4390 = vpop.f32.mrb[0].mxu0
        %v4391 = vadd.f32 0.0, %v4390
        %v4392 = vpop.f32.mrb[0].mxu0
        %v4393 = vpop.f32.mrb[0].mxu0
        %4394 = vdwg.mxu0
        %4395 = vmatprep.subr.bf16.mxu0 0
        %4396 = vmatpush1.bf16.msra.mxu0 %v4137
        %4397 = vmatprep.subr.bf16.mxu0 0
        %4398 = vmatpush1.bf16.msra.mxu0 %v4142
        %4399 = vmatprep.subr.bf16.mxu0 0
        %4400 = vmatpush1.bf16.msra.mxu0 %v4147
        %4401 = vmatprep.subr.bf16.mxu0 0
        %4402 = vmatpush1.bf16.msra.mxu0 %v4152
        %4403 = vmatprep.subr.bf16.mxu0 0
        %4404 = vmatpush1.bf16.msra.mxu0 %v4157
        %4405 = vmatprep.subr.bf16.mxu0 0
        %4406 = vmatpush1.bf16.msra.mxu0 %v4162
        %4407 = vmatprep.subr.bf16.mxu0 0
        %4408 = vmatpush1.bf16.msra.mxu0 %v4167
        %4409 = vmatprep.subr.bf16.mxu0 0
        %4410 = vmatpush1.bf16.msra.mxu0 %v4172
        %4411 = vmatprep.subr.bf16.mxu0 0
        %4412 = vmatpush1.bf16.msra.mxu0 %v4177
        %4413 = vmatprep.subr.bf16.mxu0 0
        %4414 = vmatpush1.bf16.msra.mxu0 %v4182
        %4415 = vmatprep.subr.bf16.mxu0 0
        %4416 = vmatpush1.bf16.msra.mxu0 %v4187
        %4417 = vmatprep.subr.bf16.mxu0 0
        %4418 = vmatpush1.bf16.msra.mxu0 %v4192
        %4419 = vmatprep.subr.bf16.mxu0 0
        %4420 = vmatpush1.bf16.msra.mxu0 %v4197
        %4421 = vmatprep.subr.bf16.mxu0 0
        %4422 = vmatpush1.bf16.msra.mxu0 %v4202
        %4423 = vmatprep.subr.bf16.mxu0 0
        %4424 = vmatpush1.bf16.msra.mxu0 %v4207
        %4425 = vmatprep.subr.bf16.mxu0 0
        %4426 = vmatpush1.bf16.msra.mxu0 %v4212
        %4427 = vmatprep.mubr.bf16.mxu0 %v3195
        %4428 = vmatmul.mubr.bf16.gmra.mrb[0].mxu0 %v3192
        %v4429 = vpop.f32.mrb[0].mxu0
        %v4430 = vadd.f32 0.0, %v4429
        %v4431 = vpop.f32.mrb[0].mxu0
        %v4432 = vpop.f32.mrb[0].mxu0
        %v4433 = vadd.f32 0.0, %v4432
        %v4434 = vpop.f32.mrb[0].mxu0
        %4435 = vmatprep.mubr.bf16.mxu0 %v3194
        %4436 = vmatmul.mubr.bf16.gmra.mrb[0].mxu0 %v3191
        %v4437 = vpop.f32.mrb[0].mxu0
        %v4438 = vadd.f32 0.0, %v4437
        %v4439 = vpop.f32.mrb[0].mxu0
        %v4440 = vpop.f32.mrb[0].mxu0
        %v4441 = vpop.f32.mrb[0].mxu0
        %4442 = vdwg.mxu0
        %v4443 = vadd.f32 %v2976, %v4328
        %v4444 = vadd.f32 %v2978, %v4330
        %v4445 = vadd.f32 %v3027, %v4379
        %v4446 = vadd.f32 %v3029, %v4381
        %v4447 = vadd.f32 %v3078, %v4430
        %v4448 = vadd.f32 %v2980, %v4332
        %v4449 = vadd.f32 %v2982, %v4334
        %v4450 = vadd.f32 %v3031, %v4383
        %v4451 = vadd.f32 %v3033, %v4385
        %v4452 = vadd.f32 %v3081, %v4433
        %v4453 = vadd.f32 %v2986, %v4338
        %v4454 = vadd.f32 %v2988, %v4340
        %v4455 = vadd.f32 %v3037, %v4389
        %v4456 = vadd.f32 %v3039, %v4391
        %v4457 = vadd.f32 %v3086, %v4438
        %v4458 = vld [vmem:[#allocation6 + $0x780] sm:$0xff]
        %v4459 = vld [vmem:[#allocation6 + $0x788] sm:$0xff]
        %v4460 = vld [vmem:[#allocation6 + $0x790] sm:$0xf]
        %v4461 = vld [vmem:[#allocation6 + $0x794] sm:$0xff]
        %v4462 = vld [vmem:[#allocation6 + $0x79c] sm:$0xff]
        %v4463 = vld [vmem:[#allocation6 + $0x7a4] sm:$0xf]
        %v4464 = vld [vmem:[#allocation6 + $0x7a8] sm:$0xff]
        %v4465 = vld [vmem:[#allocation6 + $0x7b0] sm:$0xff]
        %v4466 = vld [vmem:[#allocation6 + $0x7b8] sm:$0xf]
        %v4467 = vld [vmem:[#allocation6 + $0x7bc] sm:$0xff]
        %v4468 = vld [vmem:[#allocation6 + $0x7c4] sm:$0xff]
        %v4469 = vld [vmem:[#allocation6 + $0x7cc] sm:$0xf]
        %v4470 = vld [vmem:[#allocation6 + $0x7d0] sm:$0xff]
        %v4471 = vld [vmem:[#allocation6 + $0x7d8] sm:$0xff]
        %v4472 = vld [vmem:[#allocation6 + $0x7e0] sm:$0xf]
        %v4473 = vld [vmem:[#allocation6 + $0x7e4] sm:$0xff]
        %v4474 = vld [vmem:[#allocation6 + $0x7ec] sm:$0xff]
        %v4475 = vld [vmem:[#allocation6 + $0x7f4] sm:$0xf]
        %v4476 = vld [vmem:[#allocation6 + $0x7f8] sm:$0xff]
        %v4477 = vld [vmem:[#allocation6 + $0x800] sm:$0xff]
        %v4478 = vld [vmem:[#allocation6 + $0x808] sm:$0xf]
        %v4479 = vld [vmem:[#allocation6 + $0x80c] sm:$0xff]
        %v4480 = vld [vmem:[#allocation6 + $0x814] sm:$0xff]
        %v4481 = vld [vmem:[#allocation6 + $0x81c] sm:$0xf]
        %v4482 = vld [vmem:[#allocation6 + $0x820] sm:$0xff]
        %v4483 = vld [vmem:[#allocation6 + $0x828] sm:$0xff]
        %v4484 = vld [vmem:[#allocation6 + $0x830] sm:$0xf]
        %v4485 = vld [vmem:[#allocation6 + $0x834] sm:$0xff]
        %v4486 = vld [vmem:[#allocation6 + $0x83c] sm:$0xff]
        %v4487 = vld [vmem:[#allocation6 + $0x844] sm:$0xf]
        %v4488 = vld [vmem:[#allocation6 + $0x848] sm:$0xff]
        %v4489 = vld [vmem:[#allocation6 + $0x850] sm:$0xff]
        %v4490 = vld [vmem:[#allocation6 + $0x858] sm:$0xf]
        %v4491 = vld [vmem:[#allocation6 + $0x85c] sm:$0xff]
        %v4492 = vld [vmem:[#allocation6 + $0x864] sm:$0xff]
        %v4493 = vld [vmem:[#allocation6 + $0x86c] sm:$0xf]
        %v4494 = vld [vmem:[#allocation6 + $0x870] sm:$0xff]
        %v4495 = vld [vmem:[#allocation6 + $0x878] sm:$0xff]
        %v4496 = vld [vmem:[#allocation6 + $0x880] sm:$0xf]
        %v4497 = vld [vmem:[#allocation6 + $0x884] sm:$0xff]
        %v4498 = vld [vmem:[#allocation6 + $0x88c] sm:$0xff]
        %v4499 = vld [vmem:[#allocation6 + $0x894] sm:$0xf]
        %v4500 = vld [vmem:[#allocation6 + $0x898] sm:$0xff]
        %v4501 = vld [vmem:[#allocation6 + $0x8a0] sm:$0xff]
        %v4502 = vld [vmem:[#allocation6 + $0x8a8] sm:$0xf]
        %v4503 = vld [vmem:[#allocation6 + $0x8ac] sm:$0xff]
        %v4504 = vld [vmem:[#allocation6 + $0x8b4] sm:$0xff]
        %v4505 = vld [vmem:[#allocation6 + $0x8bc] sm:$0xf]
        %v4506 = vld [vmem:[#allocation6 + $0x8c0] sm:$0xff]
        %v4507 = vld [vmem:[#allocation6 + $0x8c8] sm:$0xff]
        %v4508 = vld [vmem:[#allocation6 + $0x8d0] sm:$0xf]
        %v4509 = vld [vmem:[#allocation6 + $0x8d4] sm:$0xff]
        %v4510 = vld [vmem:[#allocation6 + $0x8dc] sm:$0xff]
        %v4511 = vld [vmem:[#allocation6 + $0x8e4] sm:$0xf]
        %v4512 = vld [vmem:[#allocation6 + $0x8e8] sm:$0xff]
        %v4513 = vld [vmem:[#allocation6 + $0x8f0] sm:$0xff]
        %v4514 = vld [vmem:[#allocation6 + $0x8f8] sm:$0xf]
        %v4515 = vld [vmem:[#allocation6 + $0x8fc] sm:$0xff]
        %v4516 = vld [vmem:[#allocation6 + $0x904] sm:$0xff]
        %v4517 = vld [vmem:[#allocation6 + $0x90c] sm:$0xf]
        %v4518 = vld [vmem:[#allocation6 + $0x910] sm:$0xff]
        %v4519 = vld [vmem:[#allocation6 + $0x918] sm:$0xff]
        %v4520 = vld [vmem:[#allocation6 + $0x920] sm:$0xf]
        %v4521 = vld [vmem:[#allocation6 + $0x924] sm:$0xff]
        %v4522 = vld [vmem:[#allocation6 + $0x92c] sm:$0xff]
        %v4523 = vld [vmem:[#allocation6 + $0x934] sm:$0xf]
        %v4524 = vld [vmem:[#allocation6 + $0x938] sm:$0xff]
        %v4525 = vld [vmem:[#allocation6 + $0x940] sm:$0xff]
        %v4526 = vld [vmem:[#allocation6 + $0x948] sm:$0xf]
        %v4527 = vld [vmem:[#allocation6 + $0x94c] sm:$0xff]
        %v4528 = vld [vmem:[#allocation6 + $0x954] sm:$0xff]
        %v4529 = vld [vmem:[#allocation6 + $0x95c] sm:$0xf]
        %v4530 = vld [vmem:[#allocation6 + $0x960] sm:$0xff]
        %v4531 = vld [vmem:[#allocation6 + $0x968] sm:$0xff]
        %v4532 = vld [vmem:[#allocation6 + $0x970] sm:$0xf]
        %v4533 = vld [vmem:[#allocation6 + $0x974] sm:$0xff]
        %v4534 = vld [vmem:[#allocation6 + $0x97c] sm:$0xff]
        %v4535 = vld [vmem:[#allocation6 + $0x984] sm:$0xf]
        %v4536 = vld [vmem:[#allocation6 + $0x988] sm:$0xff]
        %v4537 = vld [vmem:[#allocation6 + $0x990] sm:$0xff]
        %v4538 = vld [vmem:[#allocation6 + $0x998] sm:$0xf]
        %v4539 = vld [vmem:[#allocation6 + $0x99c] sm:$0xff]
        %v4540 = vld [vmem:[#allocation6 + $0x9a4] sm:$0xff]
        %v4541 = vld [vmem:[#allocation6 + $0x9ac] sm:$0xf]
        %v4542 = vld [vmem:[#allocation6 + $0x9b0] sm:$0xff]
        %v4543 = vld [vmem:[#allocation6 + $0x9b8] sm:$0xff]
        %v4544 = vld [vmem:[#allocation6 + $0x9c0] sm:$0xf]
        %v4545 = vld [vmem:[#allocation6 + $0x9c4] sm:$0xff]
        %v4546 = vld [vmem:[#allocation6 + $0x9cc] sm:$0xff]
        %v4547 = vld [vmem:[#allocation6 + $0x9d4] sm:$0xf]
        %v4548 = vld [vmem:[#allocation6 + $0x9d8] sm:$0xff]
        %v4549 = vld [vmem:[#allocation6 + $0x9e0] sm:$0xff]
        %v4550 = vld [vmem:[#allocation6 + $0x9e8] sm:$0xf]
        %v4551 = vld [vmem:[#allocation6 + $0x9ec] sm:$0xff]
        %v4552 = vld [vmem:[#allocation6 + $0x9f4] sm:$0xff]
        %v4553 = vld [vmem:[#allocation6 + $0x9fc] sm:$0xf]
        %vm4554 = vsmask.f32 6400
        %v4555 = vrot.slane %v700, 1
        %v4556 = vrot.slane %v702, 2
        %v4557 = vor.u32 %v4555, %v4556
        %v4558 = vrot.slane %v721, 1
        %v4559 = vrot.slane %v706, 2
        %v4560 = vor.u32 %v4558, %v4559
        %v4561 = vsel %vm4554, %v4557, %v4560
        %v4562 = vrot.slane %v711, 1
        %v4563 = vrot.slane %v713, 2
        %v4564 = vor.u32 %v4562, %v4563
        %v4565 = vrot.slane %v724, 1
        %v4566 = vrot.slane %v717, 2
        %v4567 = vor.u32 %v4565, %v4566
        %v4568 = vsel %vm4554, %v4564, %v4567
        %v4669 = vunpack.c.l.b16 %v4458
        %v4670 = vunpack.c.h.b16 %v4458
        %v4671 = vunpack.c.l.b16 %v4459
        %v4672 = vunpack.c.h.b16 %v4459
        %v4673 = vunpack.c.l.b16 %v4460
        %v4674 = vunpack.c.l.b16 %v4461
        %v4675 = vunpack.c.h.b16 %v4461
        %v4676 = vunpack.c.l.b16 %v4462
        %v4677 = vunpack.c.h.b16 %v4462
        %v4678 = vunpack.c.l.b16 %v4463
        %v4679 = vunpack.c.l.b16 %v4464
        %v4680 = vunpack.c.h.b16 %v4464
        %v4681 = vunpack.c.l.b16 %v4465
        %v4682 = vunpack.c.h.b16 %v4465
        %v4683 = vunpack.c.l.b16 %v4466
        %v4684 = vunpack.c.l.b16 %v4467
        %v4685 = vunpack.c.h.b16 %v4467
        %v4686 = vunpack.c.l.b16 %v4468
        %v4687 = vunpack.c.h.b16 %v4468
        %v4688 = vunpack.c.l.b16 %v4469
        %v4689 = vunpack.c.l.b16 %v4470
        %v4690 = vunpack.c.h.b16 %v4470
        %v4691 = vunpack.c.l.b16 %v4471
        %v4692 = vunpack.c.h.b16 %v4471
        %v4693 = vunpack.c.l.b16 %v4472
        %v4694 = vunpack.c.l.b16 %v4473
        %v4695 = vunpack.c.h.b16 %v4473
        %v4696 = vunpack.c.l.b16 %v4474
        %v4697 = vunpack.c.h.b16 %v4474
        %v4698 = vunpack.c.l.b16 %v4475
        %v4699 = vunpack.c.l.b16 %v4476
        %v4700 = vunpack.c.h.b16 %v4476
        %v4701 = vunpack.c.l.b16 %v4477
        %v4702 = vunpack.c.h.b16 %v4477
        %v4703 = vunpack.c.l.b16 %v4478
        %v4704 = vunpack.c.l.b16 %v4479
        %v4705 = vunpack.c.h.b16 %v4479
        %v4706 = vunpack.c.l.b16 %v4480
        %v4707 = vunpack.c.h.b16 %v4480
        %v4708 = vunpack.c.l.b16 %v4481
        %v4709 = vunpack.c.l.b16 %v4482
        %v4710 = vunpack.c.h.b16 %v4482
        %v4711 = vunpack.c.l.b16 %v4483
        %v4712 = vunpack.c.h.b16 %v4483
        %v4713 = vunpack.c.l.b16 %v4484
        %v4714 = vunpack.c.l.b16 %v4485
        %v4715 = vunpack.c.h.b16 %v4485
        %v4716 = vunpack.c.l.b16 %v4486
        %v4717 = vunpack.c.h.b16 %v4486
        %v4718 = vunpack.c.l.b16 %v4487
        %v4719 = vunpack.c.l.b16 %v4488
        %v4720 = vunpack.c.h.b16 %v4488
        %v4721 = vunpack.c.l.b16 %v4489
        %v4722 = vunpack.c.h.b16 %v4489
        %v4723 = vunpack.c.l.b16 %v4490
        %v4724 = vunpack.c.l.b16 %v4491
        %v4725 = vunpack.c.h.b16 %v4491
        %v4726 = vunpack.c.l.b16 %v4492
        %v4727 = vunpack.c.h.b16 %v4492
        %v4728 = vunpack.c.l.b16 %v4493
        %v4729 = vunpack.c.l.b16 %v4494
        %v4730 = vunpack.c.h.b16 %v4494
        %v4731 = vunpack.c.l.b16 %v4495
        %v4732 = vunpack.c.h.b16 %v4495
        %v4733 = vunpack.c.l.b16 %v4496
        %v4734 = vunpack.c.l.b16 %v4497
        %v4735 = vunpack.c.h.b16 %v4497
        %v4736 = vunpack.c.l.b16 %v4498
        %v4737 = vunpack.c.h.b16 %v4498
        %v4738 = vunpack.c.l.b16 %v4499
        %v4739 = vunpack.c.l.b16 %v4500
        %v4740 = vunpack.c.h.b16 %v4500
        %v4741 = vunpack.c.l.b16 %v4501
        %v4742 = vunpack.c.h.b16 %v4501
        %v4743 = vunpack.c.l.b16 %v4502
        %v4744 = vunpack.c.l.b16 %v4503
        %v4745 = vunpack.c.h.b16 %v4503
        %v4746 = vunpack.c.l.b16 %v4504
        %v4747 = vunpack.c.h.b16 %v4504
        %v4748 = vunpack.c.l.b16 %v4505
        %v4749 = vunpack.c.l.b16 %v4506
        %v4750 = vunpack.c.h.b16 %v4506
        %v4751 = vunpack.c.l.b16 %v4507
        %v4752 = vunpack.c.h.b16 %v4507
        %v4753 = vunpack.c.l.b16 %v4508
        %v4754 = vunpack.c.l.b16 %v4509
        %v4755 = vunpack.c.h.b16 %v4509
        %v4756 = vunpack.c.l.b16 %v4510
        %v4757 = vunpack.c.h.b16 %v4510
        %v4758 = vunpack.c.l.b16 %v4511
        %v4759 = vunpack.c.l.b16 %v4512
        %v4760 = vunpack.c.h.b16 %v4512
        %v4761 = vunpack.c.l.b16 %v4513
        %v4762 = vunpack.c.h.b16 %v4513
        %v4763 = vunpack.c.l.b16 %v4514
        %v4764 = vunpack.c.l.b16 %v4515
        %v4765 = vunpack.c.h.b16 %v4515
        %v4766 = vunpack.c.l.b16 %v4516
        %v4767 = vunpack.c.h.b16 %v4516
        %v4768 = vunpack.c.l.b16 %v4517
        %v4769 = vunpack.c.l.b16 %v4518
        %v4770 = vunpack.c.h.b16 %v4518
        %v4771 = vunpack.c.l.b16 %v4519
        %v4772 = vunpack.c.h.b16 %v4519
        %v4773 = vunpack.c.l.b16 %v4520
        %v4774 = vunpack.c.l.b16 %v4521
        %v4775 = vunpack.c.h.b16 %v4521
        %v4776 = vunpack.c.l.b16 %v4522
        %v4777 = vunpack.c.h.b16 %v4522
        %v4778 = vunpack.c.l.b16 %v4523
        %v4779 = vunpack.c.l.b16 %v4524
        %v4780 = vunpack.c.h.b16 %v4524
        %v4781 = vunpack.c.l.b16 %v4525
        %v4782 = vunpack.c.h.b16 %v4525
        %v4783 = vunpack.c.l.b16 %v4526
        %v4784 = vunpack.c.l.b16 %v4527
        %v4785 = vunpack.c.h.b16 %v4527
        %v4786 = vunpack.c.l.b16 %v4528
        %v4787 = vunpack.c.h.b16 %v4528
        %v4788 = vunpack.c.l.b16 %v4529
        %v4789 = vunpack.c.l.b16 %v4530
        %v4790 = vunpack.c.h.b16 %v4530
        %v4791 = vunpack.c.l.b16 %v4531
        %v4792 = vunpack.c.h.b16 %v4531
        %v4793 = vunpack.c.l.b16 %v4532
        %v4794 = vunpack.c.l.b16 %v4533
        %v4795 = vunpack.c.h.b16 %v4533
        %v4796 = vunpack.c.l.b16 %v4534
        %v4797 = vunpack.c.h.b16 %v4534
        %v4798 = vunpack.c.l.b16 %v4535
        %v4799 = vunpack.c.l.b16 %v4536
        %v4800 = vunpack.c.h.b16 %v4536
        %v4801 = vunpack.c.l.b16 %v4537
        %v4802 = vunpack.c.h.b16 %v4537
        %v4803 = vunpack.c.l.b16 %v4538
        %v4804 = vunpack.c.l.b16 %v4539
        %v4805 = vunpack.c.h.b16 %v4539
        %v4806 = vunpack.c.l.b16 %v4540
        %v4807 = vunpack.c.h.b16 %v4540
        %v4808 = vunpack.c.l.b16 %v4541
        %v4809 = vunpack.c.l.b16 %v4542
        %v4810 = vunpack.c.h.b16 %v4542
        %v4811 = vunpack.c.l.b16 %v4543
        %v4812 = vunpack.c.h.b16 %v4543
        %v4813 = vunpack.c.l.b16 %v4544
        %v4814 = vunpack.c.l.b16 %v4545
        %v4815 = vunpack.c.h.b16 %v4545
        %v4816 = vunpack.c.l.b16 %v4546
        %v4817 = vunpack.c.h.b16 %v4546
        %v4818 = vunpack.c.l.b16 %v4547
        %v4819 = vunpack.c.l.b16 %v4548
        %v4820 = vunpack.c.h.b16 %v4548
        %v4821 = vunpack.c.l.b16 %v4549
        %v4822 = vunpack.c.h.b16 %v4549
        %v4823 = vunpack.c.l.b16 %v4550
        %v4824 = vunpack.c.l.b16 %v4551
        %v4825 = vunpack.c.h.b16 %v4551
        %v4826 = vunpack.c.l.b16 %v4552
        %v4827 = vunpack.c.h.b16 %v4552
        %v4828 = vunpack.c.l.b16 %v4553
        %v4829 = vpack.c.b16 %v4674, %v4669
        %v4830 = vpack.c.b16 %v4675, %v4670
        %v4831 = vpack.c.b16 %v4676, %v4671
        %v4832 = vpack.c.b16 %v4677, %v4672
        %v4833 = vpack.c.b16 %v4678, %v4673
        %v4834 = vpack.c.b16 %v4684, %v4679
        %v4835 = vpack.c.b16 %v4685, %v4680
        %v4836 = vpack.c.b16 %v4686, %v4681
        %v4837 = vpack.c.b16 %v4687, %v4682
        %v4838 = vpack.c.b16 %v4688, %v4683
        %v4839 = vpack.c.b16 %v4694, %v4689
        %v4840 = vpack.c.b16 %v4695, %v4690
        %v4841 = vpack.c.b16 %v4696, %v4691
        %v4842 = vpack.c.b16 %v4697, %v4692
        %v4843 = vpack.c.b16 %v4698, %v4693
        %v4844 = vpack.c.b16 %v4704, %v4699
        %v4845 = vpack.c.b16 %v4705, %v4700
        %v4846 = vpack.c.b16 %v4706, %v4701
        %v4847 = vpack.c.b16 %v4707, %v4702
        %v4848 = vpack.c.b16 %v4708, %v4703
        %v4849 = vpack.c.b16 %v4714, %v4709
        %v4850 = vpack.c.b16 %v4715, %v4710
        %v4851 = vpack.c.b16 %v4716, %v4711
        %v4852 = vpack.c.b16 %v4717, %v4712
        %v4853 = vpack.c.b16 %v4718, %v4713
        %v4854 = vpack.c.b16 %v4724, %v4719
        %v4855 = vpack.c.b16 %v4725, %v4720
        %v4856 = vpack.c.b16 %v4726, %v4721
        %v4857 = vpack.c.b16 %v4727, %v4722
        %v4858 = vpack.c.b16 %v4728, %v4723
        %v4859 = vpack.c.b16 %v4734, %v4729
        %v4860 = vpack.c.b16 %v4735, %v4730
        %v4861 = vpack.c.b16 %v4736, %v4731
        %v4862 = vpack.c.b16 %v4737, %v4732
        %v4863 = vpack.c.b16 %v4738, %v4733
        %v4864 = vpack.c.b16 %v4744, %v4739
        %v4865 = vpack.c.b16 %v4745, %v4740
        %v4866 = vpack.c.b16 %v4746, %v4741
        %v4867 = vpack.c.b16 %v4747, %v4742
        %v4868 = vpack.c.b16 %v4748, %v4743
        %v4869 = vpack.c.b16 %v4754, %v4749
        %v4870 = vpack.c.b16 %v4755, %v4750
        %v4871 = vpack.c.b16 %v4756, %v4751
        %v4872 = vpack.c.b16 %v4757, %v4752
        %v4873 = vpack.c.b16 %v4758, %v4753
        %v4874 = vpack.c.b16 %v4764, %v4759
        %v4875 = vpack.c.b16 %v4765, %v4760
        %v4876 = vpack.c.b16 %v4766, %v4761
        %v4877 = vpack.c.b16 %v4767, %v4762
        %v4878 = vpack.c.b16 %v4768, %v4763
        %v4879 = vpack.c.b16 %v4774, %v4769
        %v4880 = vpack.c.b16 %v4775, %v4770
        %v4881 = vpack.c.b16 %v4776, %v4771
        %v4882 = vpack.c.b16 %v4777, %v4772
        %v4883 = vpack.c.b16 %v4778, %v4773
        %v4884 = vpack.c.b16 %v4784, %v4779
        %v4885 = vpack.c.b16 %v4785, %v4780
        %v4886 = vpack.c.b16 %v4786, %v4781
        %v4887 = vpack.c.b16 %v4787, %v4782
        %v4888 = vpack.c.b16 %v4788, %v4783
        %v4889 = vpack.c.b16 %v4794, %v4789
        %v4890 = vpack.c.b16 %v4795, %v4790
        %v4891 = vpack.c.b16 %v4796, %v4791
        %v4892 = vpack.c.b16 %v4797, %v4792
        %v4893 = vpack.c.b16 %v4798, %v4793
        %v4894 = vpack.c.b16 %v4804, %v4799
        %v4895 = vpack.c.b16 %v4805, %v4800
        %v4896 = vpack.c.b16 %v4806, %v4801
        %v4897 = vpack.c.b16 %v4807, %v4802
        %v4898 = vpack.c.b16 %v4808, %v4803
        %v4899 = vpack.c.b16 %v4814, %v4809
        %v4900 = vpack.c.b16 %v4815, %v4810
        %v4901 = vpack.c.b16 %v4816, %v4811
        %v4902 = vpack.c.b16 %v4817, %v4812
        %v4903 = vpack.c.b16 %v4818, %v4813
        %v4904 = vpack.c.b16 %v4824, %v4819
        %v4905 = vpack.c.b16 %v4825, %v4820
        %v4906 = vpack.c.b16 %v4826, %v4821
        %v4907 = vpack.c.b16 %v4827, %v4822
        %v4908 = vpack.c.b16 %v4828, %v4823
        %4989 = vmatprep.subr.bf16.mxu0 %v4830
        %4990 = vmatpush1.bf16.msra.mxu0 %v4829
        %4991 = vmatprep.subr.bf16.mxu0 %v4835
        %4992 = vmatpush1.bf16.msra.mxu0 %v4834
        %4993 = vmatprep.subr.bf16.mxu0 %v4840
        %4994 = vmatpush1.bf16.msra.mxu0 %v4839
        %4995 = vmatprep.subr.bf16.mxu0 %v4845
        %4996 = vmatpush1.bf16.msra.mxu0 %v4844
        %4997 = vmatprep.subr.bf16.mxu0 %v4850
        %4998 = vmatpush1.bf16.msra.mxu0 %v4849
        %4999 = vmatprep.subr.bf16.mxu0 %v4855
        %5000 = vmatpush1.bf16.msra.mxu0 %v4854
        %5001 = vmatprep.subr.bf16.mxu0 %v4860
        %5002 = vmatpush1.bf16.msra.mxu0 %v4859
        %5003 = vmatprep.subr.bf16.mxu0 %v4865
        %5004 = vmatpush1.bf16.msra.mxu0 %v4864
        %5005 = vmatprep.subr.bf16.mxu0 %v4870
        %5006 = vmatpush1.bf16.msra.mxu0 %v4869
        %5007 = vmatprep.subr.bf16.mxu0 %v4875
        %5008 = vmatpush1.bf16.msra.mxu0 %v4874
        %5009 = vmatprep.subr.bf16.mxu0 %v4880
        %5010 = vmatpush1.bf16.msra.mxu0 %v4879
        %5011 = vmatprep.subr.bf16.mxu0 %v4885
        %5012 = vmatpush1.bf16.msra.mxu0 %v4884
        %5013 = vmatprep.subr.bf16.mxu0 %v4890
        %5014 = vmatpush1.bf16.msra.mxu0 %v4889
        %5015 = vmatprep.subr.bf16.mxu0 %v4895
        %5016 = vmatpush1.bf16.msra.mxu0 %v4894
        %5017 = vmatprep.subr.bf16.mxu0 %v4900
        %5018 = vmatpush1.bf16.msra.mxu0 %v4899
        %5019 = vmatprep.subr.bf16.mxu0 %v4905
        %5020 = vmatpush1.bf16.msra.mxu0 %v4904
        %5021 = vmatprep.mubr.bf16.mxu0 %v4568
        %5022 = vmatmul.mubr.bf16.gmra.mrb[0].mxu0 %v4561
        %v5023 = vpop.f32.mrb[0].mxu0
        %v5024 = vadd.f32 0.0, %v5023
        %v5025 = vpop.f32.mrb[0].mxu0
        %v5026 = vadd.f32 0.0, %v5025
        %v5027 = vpop.f32.mrb[0].mxu0
        %v5028 = vadd.f32 0.0, %v5027
        %v5029 = vpop.f32.mrb[0].mxu0
        %v5030 = vadd.f32 0.0, %v5029
        %5031 = vmatprep.mubr.bf16.mxu0 %v4567
        %5032 = vmatmul.mubr.bf16.gmra.mrb[0].mxu0 %v4560
        %v5033 = vpop.f32.mrb[0].mxu0
        %v5034 = vadd.f32 0.0, %v5033
        %v5035 = vpop.f32.mrb[0].mxu0
        %v5036 = vadd.f32 0.0, %v5035
        %v5037 = vpop.f32.mrb[0].mxu0
        %v5038 = vpop.f32.mrb[0].mxu0
        %5039 = vdwg.mxu0
        %5040 = vmatprep.subr.bf16.mxu0 %v4832
        %5041 = vmatpush1.bf16.msra.mxu0 %v4831
        %5042 = vmatprep.subr.bf16.mxu0 %v4837
        %5043 = vmatpush1.bf16.msra.mxu0 %v4836
        %5044 = vmatprep.subr.bf16.mxu0 %v4842
        %5045 = vmatpush1.bf16.msra.mxu0 %v4841
        %5046 = vmatprep.subr.bf16.mxu0 %v4847
        %5047 = vmatpush1.bf16.msra.mxu0 %v4846
        %5048 = vmatprep.subr.bf16.mxu0 %v4852
        %5049 = vmatpush1.bf16.msra.mxu0 %v4851
        %5050 = vmatprep.subr.bf16.mxu0 %v4857
        %5051 = vmatpush1.bf16.msra.mxu0 %v4856
        %5052 = vmatprep.subr.bf16.mxu0 %v4862
        %5053 = vmatpush1.bf16.msra.mxu0 %v4861
        %5054 = vmatprep.subr.bf16.mxu0 %v4867
        %5055 = vmatpush1.bf16.msra.mxu0 %v4866
        %5056 = vmatprep.subr.bf16.mxu0 %v4872
        %5057 = vmatpush1.bf16.msra.mxu0 %v4871
        %5058 = vmatprep.subr.bf16.mxu0 %v4877
        %5059 = vmatpush1.bf16.msra.mxu0 %v4876
        %5060 = vmatprep.subr.bf16.mxu0 %v4882
        %5061 = vmatpush1.bf16.msra.mxu0 %v4881
        %5062 = vmatprep.subr.bf16.mxu0 %v4887
        %5063 = vmatpush1.bf16.msra.mxu0 %v4886
        %5064 = vmatprep.subr.bf16.mxu0 %v4892
        %5065 = vmatpush1.bf16.msra.mxu0 %v4891
        %5066 = vmatprep.subr.bf16.mxu0 %v4897
        %5067 = vmatpush1.bf16.msra.mxu0 %v4896
        %5068 = vmatprep.subr.bf16.mxu0 %v4902
        %5069 = vmatpush1.bf16.msra.mxu0 %v4901
        %5070 = vmatprep.subr.bf16.mxu0 %v4907
        %5071 = vmatpush1.bf16.msra.mxu0 %v4906
        %5072 = vmatprep.mubr.bf16.mxu0 %v4568
        %5073 = vmatmul.mubr.bf16.gmra.mrb[0].mxu0 %v4561
        %v5074 = vpop.f32.mrb[0].mxu0
        %v5075 = vadd.f32 0.0, %v5074
        %v5076 = vpop.f32.mrb[0].mxu0
        %v5077 = vadd.f32 0.0, %v5076
        %v5078 = vpop.f32.mrb[0].mxu0
        %v5079 = vadd.f32 0.0, %v5078
        %v5080 = vpop.f32.mrb[0].mxu0
        %v5081 = vadd.f32 0.0, %v5080
        %5082 = vmatprep.mubr.bf16.mxu0 %v4567
        %5083 = vmatmul.mubr.bf16.gmra.mrb[0].mxu0 %v4560
        %v5084 = vpop.f32.mrb[0].mxu0
        %v5085 = vadd.f32 0.0, %v5084
        %v5086 = vpop.f32.mrb[0].mxu0
        %v5087 = vadd.f32 0.0, %v5086
        %v5088 = vpop.f32.mrb[0].mxu0
        %v5089 = vpop.f32.mrb[0].mxu0
        %5090 = vdwg.mxu0
        %5091 = vmatprep.subr.bf16.mxu0 0
        %5092 = vmatpush1.bf16.msra.mxu0 %v4833
        %5093 = vmatprep.subr.bf16.mxu0 0
        %5094 = vmatpush1.bf16.msra.mxu0 %v4838
        %5095 = vmatprep.subr.bf16.mxu0 0
        %5096 = vmatpush1.bf16.msra.mxu0 %v4843
        %5097 = vmatprep.subr.bf16.mxu0 0
        %5098 = vmatpush1.bf16.msra.mxu0 %v4848
        %5099 = vmatprep.subr.bf16.mxu0 0
        %5100 = vmatpush1.bf16.msra.mxu0 %v4853
        %5101 = vmatprep.subr.bf16.mxu0 0
        %5102 = vmatpush1.bf16.msra.mxu0 %v4858
        %5103 = vmatprep.subr.bf16.mxu0 0
        %5104 = vmatpush1.bf16.msra.mxu0 %v4863
        %5105 = vmatprep.subr.bf16.mxu0 0
        %5106 = vmatpush1.bf16.msra.mxu0 %v4868
        %5107 = vmatprep.subr.bf16.mxu0 0
        %5108 = vmatpush1.bf16.msra.mxu0 %v4873
        %5109 = vmatprep.subr.bf16.mxu0 0
        %5110 = vmatpush1.bf16.msra.mxu0 %v4878
        %5111 = vmatprep.subr.bf16.mxu0 0
        %5112 = vmatpush1.bf16.msra.mxu0 %v4883
        %5113 = vmatprep.subr.bf16.mxu0 0
        %5114 = vmatpush1.bf16.msra.mxu0 %v4888
        %5115 = vmatprep.subr.bf16.mxu0 0
        %5116 = vmatpush1.bf16.msra.mxu0 %v4893
        %5117 = vmatprep.subr.bf16.mxu0 0
        %5118 = vmatpush1.bf16.msra.mxu0 %v4898
        %5119 = vmatprep.subr.bf16.mxu0 0
        %5120 = vmatpush1.bf16.msra.mxu0 %v4903
        %5121 = vmatprep.subr.bf16.mxu0 0
        %5122 = vmatpush1.bf16.msra.mxu0 %v4908
        %5123 = vmatprep.mubr.bf16.mxu0 %v4568
        %5124 = vmatmul.mubr.bf16.gmra.mrb[0].mxu0 %v4561
        %v5125 = vpop.f32.mrb[0].mxu0
        %v5126 = vadd.f32 0.0, %v5125
        %v5127 = vpop.f32.mrb[0].mxu0
        %v5128 = vpop.f32.mrb[0].mxu0
        %v5129 = vadd.f32 0.0, %v5128
        %v5130 = vpop.f32.mrb[0].mxu0
        %5131 = vmatprep.mubr.bf16.mxu0 %v4567
        %5132 = vmatmul.mubr.bf16.gmra.mrb[0].mxu0 %v4560
        %v5133 = vpop.f32.mrb[0].mxu0
        %v5134 = vadd.f32 0.0, %v5133
        %v5135 = vpop.f32.mrb[0].mxu0
        %v5136 = vpop.f32.mrb[0].mxu0
        %v5137 = vpop.f32.mrb[0].mxu0
        %5138 = vdwg.mxu0
        %v5139 = vadd.f32 %v3766, %v5024
        %v5140 = vadd.f32 %v3767, %v5026
        %v5141 = vadd.f32 %v3768, %v5075
        %v5142 = vadd.f32 %v3769, %v5077
        %v5143 = vadd.f32 %v3770, %v5126
        %v5144 = vadd.f32 %v3771, %v5028
        %v5145 = vadd.f32 %v3772, %v5030
        %v5146 = vadd.f32 %v3773, %v5079
        %v5147 = vadd.f32 %v3774, %v5081
        %v5148 = vadd.f32 %v3775, %v5129
        %v5149 = vadd.f32 %v3776, %v5034
        %v5150 = vadd.f32 %v3777, %v5036
        %v5151 = vadd.f32 %v3778, %v5085
        %v5152 = vadd.f32 %v3779, %v5087
        %v5153 = vadd.f32 %v3780, %v5134
        %v5154 = vld [vmem:[#allocation7 + $0x780] sm:$0xff]
        %v5155 = vld [vmem:[#allocation7 + $0x788] sm:$0xff]
        %v5156 = vld [vmem:[#allocation7 + $0x790] sm:$0xf]
        %v5157 = vld [vmem:[#allocation7 + $0x794] sm:$0xff]
        %v5158 = vld [vmem:[#allocation7 + $0x79c] sm:$0xff]
        %v5159 = vld [vmem:[#allocation7 + $0x7a4] sm:$0xf]
        %v5160 = vld [vmem:[#allocation7 + $0x7a8] sm:$0xff]
        %v5161 = vld [vmem:[#allocation7 + $0x7b0] sm:$0xff]
        %v5162 = vld [vmem:[#allocation7 + $0x7b8] sm:$0xf]
        %v5163 = vld [vmem:[#allocation7 + $0x7bc] sm:$0xff]
        %v5164 = vld [vmem:[#allocation7 + $0x7c4] sm:$0xff]
        %v5165 = vld [vmem:[#allocation7 + $0x7cc] sm:$0xf]
        %v5166 = vld [vmem:[#allocation7 + $0x7d0] sm:$0xff]
        %v5167 = vld [vmem:[#allocation7 + $0x7d8] sm:$0xff]
        %v5168 = vld [vmem:[#allocation7 + $0x7e0] sm:$0xf]
        %v5169 = vld [vmem:[#allocation7 + $0x7e4] sm:$0xff]
        %v5170 = vld [vmem:[#allocation7 + $0x7ec] sm:$0xff]
        %v5171 = vld [vmem:[#allocation7 + $0x7f4] sm:$0xf]
        %v5172 = vld [vmem:[#allocation7 + $0x7f8] sm:$0xff]
        %v5173 = vld [vmem:[#allocation7 + $0x800] sm:$0xff]
        %v5174 = vld [vmem:[#allocation7 + $0x808] sm:$0xf]
        %v5175 = vld [vmem:[#allocation7 + $0x80c] sm:$0xff]
        %v5176 = vld [vmem:[#allocation7 + $0x814] sm:$0xff]
        %v5177 = vld [vmem:[#allocation7 + $0x81c] sm:$0xf]
        %v5178 = vld [vmem:[#allocation7 + $0x820] sm:$0xff]
        %v5179 = vld [vmem:[#allocation7 + $0x828] sm:$0xff]
        %v5180 = vld [vmem:[#allocation7 + $0x830] sm:$0xf]
        %v5181 = vld [vmem:[#allocation7 + $0x834] sm:$0xff]
        %v5182 = vld [vmem:[#allocation7 + $0x83c] sm:$0xff]
        %v5183 = vld [vmem:[#allocation7 + $0x844] sm:$0xf]
        %v5184 = vld [vmem:[#allocation7 + $0x848] sm:$0xff]
        %v5185 = vld [vmem:[#allocation7 + $0x850] sm:$0xff]
        %v5186 = vld [vmem:[#allocation7 + $0x858] sm:$0xf]
        %v5187 = vld [vmem:[#allocation7 + $0x85c] sm:$0xff]
        %v5188 = vld [vmem:[#allocation7 + $0x864] sm:$0xff]
        %v5189 = vld [vmem:[#allocation7 + $0x86c] sm:$0xf]
        %v5190 = vld [vmem:[#allocation7 + $0x870] sm:$0xff]
        %v5191 = vld [vmem:[#allocation7 + $0x878] sm:$0xff]
        %v5192 = vld [vmem:[#allocation7 + $0x880] sm:$0xf]
        %v5193 = vld [vmem:[#allocation7 + $0x884] sm:$0xff]
        %v5194 = vld [vmem:[#allocation7 + $0x88c] sm:$0xff]
        %v5195 = vld [vmem:[#allocation7 + $0x894] sm:$0xf]
        %v5196 = vld [vmem:[#allocation7 + $0x898] sm:$0xff]
        %v5197 = vld [vmem:[#allocation7 + $0x8a0] sm:$0xff]
        %v5198 = vld [vmem:[#allocation7 + $0x8a8] sm:$0xf]
        %v5199 = vld [vmem:[#allocation7 + $0x8ac] sm:$0xff]
        %v5200 = vld [vmem:[#allocation7 + $0x8b4] sm:$0xff]
        %v5201 = vld [vmem:[#allocation7 + $0x8bc] sm:$0xf]
        %v5202 = vld [vmem:[#allocation7 + $0x8c0] sm:$0xff]
        %v5203 = vld [vmem:[#allocation7 + $0x8c8] sm:$0xff]
        %v5204 = vld [vmem:[#allocation7 + $0x8d0] sm:$0xf]
        %v5205 = vld [vmem:[#allocation7 + $0x8d4] sm:$0xff]
        %v5206 = vld [vmem:[#allocation7 + $0x8dc] sm:$0xff]
        %v5207 = vld [vmem:[#allocation7 + $0x8e4] sm:$0xf]
        %v5208 = vld [vmem:[#allocation7 + $0x8e8] sm:$0xff]
        %v5209 = vld [vmem:[#allocation7 + $0x8f0] sm:$0xff]
        %v5210 = vld [vmem:[#allocation7 + $0x8f8] sm:$0xf]
        %v5211 = vld [vmem:[#allocation7 + $0x8fc] sm:$0xff]
        %v5212 = vld [vmem:[#allocation7 + $0x904] sm:$0xff]
        %v5213 = vld [vmem:[#allocation7 + $0x90c] sm:$0xf]
        %v5214 = vld [vmem:[#allocation7 + $0x910] sm:$0xff]
        %v5215 = vld [vmem:[#allocation7 + $0x918] sm:$0xff]
        %v5216 = vld [vmem:[#allocation7 + $0x920] sm:$0xf]
        %v5217 = vld [vmem:[#allocation7 + $0x924] sm:$0xff]
        %v5218 = vld [vmem:[#allocation7 + $0x92c] sm:$0xff]
        %v5219 = vld [vmem:[#allocation7 + $0x934] sm:$0xf]
        %v5220 = vld [vmem:[#allocation7 + $0x938] sm:$0xff]
        %v5221 = vld [vmem:[#allocation7 + $0x940] sm:$0xff]
        %v5222 = vld [vmem:[#allocation7 + $0x948] sm:$0xf]
        %v5223 = vld [vmem:[#allocation7 + $0x94c] sm:$0xff]
        %v5224 = vld [vmem:[#allocation7 + $0x954] sm:$0xff]
        %v5225 = vld [vmem:[#allocation7 + $0x95c] sm:$0xf]
        %v5226 = vld [vmem:[#allocation7 + $0x960] sm:$0xff]
        %v5227 = vld [vmem:[#allocation7 + $0x968] sm:$0xff]
        %v5228 = vld [vmem:[#allocation7 + $0x970] sm:$0xf]
        %v5229 = vld [vmem:[#allocation7 + $0x974] sm:$0xff]
        %v5230 = vld [vmem:[#allocation7 + $0x97c] sm:$0xff]
        %v5231 = vld [vmem:[#allocation7 + $0x984] sm:$0xf]
        %v5232 = vld [vmem:[#allocation7 + $0x988] sm:$0xff]
        %v5233 = vld [vmem:[#allocation7 + $0x990] sm:$0xff]
        %v5234 = vld [vmem:[#allocation7 + $0x998] sm:$0xf]
        %v5235 = vld [vmem:[#allocation7 + $0x99c] sm:$0xff]
        %v5236 = vld [vmem:[#allocation7 + $0x9a4] sm:$0xff]
        %v5237 = vld [vmem:[#allocation7 + $0x9ac] sm:$0xf]
        %v5238 = vld [vmem:[#allocation7 + $0x9b0] sm:$0xff]
        %v5239 = vld [vmem:[#allocation7 + $0x9b8] sm:$0xff]
        %v5240 = vld [vmem:[#allocation7 + $0x9c0] sm:$0xf]
        %v5241 = vld [vmem:[#allocation7 + $0x9c4] sm:$0xff]
        %v5242 = vld [vmem:[#allocation7 + $0x9cc] sm:$0xff]
        %v5243 = vld [vmem:[#allocation7 + $0x9d4] sm:$0xf]
        %v5244 = vld [vmem:[#allocation7 + $0x9d8] sm:$0xff]
        %v5245 = vld [vmem:[#allocation7 + $0x9e0] sm:$0xff]
        %v5246 = vld [vmem:[#allocation7 + $0x9e8] sm:$0xf]
        %v5247 = vld [vmem:[#allocation7 + $0x9ec] sm:$0xff]
        %v5248 = vld [vmem:[#allocation7 + $0x9f4] sm:$0xff]
        %v5249 = vld [vmem:[#allocation7 + $0x9fc] sm:$0xf]
        %v5346 = vunpack.c.l.b16 %v5154
        %v5347 = vunpack.c.h.b16 %v5154
        %v5348 = vunpack.c.l.b16 %v5155
        %v5349 = vunpack.c.h.b16 %v5155
        %v5350 = vunpack.c.l.b16 %v5156
        %v5351 = vunpack.c.l.b16 %v5157
        %v5352 = vunpack.c.h.b16 %v5157
        %v5353 = vunpack.c.l.b16 %v5158
        %v5354 = vunpack.c.h.b16 %v5158
        %v5355 = vunpack.c.l.b16 %v5159
        %v5356 = vunpack.c.l.b16 %v5160
        %v5357 = vunpack.c.h.b16 %v5160
        %v5358 = vunpack.c.l.b16 %v5161
        %v5359 = vunpack.c.h.b16 %v5161
        %v5360 = vunpack.c.l.b16 %v5162
        %v5361 = vunpack.c.l.b16 %v5163
        %v5362 = vunpack.c.h.b16 %v5163
        %v5363 = vunpack.c.l.b16 %v5164
        %v5364 = vunpack.c.h.b16 %v5164
        %v5365 = vunpack.c.l.b16 %v5165
        %v5366 = vunpack.c.l.b16 %v5166
        %v5367 = vunpack.c.h.b16 %v5166
        %v5368 = vunpack.c.l.b16 %v5167
        %v5369 = vunpack.c.h.b16 %v5167
        %v5370 = vunpack.c.l.b16 %v5168
        %v5371 = vunpack.c.l.b16 %v5169
        %v5372 = vunpack.c.h.b16 %v5169
        %v5373 = vunpack.c.l.b16 %v5170
        %v5374 = vunpack.c.h.b16 %v5170
        %v5375 = vunpack.c.l.b16 %v5171
        %v5376 = vunpack.c.l.b16 %v5172
        %v5377 = vunpack.c.h.b16 %v5172
        %v5378 = vunpack.c.l.b16 %v5173
        %v5379 = vunpack.c.h.b16 %v5173
        %v5380 = vunpack.c.l.b16 %v5174
        %v5381 = vunpack.c.l.b16 %v5175
        %v5382 = vunpack.c.h.b16 %v5175
        %v5383 = vunpack.c.l.b16 %v5176
        %v5384 = vunpack.c.h.b16 %v5176
        %v5385 = vunpack.c.l.b16 %v5177
        %v5386 = vunpack.c.l.b16 %v5178
        %v5387 = vunpack.c.h.b16 %v5178
        %v5388 = vunpack.c.l.b16 %v5179
        %v5389 = vunpack.c.h.b16 %v5179
        %v5390 = vunpack.c.l.b16 %v5180
        %v5391 = vunpack.c.l.b16 %v5181
        %v5392 = vunpack.c.h.b16 %v5181
        %v5393 = vunpack.c.l.b16 %v5182
        %v5394 = vunpack.c.h.b16 %v5182
        %v5395 = vunpack.c.l.b16 %v5183
        %v5396 = vunpack.c.l.b16 %v5184
        %v5397 = vunpack.c.h.b16 %v5184
        %v5398 = vunpack.c.l.b16 %v5185
        %v5399 = vunpack.c.h.b16 %v5185
        %v5400 = vunpack.c.l.b16 %v5186
        %v5401 = vunpack.c.l.b16 %v5187
        %v5402 = vunpack.c.h.b16 %v5187
        %v5403 = vunpack.c.l.b16 %v5188
        %v5404 = vunpack.c.h.b16 %v5188
        %v5405 = vunpack.c.l.b16 %v5189
        %v5406 = vunpack.c.l.b16 %v5190
        %v5407 = vunpack.c.h.b16 %v5190
        %v5408 = vunpack.c.l.b16 %v5191
        %v5409 = vunpack.c.h.b16 %v5191
        %v5410 = vunpack.c.l.b16 %v5192
        %v5411 = vunpack.c.l.b16 %v5193
        %v5412 = vunpack.c.h.b16 %v5193
        %v5413 = vunpack.c.l.b16 %v5194
        %v5414 = vunpack.c.h.b16 %v5194
        %v5415 = vunpack.c.l.b16 %v5195
        %v5416 = vunpack.c.l.b16 %v5196
        %v5417 = vunpack.c.h.b16 %v5196
        %v5418 = vunpack.c.l.b16 %v5197
        %v5419 = vunpack.c.h.b16 %v5197
        %v5420 = vunpack.c.l.b16 %v5198
        %v5421 = vunpack.c.l.b16 %v5199
        %v5422 = vunpack.c.h.b16 %v5199
        %v5423 = vunpack.c.l.b16 %v5200
        %v5424 = vunpack.c.h.b16 %v5200
        %v5425 = vunpack.c.l.b16 %v5201
        %v5426 = vunpack.c.l.b16 %v5202
        %v5427 = vunpack.c.h.b16 %v5202
        %v5428 = vunpack.c.l.b16 %v5203
        %v5429 = vunpack.c.h.b16 %v5203
        %v5430 = vunpack.c.l.b16 %v5204
        %v5431 = vunpack.c.l.b16 %v5205
        %v5432 = vunpack.c.h.b16 %v5205
        %v5433 = vunpack.c.l.b16 %v5206
        %v5434 = vunpack.c.h.b16 %v5206
        %v5435 = vunpack.c.l.b16 %v5207
        %v5436 = vunpack.c.l.b16 %v5208
        %v5437 = vunpack.c.h.b16 %v5208
        %v5438 = vunpack.c.l.b16 %v5209
        %v5439 = vunpack.c.h.b16 %v5209
        %v5440 = vunpack.c.l.b16 %v5210
        %v5441 = vunpack.c.l.b16 %v5211
        %v5442 = vunpack.c.h.b16 %v5211
        %v5443 = vunpack.c.l.b16 %v5212
        %v5444 = vunpack.c.h.b16 %v5212
        %v5445 = vunpack.c.l.b16 %v5213
        %v5446 = vunpack.c.l.b16 %v5214
        %v5447 = vunpack.c.h.b16 %v5214
        %v5448 = vunpack.c.l.b16 %v5215
        %v5449 = vunpack.c.h.b16 %v5215
        %v5450 = vunpack.c.l.b16 %v5216
        %v5451 = vunpack.c.l.b16 %v5217
        %v5452 = vunpack.c.h.b16 %v5217
        %v5453 = vunpack.c.l.b16 %v5218
        %v5454 = vunpack.c.h.b16 %v5218
        %v5455 = vunpack.c.l.b16 %v5219
        %v5456 = vunpack.c.l.b16 %v5220
        %v5457 = vunpack.c.h.b16 %v5220
        %v5458 = vunpack.c.l.b16 %v5221
        %v5459 = vunpack.c.h.b16 %v5221
        %v5460 = vunpack.c.l.b16 %v5222
        %v5461 = vunpack.c.l.b16 %v5223
        %v5462 = vunpack.c.h.b16 %v5223
        %v5463 = vunpack.c.l.b16 %v5224
        %v5464 = vunpack.c.h.b16 %v5224
        %v5465 = vunpack.c.l.b16 %v5225
        %v5466 = vunpack.c.l.b16 %v5226
        %v5467 = vunpack.c.h.b16 %v5226
        %v5468 = vunpack.c.l.b16 %v5227
        %v5469 = vunpack.c.h.b16 %v5227
        %v5470 = vunpack.c.l.b16 %v5228
        %v5471 = vunpack.c.l.b16 %v5229
        %v5472 = vunpack.c.h.b16 %v5229
        %v5473 = vunpack.c.l.b16 %v5230
        %v5474 = vunpack.c.h.b16 %v5230
        %v5475 = vunpack.c.l.b16 %v5231
        %v5476 = vunpack.c.l.b16 %v5232
        %v5477 = vunpack.c.h.b16 %v5232
        %v5478 = vunpack.c.l.b16 %v5233
        %v5479 = vunpack.c.h.b16 %v5233
        %v5480 = vunpack.c.l.b16 %v5234
        %v5481 = vunpack.c.l.b16 %v5235
        %v5482 = vunpack.c.h.b16 %v5235
        %v5483 = vunpack.c.l.b16 %v5236
        %v5484 = vunpack.c.h.b16 %v5236
        %v5485 = vunpack.c.l.b16 %v5237
        %v5486 = vunpack.c.l.b16 %v5238
        %v5487 = vunpack.c.h.b16 %v5238
        %v5488 = vunpack.c.l.b16 %v5239
        %v5489 = vunpack.c.h.b16 %v5239
        %v5490 = vunpack.c.l.b16 %v5240
        %v5491 = vunpack.c.l.b16 %v5241
        %v5492 = vunpack.c.h.b16 %v5241
        %v5493 = vunpack.c.l.b16 %v5242
        %v5494 = vunpack.c.h.b16 %v5242
        %v5495 = vunpack.c.l.b16 %v5243
        %v5496 = vunpack.c.l.b16 %v5244
        %v5497 = vunpack.c.h.b16 %v5244
        %v5498 = vunpack.c.l.b16 %v5245
        %v5499 = vunpack.c.h.b16 %v5245
        %v5500 = vunpack.c.l.b16 %v5246
        %v5501 = vunpack.c.l.b16 %v5247
        %v5502 = vunpack.c.h.b16 %v5247
        %v5503 = vunpack.c.l.b16 %v5248
        %v5504 = vunpack.c.h.b16 %v5248
        %v5505 = vunpack.c.l.b16 %v5249
        %v5506 = vpack.c.b16 %v5351, %v5346
        %v5507 = vpack.c.b16 %v5352, %v5347
        %v5508 = vpack.c.b16 %v5353, %v5348
        %v5509 = vpack.c.b16 %v5354, %v5349
        %v5510 = vpack.c.b16 %v5355, %v5350
        %v5511 = vpack.c.b16 %v5361, %v5356
        %v5512 = vpack.c.b16 %v5362, %v5357
        %v5513 = vpack.c.b16 %v5363, %v5358
        %v5514 = vpack.c.b16 %v5364, %v5359
        %v5515 = vpack.c.b16 %v5365, %v5360
        %v5516 = vpack.c.b16 %v5371, %v5366
        %v5517 = vpack.c.b16 %v5372, %v5367
        %v5518 = vpack.c.b16 %v5373, %v5368
        %v5519 = vpack.c.b16 %v5374, %v5369
        %v5520 = vpack.c.b16 %v5375, %v5370
        %v5521 = vpack.c.b16 %v5381, %v5376
        %v5522 = vpack.c.b16 %v5382, %v5377
        %v5523 = vpack.c.b16 %v5383, %v5378
        %v5524 = vpack.c.b16 %v5384, %v5379
        %v5525 = vpack.c.b16 %v5385, %v5380
        %v5526 = vpack.c.b16 %v5391, %v5386
        %v5527 = vpack.c.b16 %v5392, %v5387
        %v5528 = vpack.c.b16 %v5393, %v5388
        %v5529 = vpack.c.b16 %v5394, %v5389
        %v5530 = vpack.c.b16 %v5395, %v5390
        %v5531 = vpack.c.b16 %v5401, %v5396
        %v5532 = vpack.c.b16 %v5402, %v5397
        %v5533 = vpack.c.b16 %v5403, %v5398
        %v5534 = vpack.c.b16 %v5404, %v5399
        %v5535 = vpack.c.b16 %v5405, %v5400
        %v5536 = vpack.c.b16 %v5411, %v5406
        %v5537 = vpack.c.b16 %v5412, %v5407
        %v5538 = vpack.c.b16 %v5413, %v5408
        %v5539 = vpack.c.b16 %v5414, %v5409
        %v5540 = vpack.c.b16 %v5415, %v5410
        %v5541 = vpack.c.b16 %v5421, %v5416
        %v5542 = vpack.c.b16 %v5422, %v5417
        %v5543 = vpack.c.b16 %v5423, %v5418
        %v5544 = vpack.c.b16 %v5424, %v5419
        %v5545 = vpack.c.b16 %v5425, %v5420
        %v5546 = vpack.c.b16 %v5431, %v5426
        %v5547 = vpack.c.b16 %v5432, %v5427
        %v5548 = vpack.c.b16 %v5433, %v5428
        %v5549 = vpack.c.b16 %v5434, %v5429
        %v5550 = vpack.c.b16 %v5435, %v5430
        %v5551 = vpack.c.b16 %v5441, %v5436
        %v5552 = vpack.c.b16 %v5442, %v5437
        %v5553 = vpack.c.b16 %v5443, %v5438
        %v5554 = vpack.c.b16 %v5444, %v5439
        %v5555 = vpack.c.b16 %v5445, %v5440
        %v5556 = vpack.c.b16 %v5451, %v5446
        %v5557 = vpack.c.b16 %v5452, %v5447
        %v5558 = vpack.c.b16 %v5453, %v5448
        %v5559 = vpack.c.b16 %v5454, %v5449
        %v5560 = vpack.c.b16 %v5455, %v5450
        %v5561 = vpack.c.b16 %v5461, %v5456
        %v5562 = vpack.c.b16 %v5462, %v5457
        %v5563 = vpack.c.b16 %v5463, %v5458
        %v5564 = vpack.c.b16 %v5464, %v5459
        %v5565 = vpack.c.b16 %v5465, %v5460
        %v5566 = vpack.c.b16 %v5471, %v5466
        %v5567 = vpack.c.b16 %v5472, %v5467
        %v5568 = vpack.c.b16 %v5473, %v5468
        %v5569 = vpack.c.b16 %v5474, %v5469
        %v5570 = vpack.c.b16 %v5475, %v5470
        %v5571 = vpack.c.b16 %v5481, %v5476
        %v5572 = vpack.c.b16 %v5482, %v5477
        %v5573 = vpack.c.b16 %v5483, %v5478
        %v5574 = vpack.c.b16 %v5484, %v5479
        %v5575 = vpack.c.b16 %v5485, %v5480
        %v5576 = vpack.c.b16 %v5491, %v5486
        %v5577 = vpack.c.b16 %v5492, %v5487
        %v5578 = vpack.c.b16 %v5493, %v5488
        %v5579 = vpack.c.b16 %v5494, %v5489
        %v5580 = vpack.c.b16 %v5495, %v5490
        %v5581 = vpack.c.b16 %v5501, %v5496
        %v5582 = vpack.c.b16 %v5502, %v5497
        %v5583 = vpack.c.b16 %v5503, %v5498
        %v5584 = vpack.c.b16 %v5504, %v5499
        %v5585 = vpack.c.b16 %v5505, %v5500
        %5666 = vmatprep.subr.bf16.mxu0 %v5507
        %5667 = vmatpush1.bf16.msra.mxu0 %v5506
        %5668 = vmatprep.subr.bf16.mxu0 %v5512
        %5669 = vmatpush1.bf16.msra.mxu0 %v5511
        %5670 = vmatprep.subr.bf16.mxu0 %v5517
        %5671 = vmatpush1.bf16.msra.mxu0 %v5516
        %5672 = vmatprep.subr.bf16.mxu0 %v5522
        %5673 = vmatpush1.bf16.msra.mxu0 %v5521
        %5674 = vmatprep.subr.bf16.mxu0 %v5527
        %5675 = vmatpush1.bf16.msra.mxu0 %v5526
        %5676 = vmatprep.subr.bf16.mxu0 %v5532
        %5677 = vmatpush1.bf16.msra.mxu0 %v5531
        %5678 = vmatprep.subr.bf16.mxu0 %v5537
        %5679 = vmatpush1.bf16.msra.mxu0 %v5536
        %5680 = vmatprep.subr.bf16.mxu0 %v5542
        %5681 = vmatpush1.bf16.msra.mxu0 %v5541
        %5682 = vmatprep.subr.bf16.mxu0 %v5547
        %5683 = vmatpush1.bf16.msra.mxu0 %v5546
        %5684 = vmatprep.subr.bf16.mxu0 %v5552
        %5685 = vmatpush1.bf16.msra.mxu0 %v5551
        %5686 = vmatprep.subr.bf16.mxu0 %v5557
        %5687 = vmatpush1.bf16.msra.mxu0 %v5556
        %5688 = vmatprep.subr.bf16.mxu0 %v5562
        %5689 = vmatpush1.bf16.msra.mxu0 %v5561
        %5690 = vmatprep.subr.bf16.mxu0 %v5567
        %5691 = vmatpush1.bf16.msra.mxu0 %v5566
        %5692 = vmatprep.subr.bf16.mxu0 %v5572
        %5693 = vmatpush1.bf16.msra.mxu0 %v5571
        %5694 = vmatprep.subr.bf16.mxu0 %v5577
        %5695 = vmatpush1.bf16.msra.mxu0 %v5576
        %5696 = vmatprep.subr.bf16.mxu0 %v5582
        %5697 = vmatpush1.bf16.msra.mxu0 %v5581
        %5698 = vmatprep.mubr.bf16.mxu0 %v4568
        %5699 = vmatmul.mubr.bf16.gmra.mrb[0].mxu0 %v4561
        %v5700 = vpop.f32.mrb[0].mxu0
        %v5701 = vadd.f32 0.0, %v5700
        %v5702 = vpop.f32.mrb[0].mxu0
        %v5703 = vadd.f32 0.0, %v5702
        %v5704 = vpop.f32.mrb[0].mxu0
        %v5705 = vadd.f32 0.0, %v5704
        %v5706 = vpop.f32.mrb[0].mxu0
        %v5707 = vadd.f32 0.0, %v5706
        %5708 = vmatprep.mubr.bf16.mxu0 %v4567
        %5709 = vmatmul.mubr.bf16.gmra.mrb[0].mxu0 %v4560
        %v5710 = vpop.f32.mrb[0].mxu0
        %v5711 = vadd.f32 0.0, %v5710
        %v5712 = vpop.f32.mrb[0].mxu0
        %v5713 = vadd.f32 0.0, %v5712
        %v5714 = vpop.f32.mrb[0].mxu0
        %v5715 = vpop.f32.mrb[0].mxu0
        %5716 = vdwg.mxu0
        %5717 = vmatprep.subr.bf16.mxu0 %v5509
        %5718 = vmatpush1.bf16.msra.mxu0 %v5508
        %5719 = vmatprep.subr.bf16.mxu0 %v5514
        %5720 = vmatpush1.bf16.msra.mxu0 %v5513
        %5721 = vmatprep.subr.bf16.mxu0 %v5519
        %5722 = vmatpush1.bf16.msra.mxu0 %v5518
        %5723 = vmatprep.subr.bf16.mxu0 %v5524
        %5724 = vmatpush1.bf16.msra.mxu0 %v5523
        %5725 = vmatprep.subr.bf16.mxu0 %v5529
        %5726 = vmatpush1.bf16.msra.mxu0 %v5528
        %5727 = vmatprep.subr.bf16.mxu0 %v5534
        %5728 = vmatpush1.bf16.msra.mxu0 %v5533
        %5729 = vmatprep.subr.bf16.mxu0 %v5539
        %5730 = vmatpush1.bf16.msra.mxu0 %v5538
        %5731 = vmatprep.subr.bf16.mxu0 %v5544
        %5732 = vmatpush1.bf16.msra.mxu0 %v5543
        %5733 = vmatprep.subr.bf16.mxu0 %v5549
        %5734 = vmatpush1.bf16.msra.mxu0 %v5548
        %5735 = vmatprep.subr.bf16.mxu0 %v5554
        %5736 = vmatpush1.bf16.msra.mxu0 %v5553
        %5737 = vmatprep.subr.bf16.mxu0 %v5559
        %5738 = vmatpush1.bf16.msra.mxu0 %v5558
        %5739 = vmatprep.subr.bf16.mxu0 %v5564
        %5740 = vmatpush1.bf16.msra.mxu0 %v5563
        %5741 = vmatprep.subr.bf16.mxu0 %v5569
        %5742 = vmatpush1.bf16.msra.mxu0 %v5568
        %5743 = vmatprep.subr.bf16.mxu0 %v5574
        %5744 = vmatpush1.bf16.msra.mxu0 %v5573
        %5745 = vmatprep.subr.bf16.mxu0 %v5579
        %5746 = vmatpush1.bf16.msra.mxu0 %v5578
        %5747 = vmatprep.subr.bf16.mxu0 %v5584
        %5748 = vmatpush1.bf16.msra.mxu0 %v5583
        %5749 = vmatprep.mubr.bf16.mxu0 %v4568
        %5750 = vmatmul.mubr.bf16.gmra.mrb[0].mxu0 %v4561
        %v5751 = vpop.f32.mrb[0].mxu0
        %v5752 = vadd.f32 0.0, %v5751
        %v5753 = vpop.f32.mrb[0].mxu0
        %v5754 = vadd.f32 0.0, %v5753
        %v5755 = vpop.f32.mrb[0].mxu0
        %v5756 = vadd.f32 0.0, %v5755
        %v5757 = vpop.f32.mrb[0].mxu0
        %v5758 = vadd.f32 0.0, %v5757
        %5759 = vmatprep.mubr.bf16.mxu0 %v4567
        %5760 = vmatmul.mubr.bf16.gmra.mrb[0].mxu0 %v4560
        %v5761 = vpop.f32.mrb[0].mxu0
        %v5762 = vadd.f32 0.0, %v5761
        %v5763 = vpop.f32.mrb[0].mxu0
        %v5764 = vadd.f32 0.0, %v5763
        %v5765 = vpop.f32.mrb[0].mxu0
        %v5766 = vpop.f32.mrb[0].mxu0
        %5767 = vdwg.mxu0
        %5768 = vmatprep.subr.bf16.mxu0 0
        %5769 = vmatpush1.bf16.msra.mxu0 %v5510
        %5770 = vmatprep.subr.bf16.mxu0 0
        %5771 = vmatpush1.bf16.msra.mxu0 %v5515
        %5772 = vmatprep.subr.bf16.mxu0 0
        %5773 = vmatpush1.bf16.msra.mxu0 %v5520
        %5774 = vmatprep.subr.bf16.mxu0 0
        %5775 = vmatpush1.bf16.msra.mxu0 %v5525
        %5776 = vmatprep.subr.bf16.mxu0 0
        %5777 = vmatpush1.bf16.msra.mxu0 %v5530
        %5778 = vmatprep.subr.bf16.mxu0 0
        %5779 = vmatpush1.bf16.msra.mxu0 %v5535
        %5780 = vmatprep.subr.bf16.mxu0 0
        %5781 = vmatpush1.bf16.msra.mxu0 %v5540
        %5782 = vmatprep.subr.bf16.mxu0 0
        %5783 = vmatpush1.bf16.msra.mxu0 %v5545
        %5784 = vmatprep.subr.bf16.mxu0 0
        %5785 = vmatpush1.bf16.msra.mxu0 %v5550
        %5786 = vmatprep.subr.bf16.mxu0 0
        %5787 = vmatpush1.bf16.msra.mxu0 %v5555
        %5788 = vmatprep.subr.bf16.mxu0 0
        %5789 = vmatpush1.bf16.msra.mxu0 %v5560
        %5790 = vmatprep.subr.bf16.mxu0 0
        %5791 = vmatpush1.bf16.msra.mxu0 %v5565
        %5792 = vmatprep.subr.bf16.mxu0 0
        %5793 = vmatpush1.bf16.msra.mxu0 %v5570
        %5794 = vmatprep.subr.bf16.mxu0 0
        %5795 = vmatpush1.bf16.msra.mxu0 %v5575
        %5796 = vmatprep.subr.bf16.mxu0 0
        %5797 = vmatpush1.bf16.msra.mxu0 %v5580
        %5798 = vmatprep.subr.bf16.mxu0 0
        %5799 = vmatpush1.bf16.msra.mxu0 %v5585
        %5800 = vmatprep.mubr.bf16.mxu0 %v4568
        %5801 = vmatmul.mubr.bf16.gmra.mrb[0].mxu0 %v4561
        %v5802 = vpop.f32.mrb[0].mxu0
        %v5803 = vadd.f32 0.0, %v5802
        %v5804 = vpop.f32.mrb[0].mxu0
        %v5805 = vpop.f32.mrb[0].mxu0
        %v5806 = vadd.f32 0.0, %v5805
        %v5807 = vpop.f32.mrb[0].mxu0
        %5808 = vmatprep.mubr.bf16.mxu0 %v4567
        %5809 = vmatmul.mubr.bf16.gmra.mrb[0].mxu0 %v4560
        %v5810 = vpop.f32.mrb[0].mxu0
        %v5811 = vadd.f32 0.0, %v5810
        %v5812 = vpop.f32.mrb[0].mxu0
        %v5813 = vpop.f32.mrb[0].mxu0
        %v5814 = vpop.f32.mrb[0].mxu0
        %5815 = vdwg.mxu0
        %v5816 = vadd.f32 %v4443, %v5701
        %v5817 = vadd.f32 %v4444, %v5703
        %v5818 = vadd.f32 %v4445, %v5752
        %v5819 = vadd.f32 %v4446, %v5754
        %v5820 = vadd.f32 %v4447, %v5803
        %v5821 = vadd.f32 %v4448, %v5705
        %v5822 = vadd.f32 %v4449, %v5707
        %v5823 = vadd.f32 %v4450, %v5756
        %v5824 = vadd.f32 %v4451, %v5758
        %v5825 = vadd.f32 %v4452, %v5806
        %v5826 = vadd.f32 %v4453, %v5711
        %v5827 = vadd.f32 %v4454, %v5713
        %v5828 = vadd.f32 %v4455, %v5762
        %v5829 = vadd.f32 %v4456, %v5764
        %v5830 = vadd.f32 %v4457, %v5811
        %v5831 = vmul.f32 %v5139, %v5139
        %v5832 = vmul.f32 %v5140, %v5140
        %v5833 = vmul.f32 %v5141, %v5141
        %v5834 = vmul.f32 %v5142, %v5142
        %v5835 = vmul.f32 %v5143, %v5143
        %v5836 = vmul.f32 %v5144, %v5144
        %v5837 = vmul.f32 %v5145, %v5145
        %v5838 = vmul.f32 %v5146, %v5146
        %v5839 = vmul.f32 %v5147, %v5147
        %v5840 = vmul.f32 %v5148, %v5148
        %v5841 = vmul.f32 %v5149, %v5149
        %v5842 = vmul.f32 %v5150, %v5150
        %v5843 = vmul.f32 %v5151, %v5151
        %v5844 = vmul.f32 %v5152, %v5152
        %v5845 = vmul.f32 %v5153, %v5153
        %v5846 = vmul.f32 %v5816, %v5816
        %v5847 = vmul.f32 %v5817, %v5817
        %v5848 = vmul.f32 %v5818, %v5818
        %v5849 = vmul.f32 %v5819, %v5819
        %v5850 = vmul.f32 %v5820, %v5820
        %v5851 = vmul.f32 %v5821, %v5821
        %v5852 = vmul.f32 %v5822, %v5822
        %v5853 = vmul.f32 %v5823, %v5823
        %v5854 = vmul.f32 %v5824, %v5824
        %v5855 = vmul.f32 %v5825, %v5825
        %v5856 = vmul.f32 %v5826, %v5826
        %v5857 = vmul.f32 %v5827, %v5827
        %v5858 = vmul.f32 %v5828, %v5828
        %v5859 = vmul.f32 %v5829, %v5829
        %v5860 = vmul.f32 %v5830, %v5830
        %v5861 = vadd.f32 %v5831, %v5846
        %v5862 = vadd.f32 %v5832, %v5847
        %v5863 = vadd.f32 %v5833, %v5848
        %v5864 = vadd.f32 %v5834, %v5849
        %v5865 = vadd.f32 %v5835, %v5850
        %v5866 = vadd.f32 %v5836, %v5851
        %v5867 = vadd.f32 %v5837, %v5852
        %v5868 = vadd.f32 %v5838, %v5853
        %v5869 = vadd.f32 %v5839, %v5854
        %v5870 = vadd.f32 %v5840, %v5855
        %v5871 = vadd.f32 %v5841, %v5856
        %v5872 = vadd.f32 %v5842, %v5857
        %v5873 = vadd.f32 %v5843, %v5858
        %v5874 = vadd.f32 %v5844, %v5859
        %v5875 = vadd.f32 %v5845, %v5860
        %v5876 = vrsqrt.pop %v5861
        %v5877 = vmul.f32 %v5861, %v5876
        %vm5878 = vcmp.eq.f32.partialorder %v5861, inf
        %v5879 = vsel %vm5878, %v5861, %v5877
        %vm5880 = vcmp.eq.f32.partialorder %v5861, 0.0
        %v5881 = vand.u32 %v5861, 2147483648
        %v5882 = vsel %vm5880, %v5881, %v5879
        %v5883 = vrsqrt.pop %v5862
        %v5884 = vmul.f32 %v5862, %v5883
        %vm5885 = vcmp.eq.f32.partialorder %v5862, inf
        %v5886 = vsel %vm5885, %v5862, %v5884
        %vm5887 = vcmp.eq.f32.partialorder %v5862, 0.0
        %v5888 = vand.u32 %v5862, 2147483648
        %v5889 = vsel %vm5887, %v5888, %v5886
        %v5890 = vrsqrt.pop %v5863
        %v5891 = vmul.f32 %v5863, %v5890
        %vm5892 = vcmp.eq.f32.partialorder %v5863, inf
        %v5893 = vsel %vm5892, %v5863, %v5891
        %vm5894 = vcmp.eq.f32.partialorder %v5863, 0.0
        %v5895 = vand.u32 %v5863, 2147483648
        %v5896 = vsel %vm5894, %v5895, %v5893
        %v5897 = vrsqrt.pop %v5864
        %v5898 = vmul.f32 %v5864, %v5897
        %vm5899 = vcmp.eq.f32.partialorder %v5864, inf
        %v5900 = vsel %vm5899, %v5864, %v5898
        %vm5901 = vcmp.eq.f32.partialorder %v5864, 0.0
        %v5902 = vand.u32 %v5864, 2147483648
        %v5903 = vsel %vm5901, %v5902, %v5900
        %v5904 = vrsqrt.pop %v5865
        %v5905 = vmul.f32 %v5865, %v5904
        %vm5906 = vcmp.eq.f32.partialorder %v5865, inf
        %v5907 = vsel %vm5906, %v5865, %v5905
        %vm5908 = vcmp.eq.f32.partialorder %v5865, 0.0
        %v5909 = vand.u32 %v5865, 2147483648
        %v5910 = vsel %vm5908, %v5909, %v5907
        %v5911 = vrsqrt.pop %v5866
        %v5912 = vmul.f32 %v5866, %v5911
        %vm5913 = vcmp.eq.f32.partialorder %v5866, inf
        %v5914 = vsel %vm5913, %v5866, %v5912
        %vm5915 = vcmp.eq.f32.partialorder %v5866, 0.0
        %v5916 = vand.u32 %v5866, 2147483648
        %v5917 = vsel %vm5915, %v5916, %v5914
        %v5918 = vrsqrt.pop %v5867
        %v5919 = vmul.f32 %v5867, %v5918
        %vm5920 = vcmp.eq.f32.partialorder %v5867, inf
        %v5921 = vsel %vm5920, %v5867, %v5919
        %vm5922 = vcmp.eq.f32.partialorder %v5867, 0.0
        %v5923 = vand.u32 %v5867, 2147483648
        %v5924 = vsel %vm5922, %v5923, %v5921
        %v5925 = vrsqrt.pop %v5868
        %v5926 = vmul.f32 %v5868, %v5925
        %vm5927 = vcmp.eq.f32.partialorder %v5868, inf
        %v5928 = vsel %vm5927, %v5868, %v5926
        %vm5929 = vcmp.eq.f32.partialorder %v5868, 0.0
        %v5930 = vand.u32 %v5868, 2147483648
        %v5931 = vsel %vm5929, %v5930, %v5928
        %v5932 = vrsqrt.pop %v5869
        %v5933 = vmul.f32 %v5869, %v5932
        %vm5934 = vcmp.eq.f32.partialorder %v5869, inf
        %v5935 = vsel %vm5934, %v5869, %v5933
        %vm5936 = vcmp.eq.f32.partialorder %v5869, 0.0
        %v5937 = vand.u32 %v5869, 2147483648
        %v5938 = vsel %vm5936, %v5937, %v5935
        %v5939 = vrsqrt.pop %v5870
        %v5940 = vmul.f32 %v5870, %v5939
        %vm5941 = vcmp.eq.f32.partialorder %v5870, inf
        %v5942 = vsel %vm5941, %v5870, %v5940
        %vm5943 = vcmp.eq.f32.partialorder %v5870, 0.0
        %v5944 = vand.u32 %v5870, 2147483648
        %v5945 = vsel %vm5943, %v5944, %v5942
        %v5946 = vrsqrt.pop %v5871
        %v5947 = vmul.f32 %v5871, %v5946
        %vm5948 = vcmp.eq.f32.partialorder %v5871, inf
        %v5949 = vsel %vm5948, %v5871, %v5947
        %vm5950 = vcmp.eq.f32.partialorder %v5871, 0.0
        %v5951 = vand.u32 %v5871, 2147483648
        %v5952 = vsel %vm5950, %v5951, %v5949
        %v5953 = vrsqrt.pop %v5872
        %v5954 = vmul.f32 %v5872, %v5953
        %vm5955 = vcmp.eq.f32.partialorder %v5872, inf
        %v5956 = vsel %vm5955, %v5872, %v5954
        %vm5957 = vcmp.eq.f32.partialorder %v5872, 0.0
        %v5958 = vand.u32 %v5872, 2147483648
        %v5959 = vsel %vm5957, %v5958, %v5956
        %v5960 = vrsqrt.pop %v5873
        %v5961 = vmul.f32 %v5873, %v5960
        %vm5962 = vcmp.eq.f32.partialorder %v5873, inf
        %v5963 = vsel %vm5962, %v5873, %v5961
        %vm5964 = vcmp.eq.f32.partialorder %v5873, 0.0
        %v5965 = vand.u32 %v5873, 2147483648
        %v5966 = vsel %vm5964, %v5965, %v5963
        %v5967 = vrsqrt.pop %v5874
        %v5968 = vmul.f32 %v5874, %v5967
        %vm5969 = vcmp.eq.f32.partialorder %v5874, inf
        %v5970 = vsel %vm5969, %v5874, %v5968
        %vm5971 = vcmp.eq.f32.partialorder %v5874, 0.0
        %v5972 = vand.u32 %v5874, 2147483648
        %v5973 = vsel %vm5971, %v5972, %v5970
        %v5974 = vrsqrt.pop %v5875
        %v5975 = vmul.f32 %v5875, %v5974
        %vm5976 = vcmp.eq.f32.partialorder %v5875, inf
        %v5977 = vsel %vm5976, %v5875, %v5975
        %vm5978 = vcmp.eq.f32.partialorder %v5875, 0.0
        %v5979 = vand.u32 %v5875, 2147483648
        %v5980 = vsel %vm5978, %v5979, %v5977
        %v5981 = vpack.c.bf16 %v5917, %v5882
        %v5982 = vpack.c.bf16 %v5924, %v5889
        %v5983 = vpack.c.bf16 %v5931, %v5896
        %v5984 = vpack.c.bf16 %v5938, %v5903
        %v5985 = vpack.c.bf16 %v5945, %v5910
        %v5986 = vpack.c.bf16 %v5952, %v5952
        %v5987 = vpack.c.bf16 %v5959, %v5959
        %v5988 = vpack.c.bf16 %v5966, %v5966
        %v5989 = vpack.c.bf16 %v5973, %v5973
        %v5990 = vpack.c.bf16 %v5980, %v5980
        %v5991 = vld [vmem:[#allocation9] sm:$0xf]
        %v5992 = vld [vmem:[#allocation9 + $0x4] sm:$0xf]
        %v5993 = vld [vmem:[#allocation9 + $0x8] sm:$0xf]
        %v5994 = vld [vmem:[#allocation9 + $0xc] sm:$0xf]
        %v5995 = vld [vmem:[#allocation9 + $0x10] sm:$0xf]
        %v5996 = vld [vmem:[#allocation9 + $0x14] sm:$0xf]
        %v5997 = vld [vmem:[#allocation9 + $0x18] sm:$0xf]
        %v5998 = vld [vmem:[#allocation9 + $0x1c] sm:$0xf]
        %v5999 = vld [vmem:[#allocation9 + $0x20] sm:$0xf]
        %v6000 = vld [vmem:[#allocation9 + $0x24] sm:$0xf]
        %v6001 = vld [vmem:[#allocation9 + $0x28] sm:$0xf]
        %v6002 = vld [vmem:[#allocation9 + $0x2c] sm:$0xf]
        %v6003 = vld [vmem:[#allocation9 + $0x30] sm:$0xf]
        %v6004 = vld [vmem:[#allocation9 + $0x34] sm:$0xf]
        %v6005 = vld [vmem:[#allocation9 + $0x38] sm:$0xf]
        %v6006 = vld [vmem:[#allocation9 + $0x3c] sm:$0xf]
        %v6007 = vld [vmem:[#allocation9 + $0x40] sm:$0xf]
        %v6008 = vld [vmem:[#allocation9 + $0x44] sm:$0xf]
        %v6009 = vld [vmem:[#allocation9 + $0x48] sm:$0xf]
        %v6010 = vld [vmem:[#allocation9 + $0x4c] sm:$0xf]
        %v6011 = vld [vmem:[#allocation9 + $0x50] sm:$0xf]
        %v6012 = vld [vmem:[#allocation9 + $0x54] sm:$0xf]
        %v6013 = vld [vmem:[#allocation9 + $0x58] sm:$0xf]
        %v6014 = vld [vmem:[#allocation9 + $0x5c] sm:$0xf]
        %v6015 = vld [vmem:[#allocation9 + $0x60] sm:$0xf]
        %v6016 = vld [vmem:[#allocation9 + $0x64] sm:$0xf]
        %v6017 = vld [vmem:[#allocation9 + $0x68] sm:$0xf]
        %v6018 = vld [vmem:[#allocation9 + $0x6c] sm:$0xf]
        %v6019 = vld [vmem:[#allocation9 + $0x70] sm:$0xf]
        %v6020 = vld [vmem:[#allocation9 + $0x74] sm:$0xf]
        %v6021 = vld [vmem:[#allocation9 + $0x78] sm:$0xf]
        %v6022 = vld [vmem:[#allocation9 + $0x7c] sm:$0xf]
        %v6023 = vld [vmem:[#allocation9 + $0x80] sm:$0xf]
        %v6024 = vld [vmem:[#allocation9 + $0x84] sm:$0xf]
        %v6025 = vld [vmem:[#allocation9 + $0x88] sm:$0xf]
        %v6026 = vld [vmem:[#allocation9 + $0x8c] sm:$0xf]
        %v6027 = vld [vmem:[#allocation9 + $0x90] sm:$0xf]
        %v6028 = vld [vmem:[#allocation9 + $0x94] sm:$0xf]
        %v6029 = vld [vmem:[#allocation9 + $0x98] sm:$0xf]
        %v6030 = vld [vmem:[#allocation9 + $0x9c] sm:$0xf]
        %v6031 = vld [vmem:[#allocation9 + $0xa0] sm:$0xf]
        %v6032 = vld [vmem:[#allocation9 + $0xa4] sm:$0xf]
        %v6033 = vld [vmem:[#allocation9 + $0xa8] sm:$0xf]
        %v6034 = vld [vmem:[#allocation9 + $0xac] sm:$0xf]
        %v6035 = vld [vmem:[#allocation9 + $0xb0] sm:$0xf]
        %v6036 = vld [vmem:[#allocation9 + $0xb4] sm:$0xf]
        %v6037 = vld [vmem:[#allocation9 + $0xb8] sm:$0xf]
        %v6038 = vld [vmem:[#allocation9 + $0xbc] sm:$0xf]
        %v6039 = vld [vmem:[#allocation9 + $0xc0] sm:$0xf]
        %v6040 = vld [vmem:[#allocation9 + $0xc4] sm:$0xf]
        %v6041 = vld [vmem:[#allocation9 + $0xc8] sm:$0xf]
        %v6042 = vld [vmem:[#allocation9 + $0xcc] sm:$0xf]
        %v6043 = vld [vmem:[#allocation9 + $0xd0] sm:$0xf]
        %v6044 = vld [vmem:[#allocation9 + $0xd4] sm:$0xf]
        %v6045 = vld [vmem:[#allocation9 + $0xd8] sm:$0xf]
        %v6046 = vld [vmem:[#allocation9 + $0xdc] sm:$0xf]
        %v6047 = vld [vmem:[#allocation9 + $0xe0] sm:$0xf]
        %v6048 = vld [vmem:[#allocation9 + $0xe4] sm:$0xf]
        %v6049 = vld [vmem:[#allocation9 + $0xe8] sm:$0xf]
        %v6050 = vld [vmem:[#allocation9 + $0xec] sm:$0xf]
        %v6051 = vld [vmem:[#allocation9 + $0xf0] sm:$0xf]
        %v6052 = vld [vmem:[#allocation9 + $0xf4] sm:$0xf]
        %v6053 = vld [vmem:[#allocation9 + $0xf8] sm:$0xf]
        %v6054 = vld [vmem:[#allocation9 + $0xfc] sm:$0xf]
        %v6055 = vld [vmem:[#allocation9 + $0x100] sm:$0xf]
        %v6056 = vld [vmem:[#allocation9 + $0x104] sm:$0xf]
        %v6057 = vld [vmem:[#allocation9 + $0x108] sm:$0xf]
        %v6058 = vld [vmem:[#allocation9 + $0x10c] sm:$0xf]
        %v6059 = vld [vmem:[#allocation9 + $0x110] sm:$0xf]
        %v6060 = vld [vmem:[#allocation9 + $0x114] sm:$0xf]
        %v6061 = vld [vmem:[#allocation9 + $0x118] sm:$0xf]
        %v6062 = vld [vmem:[#allocation9 + $0x11c] sm:$0xf]
        %v6063 = vld [vmem:[#allocation9 + $0x120] sm:$0xf]
        %v6064 = vld [vmem:[#allocation9 + $0x124] sm:$0xf]
        %v6065 = vld [vmem:[#allocation9 + $0x128] sm:$0xf]
        %v6066 = vld [vmem:[#allocation9 + $0x12c] sm:$0xf]
        %v6067 = vld [vmem:[#allocation9 + $0x130] sm:$0xf]
        %v6068 = vld [vmem:[#allocation9 + $0x134] sm:$0xf]
        %v6069 = vld [vmem:[#allocation9 + $0x138] sm:$0xf]
        %v6070 = vld [vmem:[#allocation9 + $0x13c] sm:$0xf]
        %v6151 = vunpack.c.l.b16 %v5991
        %v6152 = vunpack.c.l.b16 %v5992
        %v6153 = vunpack.c.l.b16 %v5993
        %v6154 = vunpack.c.l.b16 %v5994
        %v6155 = vunpack.c.l.b16 %v5995
        %v6156 = vunpack.c.l.b16 %v5996
        %v6157 = vunpack.c.l.b16 %v5997
        %v6158 = vunpack.c.l.b16 %v5998
        %v6159 = vunpack.c.l.b16 %v5999
        %v6160 = vunpack.c.l.b16 %v6000
        %v6161 = vunpack.c.l.b16 %v6001
        %v6162 = vunpack.c.l.b16 %v6002
        %v6163 = vunpack.c.l.b16 %v6003
        %v6164 = vunpack.c.l.b16 %v6004
        %v6165 = vunpack.c.l.b16 %v6005
        %v6166 = vunpack.c.l.b16 %v6006
        %v6167 = vunpack.c.l.b16 %v6007
        %v6168 = vunpack.c.l.b16 %v6008
        %v6169 = vunpack.c.l.b16 %v6009
        %v6170 = vunpack.c.l.b16 %v6010
        %v6171 = vunpack.c.l.b16 %v6011
        %v6172 = vunpack.c.l.b16 %v6012
        %v6173 = vunpack.c.l.b16 %v6013
        %v6174 = vunpack.c.l.b16 %v6014
        %v6175 = vunpack.c.l.b16 %v6015
        %v6176 = vunpack.c.l.b16 %v6016
        %v6177 = vunpack.c.l.b16 %v6017
        %v6178 = vunpack.c.l.b16 %v6018
        %v6179 = vunpack.c.l.b16 %v6019
        %v6180 = vunpack.c.l.b16 %v6020
        %v6181 = vunpack.c.l.b16 %v6021
        %v6182 = vunpack.c.l.b16 %v6022
        %v6183 = vunpack.c.l.b16 %v6023
        %v6184 = vunpack.c.l.b16 %v6024
        %v6185 = vunpack.c.l.b16 %v6025
        %v6186 = vunpack.c.l.b16 %v6026
        %v6187 = vunpack.c.l.b16 %v6027
        %v6188 = vunpack.c.l.b16 %v6028
        %v6189 = vunpack.c.l.b16 %v6029
        %v6190 = vunpack.c.l.b16 %v6030
        %v6191 = vunpack.c.l.b16 %v6031
        %v6192 = vunpack.c.l.b16 %v6032
        %v6193 = vunpack.c.l.b16 %v6033
        %v6194 = vunpack.c.l.b16 %v6034
        %v6195 = vunpack.c.l.b16 %v6035
        %v6196 = vunpack.c.l.b16 %v6036
        %v6197 = vunpack.c.l.b16 %v6037
        %v6198 = vunpack.c.l.b16 %v6038
        %v6199 = vunpack.c.l.b16 %v6039
        %v6200 = vunpack.c.l.b16 %v6040
        %v6201 = vunpack.c.l.b16 %v6041
        %v6202 = vunpack.c.l.b16 %v6042
        %v6203 = vunpack.c.l.b16 %v6043
        %v6204 = vunpack.c.l.b16 %v6044
        %v6205 = vunpack.c.l.b16 %v6045
        %v6206 = vunpack.c.l.b16 %v6046
        %v6207 = vunpack.c.l.b16 %v6047
        %v6208 = vunpack.c.l.b16 %v6048
        %v6209 = vunpack.c.l.b16 %v6049
        %v6210 = vunpack.c.l.b16 %v6050
        %v6211 = vunpack.c.l.b16 %v6051
        %v6212 = vunpack.c.l.b16 %v6052
        %v6213 = vunpack.c.l.b16 %v6053
        %v6214 = vunpack.c.l.b16 %v6054
        %v6215 = vunpack.c.l.b16 %v6055
        %v6216 = vunpack.c.l.b16 %v6056
        %v6217 = vunpack.c.l.b16 %v6057
        %v6218 = vunpack.c.l.b16 %v6058
        %v6219 = vunpack.c.l.b16 %v6059
        %v6220 = vunpack.c.l.b16 %v6060
        %v6221 = vunpack.c.l.b16 %v6061
        %v6222 = vunpack.c.l.b16 %v6062
        %v6223 = vunpack.c.l.b16 %v6063
        %v6224 = vunpack.c.l.b16 %v6064
        %v6225 = vunpack.c.l.b16 %v6065
        %v6226 = vunpack.c.l.b16 %v6066
        %v6227 = vunpack.c.l.b16 %v6067
        %v6228 = vunpack.c.l.b16 %v6068
        %v6229 = vunpack.c.l.b16 %v6069
        %v6230 = vunpack.c.l.b16 %v6070
        %v6231 = vpack.c.b16 %v6152, %v6151
        %v6232 = vpack.c.b16 %v6154, %v6153
        %v6233 = vpack.c.b16 %v6156, %v6155
        %v6234 = vpack.c.b16 %v6158, %v6157
        %v6235 = vpack.c.b16 %v6160, %v6159
        %v6236 = vpack.c.b16 %v6162, %v6161
        %v6237 = vpack.c.b16 %v6164, %v6163
        %v6238 = vpack.c.b16 %v6166, %v6165
        %v6239 = vpack.c.b16 %v6168, %v6167
        %v6240 = vpack.c.b16 %v6170, %v6169
        %v6241 = vpack.c.b16 %v6172, %v6171
        %v6242 = vpack.c.b16 %v6174, %v6173
        %v6243 = vpack.c.b16 %v6176, %v6175
        %v6244 = vpack.c.b16 %v6178, %v6177
        %v6245 = vpack.c.b16 %v6180, %v6179
        %v6246 = vpack.c.b16 %v6182, %v6181
        %v6247 = vpack.c.b16 %v6184, %v6183
        %v6248 = vpack.c.b16 %v6186, %v6185
        %v6249 = vpack.c.b16 %v6188, %v6187
        %v6250 = vpack.c.b16 %v6190, %v6189
        %v6251 = vpack.c.b16 %v6192, %v6191
        %v6252 = vpack.c.b16 %v6194, %v6193
        %v6253 = vpack.c.b16 %v6196, %v6195
        %v6254 = vpack.c.b16 %v6198, %v6197
        %v6255 = vpack.c.b16 %v6200, %v6199
        %v6256 = vpack.c.b16 %v6202, %v6201
        %v6257 = vpack.c.b16 %v6204, %v6203
        %v6258 = vpack.c.b16 %v6206, %v6205
        %v6259 = vpack.c.b16 %v6208, %v6207
        %v6260 = vpack.c.b16 %v6210, %v6209
        %v6261 = vpack.c.b16 %v6212, %v6211
        %v6262 = vpack.c.b16 %v6214, %v6213
        %v6263 = vpack.c.b16 %v6216, %v6215
        %v6264 = vpack.c.b16 %v6218, %v6217
        %v6265 = vpack.c.b16 %v6220, %v6219
        %v6266 = vpack.c.b16 %v6222, %v6221
        %v6267 = vpack.c.b16 %v6224, %v6223
        %v6268 = vpack.c.b16 %v6226, %v6225
        %v6269 = vpack.c.b16 %v6228, %v6227
        %v6270 = vpack.c.b16 %v6230, %v6229
        %6311 = vmatprep.subr.bf16.mxu0 0
        %6312 = vmatpush1.bf16.msra.mxu0 %v6231
        %6313 = vmatprep.subr.bf16.mxu0 0
        %6314 = vmatpush1.bf16.msra.mxu0 %v6232
        %6315 = vmatprep.subr.bf16.mxu0 0
        %6316 = vmatpush1.bf16.msra.mxu0 %v6233
        %6317 = vmatprep.subr.bf16.mxu0 0
        %6318 = vmatpush1.bf16.msra.mxu0 %v6234
        %6319 = vmatprep.subr.bf16.mxu0 0
        %6320 = vmatpush1.bf16.msra.mxu0 %v6235
        %6321 = vmatprep.subr.bf16.mxu0 0
        %6322 = vmatpush1.bf16.msra.mxu0 %v6236
        %6323 = vmatprep.subr.bf16.mxu0 0
        %6324 = vmatpush1.bf16.msra.mxu0 %v6237
        %6325 = vmatprep.subr.bf16.mxu0 0
        %6326 = vmatpush1.bf16.msra.mxu0 %v6238
        %6327 = vmatprep.subr.bf16.mxu0 0
        %6328 = vmatpush1.bf16.msra.mxu0 %v6239
        %6329 = vmatprep.subr.bf16.mxu0 0
        %6330 = vmatpush1.bf16.msra.mxu0 %v6240
        %6331 = vmatprep.subr.bf16.mxu0 0
        %6332 = vmatpush1.bf16.msra.mxu0 %v6241
        %6333 = vmatprep.subr.bf16.mxu0 0
        %6334 = vmatpush1.bf16.msra.mxu0 %v6242
        %6335 = vmatprep.subr.bf16.mxu0 0
        %6336 = vmatpush1.bf16.msra.mxu0 %v6243
        %6337 = vmatprep.subr.bf16.mxu0 0
        %6338 = vmatpush1.bf16.msra.mxu0 %v6244
        %6339 = vmatprep.subr.bf16.mxu0 0
        %6340 = vmatpush1.bf16.msra.mxu0 %v6245
        %6341 = vmatprep.subr.bf16.mxu0 0
        %6342 = vmatpush1.bf16.msra.mxu0 %v6246
        %6343 = vmatprep.mubr.bf16.mxu0 %v5982
        %6344 = vmatmul.mubr.bf16.gmra.mrb[0].mxu0 %v5981
        %v6345 = vpop.f32.mrb[0].mxu0
        %v6346 = vadd.f32 0.0, %v6345
        %v6347 = vpop.f32.mrb[0].mxu0
        %v6348 = vpop.f32.mrb[0].mxu0
        %v6349 = vadd.f32 0.0, %v6348
        %v6350 = vpop.f32.mrb[0].mxu0
        %6351 = vmatprep.mubr.bf16.mxu0 %v5987
        %6352 = vmatmul.mubr.bf16.gmra.mrb[0].mxu0 %v5986
        %v6353 = vpop.f32.mrb[0].mxu0
        %v6354 = vadd.f32 0.0, %v6353
        %v6355 = vpop.f32.mrb[0].mxu0
        %v6356 = vpop.f32.mrb[0].mxu0
        %v6357 = vpop.f32.mrb[0].mxu0
        %6358 = vdwg.mxu0
        %6359 = vmatprep.subr.bf16.mxu0 0
        %6360 = vmatpush1.bf16.msra.mxu0 %v6247
        %6361 = vmatprep.subr.bf16.mxu0 0
        %6362 = vmatpush1.bf16.msra.mxu0 %v6248
        %6363 = vmatprep.subr.bf16.mxu0 0
        %6364 = vmatpush1.bf16.msra.mxu0 %v6249
        %6365 = vmatprep.subr.bf16.mxu0 0
        %6366 = vmatpush1.bf16.msra.mxu0 %v6250
        %6367 = vmatprep.subr.bf16.mxu0 0
        %6368 = vmatpush1.bf16.msra.mxu0 %v6251
        %6369 = vmatprep.subr.bf16.mxu0 0
        %6370 = vmatpush1.bf16.msra.mxu0 %v6252
        %6371 = vmatprep.subr.bf16.mxu0 0
        %6372 = vmatpush1.bf16.msra.mxu0 %v6253
        %6373 = vmatprep.subr.bf16.mxu0 0
        %6374 = vmatpush1.bf16.msra.mxu0 %v6254
        %6375 = vmatprep.subr.bf16.mxu0 0
        %6376 = vmatpush1.bf16.msra.mxu0 %v6255
        %6377 = vmatprep.subr.bf16.mxu0 0
        %6378 = vmatpush1.bf16.msra.mxu0 %v6256
        %6379 = vmatprep.subr.bf16.mxu0 0
        %6380 = vmatpush1.bf16.msra.mxu0 %v6257
        %6381 = vmatprep.subr.bf16.mxu0 0
        %6382 = vmatpush1.bf16.msra.mxu0 %v6258
        %6383 = vmatprep.subr.bf16.mxu0 0
        %6384 = vmatpush1.bf16.msra.mxu0 %v6259
        %6385 = vmatprep.subr.bf16.mxu0 0
        %6386 = vmatpush1.bf16.msra.mxu0 %v6260
        %6387 = vmatprep.subr.bf16.mxu0 0
        %6388 = vmatpush1.bf16.msra.mxu0 %v6261
        %6389 = vmatprep.subr.bf16.mxu0 0
        %6390 = vmatpush1.bf16.msra.mxu0 %v6262
        %6391 = vmatprep.mubr.bf16.mxu0 %v5984
        %6392 = vmatmul.mubr.bf16.gmra.mrb[0].mxu0 %v5983
        %v6393 = vpop.f32.mrb[0].mxu0
        %v6394 = vadd.f32 %v6346, %v6393
        %v6395 = vpop.f32.mrb[0].mxu0
        %v6396 = vpop.f32.mrb[0].mxu0
        %v6397 = vadd.f32 %v6349, %v6396
        %v6398 = vpop.f32.mrb[0].mxu0
        %6399 = vmatprep.mubr.bf16.mxu0 %v5989
        %6400 = vmatmul.mubr.bf16.gmra.mrb[0].mxu0 %v5988
        %v6401 = vpop.f32.mrb[0].mxu0
        %v6402 = vadd.f32 %v6354, %v6401
        %v6403 = vpop.f32.mrb[0].mxu0
        %v6404 = vpop.f32.mrb[0].mxu0
        %v6405 = vpop.f32.mrb[0].mxu0
        %6406 = vdwg.mxu0
        %6407 = vmatprep.subr.bf16.mxu0 0
        %6408 = vmatpush1.bf16.msra.mxu0 %v6263
        %6409 = vmatprep.subr.bf16.mxu0 0
        %6410 = vmatpush1.bf16.msra.mxu0 %v6264
        %6411 = vmatprep.subr.bf16.mxu0 0
        %6412 = vmatpush1.bf16.msra.mxu0 %v6265
        %6413 = vmatprep.subr.bf16.mxu0 0
        %6414 = vmatpush1.bf16.msra.mxu0 %v6266
        %6415 = vmatprep.subr.bf16.mxu0 0
        %6416 = vmatpush1.bf16.msra.mxu0 %v6267
        %6417 = vmatprep.subr.bf16.mxu0 0
        %6418 = vmatpush1.bf16.msra.mxu0 %v6268
        %6419 = vmatprep.subr.bf16.mxu0 0
        %6420 = vmatpush1.bf16.msra.mxu0 %v6269
        %6421 = vmatprep.subr.bf16.mxu0 0
        %6422 = vmatpush1.bf16.msra.mxu0 %v6270
        %6423 = vmatprep.subr.bf16.mxu0 0
        %6424 = vmatpush1.bf16.msra.mxu0 0
        %6425 = vmatprep.subr.bf16.mxu0 0
        %6426 = vmatpush1.bf16.msra.mxu0 0
        %6427 = vmatprep.subr.bf16.mxu0 0
        %6428 = vmatpush1.bf16.msra.mxu0 0
        %6429 = vmatprep.subr.bf16.mxu0 0
        %6430 = vmatpush1.bf16.msra.mxu0 0
        %6431 = vmatprep.subr.bf16.mxu0 0
        %6432 = vmatpush1.bf16.msra.mxu0 0
        %6433 = vmatprep.subr.bf16.mxu0 0
        %6434 = vmatpush1.bf16.msra.mxu0 0
        %6435 = vmatprep.subr.bf16.mxu0 0
        %6436 = vmatpush1.bf16.msra.mxu0 0
        %6437 = vmatprep.subr.bf16.mxu0 0
        %6438 = vmatpush1.bf16.msra.mxu0 0
        %6439 = vmatprep.mubr.bf16.mxu0 0
        %6440 = vmatmul.mubr.bf16.gmra.mrb[0].mxu0 %v5985
        %v6441 = vpop.f32.mrb[0].mxu0
        %v6442 = vadd.f32 %v6394, %v6441
        %v6443 = vpop.f32.mrb[0].mxu0
        %v6444 = vpop.f32.mrb[0].mxu0
        %v6445 = vadd.f32 %v6397, %v6444
        %v6446 = vpop.f32.mrb[0].mxu0
        %6447 = vmatprep.mubr.bf16.mxu0 0
        %6448 = vmatmul.mubr.bf16.gmra.mrb[0].mxu0 %v5990
        %v6449 = vpop.f32.mrb[0].mxu0
        %v6450 = vadd.f32 %v6402, %v6449
        %v6451 = vpop.f32.mrb[0].mxu0
        %v6452 = vpop.f32.mrb[0].mxu0
        %v6453 = vpop.f32.mrb[0].mxu0
        %6454 = vdwg.mxu0
        %v6455 = vmax.f32 %v6442, 1e-07
        %v6456 = vmax.f32 %v6445, 1e-07
        %v6457 = vmax.f32 %v6450, 1e-07
        %v6458 = vlog2.pop %v6455
        %v6459 = vmul.f32 %v6458, 0.6931472
        %v6460 = vlog2.pop %v6456
        %v6461 = vmul.f32 %v6460, 0.6931472
        %v6462 = vlog2.pop %v6457
        %v6463 = vmul.f32 %v6462, 0.6931472
        %6464 = vxpose.xlu0.b32.start [1/16] %v6459, 128
        %6465 = vxpose.xlu0.b32.cont [2/16] %v6461, 128
        %6466 = vxpose.xlu0.b32.cont [3/16] %v6463, 128
        %6467 = vxpose.xlu0.b32.cont [4/16] 0.0, 128
        %6468 = vxpose.xlu0.b32.cont [5/16] 0.0, 128
        %6469 = vxpose.xlu0.b32.cont [6/16] 0.0, 128
        %6470 = vxpose.xlu0.b32.cont [7/16] 0.0, 128
        %6471 = vxpose.xlu0.b32.cont [8/16] 0.0, 128
        %6472 = vxpose.xlu0.b32.cont [9/16] 0.0, 128
        %6473 = vxpose.xlu0.b32.cont [10/16] 0.0, 128
        %6474 = vxpose.xlu0.b32.cont [11/16] 0.0, 128
        %6475 = vxpose.xlu0.b32.cont [12/16] 0.0, 128
        %6476 = vxpose.xlu0.b32.cont [13/16] 0.0, 128
        %6477 = vxpose.xlu0.b32.cont [14/16] 0.0, 128
        %6478 = vxpose.xlu0.b32.cont [15/16] 0.0, 128
        %6479 = vxpose.xlu0.b32.end [16/16] 0.0, 128
        %v6480 = vpop.trf.xlu0
        %v6481 = vpop.trf.xlu0
        %v6482 = vpop.trf.xlu0
        %v6483 = vpop.trf.xlu0
        %v6484 = vpop.trf.xlu0
        %v6485 = vpop.trf.xlu0
        %v6486 = vpop.trf.xlu0
        %v6487 = vpop.trf.xlu0
        %v6488 = vpop.trf.xlu0
        %v6489 = vpop.trf.xlu0
        %v6490 = vpop.trf.xlu0
        %v6491 = vpop.trf.xlu0
        %v6492 = vpop.trf.xlu0
        %v6493 = vpop.trf.xlu0
        %v6494 = vpop.trf.xlu0
        %v6495 = vpop.trf.xlu0
        %vm6496 = vcmask 195584
        %6497 = vst.msk [vmem:[%s375] sm:$0xff] %vm6496, %v6480
        %6498 = vst.msk [vmem:[%s375 + $0x8] sm:$0xff] %vm6496, %v6481
        %6499 = vst.msk [vmem:[%s375 + $0x10] sm:$0xff] %vm6496, %v6482
        %6500 = vst.msk [vmem:[%s375 + $0x18] sm:$0xff] %vm6496, %v6483
        %6501 = vst.msk [vmem:[%s375 + $0x20] sm:$0xff] %vm6496, %v6484
        %6502 = vst.msk [vmem:[%s375 + $0x28] sm:$0xff] %vm6496, %v6485
        %6503 = vst.msk [vmem:[%s375 + $0x30] sm:$0xff] %vm6496, %v6486
        %6504 = vst.msk [vmem:[%s375 + $0x38] sm:$0xff] %vm6496, %v6487
        %6505 = vst.msk [vmem:[%s375 + $0x40] sm:$0xff] %vm6496, %v6488
        %6506 = vst.msk [vmem:[%s375 + $0x48] sm:$0xff] %vm6496, %v6489
        %6507 = vst.msk [vmem:[%s375 + $0x50] sm:$0xff] %vm6496, %v6490
        %6508 = vst.msk [vmem:[%s375 + $0x58] sm:$0xff] %vm6496, %v6491
        %6509 = vst.msk [vmem:[%s375 + $0x60] sm:$0xff] %vm6496, %v6492
        %6510 = vst.msk [vmem:[%s375 + $0x68] sm:$0xff] %vm6496, %v6493
        %6511 = vst.msk [vmem:[%s375 + $0x70] sm:$0xff] %vm6496, %v6494
        %6512 = vst.msk [vmem:[%s375 + $0x78] sm:$0xff] %vm6496, %v6495
        %p6513 = scmp.lt.s32.totalorder %s27, 1
        %s6514 = scalar_select %p6513, %s27, 1
        %p6515 = scmp.lt.s32.totalorder %s28, 0
        %s6516 = scalar_select %p6515, %s28, 0
        %s6517 = smul.addr %s6514, 16
        %s6518 = sadd.s32 %s6516, %s6517
        %s6519 = smul.addr %s6518, 8
        %s6520 = scalar_lea.vmem %s5, %s6519
        // Predicated region
        $region61: #{tpu_custom_call.1} parent=39 // pred_check
          %p6521 = pneg %p178
        $region62: #{tpu_custom_call.1} parent=39 // pred_check_branch
          %6523 = sbr.rel (%p6521) target = $region64
        $region63: #{tpu_custom_call.1} parent=39 // pred_region
          _
        $region64: #{tpu_custom_call.1} parent=39 // pred_fallthru
          _
      $region40: #{tpu_custom_call.1} parent=5 // pred_fallthru
        _
      %p6524 = scmp.le.s32.totalorder 2, %s18
      // Predicated region
      $region65: #{tpu_custom_call.1} parent=5 // pred_check
        %p6525 = pneg %p6524
      $region66: #{tpu_custom_call.1} parent=5 // pred_check_branch
        %6527 = sbr.rel (%p6525) target = $region68
      $region67: #{tpu_custom_call.1} parent=5 // pred_region
        %s6528 = ssub.s32 %s18, 2
        // Predicated region
        $region69: #{tpu_custom_call.1} parent=67 // pred_check
          %p6529 = pneg %p184
        $region70: #{tpu_custom_call.1} parent=67 // pred_check_branch
          %6531 = sbr.rel (%p6529) target = $region72
        $region71: #{tpu_custom_call.1} parent=67 // pred_region
          %p6532 = scmp.lt.s32.totalorder %s29, 1
          %s6533 = scalar_select %p6532, %s29, 1
          %p6534 = scmp.lt.s32.totalorder %s30, 0
          %s6535 = scalar_select %p6534, %s30, 0
          %s6536 = smul.addr %s6533, 16
          %s6537 = sadd.s32 %s6535, %s6536
          %s6538 = smul.addr %s6537, 8
          %s6539 = scalar_lea.vmem %s5, %s6538
        $region72: #{tpu_custom_call.1} parent=67 // pred_fallthru
          _
      $region68: #{tpu_custom_call.1} parent=5 // pred_fallthru
        _
    $region6: #{tpu_custom_call.1} parent=1 // loop_footer
      %s22 = sadd.s32 1, %s18
    $region7: #{tpu_custom_call.1} parent=1 // loop_footer_branch
      %17 = sbr.rel target = $region3
    $region8: #{tpu_custom_call.1} parent=1 // loop_exit
      _
    %6540 = vsyncpa [#allocation3], 1
    %s6541 = scalar_lea.sflag [#allocation3], 1
    %6542 = vsyncpa %s6541, 1
    %6543 = vsyncpa [#allocation5], 1
    %s6544 = scalar_lea.sflag [#allocation5], 1
    %6545 = vsyncpa %s6544, 1
    %6546 = vsyncpa [#allocation8], 1

</llo_original>
